<compile_context>
chip_gen: v7x
topology: tpu7x:2x2x1
jax: 0.10.0
libtpu: 0.0.40
codegen_flags: <defaults>
</compile_context>

<pallas_src>
import functools

import jax
import jax.numpy as jnp
from jax.experimental import pallas as pl
from jax.experimental.pallas import tpu as pltpu

BN_EPS = 1e-5
LANE = 128


def _round_up(x, m):
    return (x + m - 1) // m * m


def _bottleneck_kernel(H, W, Pp, x_ref, w1_ref, w2_ref, w3_ref,
                       b1_ref, b2_ref, b3_ref, o_ref, pad_ref):
    HW = H * W
    f32 = jnp.float32
    bf16 = jnp.bfloat16

    x = x_ref[0]                                               # (HW, Cp) bf16

    # ---- conv1 (1x1, BN1 scale folded into weights) + bias + relu ----------
    h1 = jnp.dot(x, w1_ref[...], preferred_element_type=f32)
    h1 = jnp.maximum(h1 + b1_ref[...], 0.0)                    # (HW, Pp) f32
    h1 = h1.astype(bf16)                                       # single cast; staging in bf16

    # ---- stage conv2 lhs: [dx=-1 | dx=0 | dx=+1] variants of h1 ------------
    # Horizontal +-1 (flat-row) shifts are written directly as offset stores
    # of sliced values (no concatenate copies); the left/right image-boundary
    # masks use an (HW, 1) column index broadcast inside the selects.  The
    # vertical +-W shifts become static slice reads of the row-padded scratch.
    col = jax.lax.broadcasted_iota(jnp.int32, (HW, 1), 0) % W   # (HW, 1)
    zhalo = jnp.zeros((W, 3 * Pp), bf16)
    zrow = jnp.zeros((1, Pp), bf16)

    pad_ref[0:W, :] = zhalo                                     # top halo rows
    pad_ref[W + HW:2 * W + HW, :] = zhalo                       # bottom halo rows

    # dx = 0
    pad_ref[W:W + HW, Pp:2 * Pp] = h1
    # dx = -1: dest row d holds h1[d-1] iff col(d) >= 1 (row 0 has col 0 -> 0)
    pad_ref[W:W + 1, 0:Pp] = zrow
    pad_ref[W + 1:W + HW, 0:Pp] = jnp.where(col[1:] >= 1, h1[:HW - 1], 0)
    # dx = +1: dest row d holds h1[d+1] iff col(d) <= W-2 (row HW-1 -> 0)
    pad_ref[W:W + HW - 1, 2 * Pp:3 * Pp] = jnp.where(col[:HW - 1] <= W - 2, h1[1:], 0)
    pad_ref[W + HW - 1:W + HW, 2 * Pp:3 * Pp] = zrow

    # ---- conv2 (3x3) as 3 matmuls with K = 3*Pp (one per vertical tap) -----
    acc = jnp.dot(pad_ref[0:HW, :], w2_ref[0], preferred_element_type=f32)
    acc = acc + jnp.dot(pad_ref[W:W + HW, :], w2_ref[1],
                        preferred_element_type=f32)
    acc = acc + jnp.dot(pad_ref[2 * W:2 * W + HW, :], w2_ref[2],
                        preferred_element_type=f32)
    h2 = jnp.maximum(acc + b2_ref[...], 0.0)                   # (HW, Pp) f32

    # ---- conv3 (1x1) + bias + residual + relu, bf16 writeback --------------
    # NOTE: the residual uses the bf16-quantized input (same stream that fed
    # conv1); the extra error is well below the bf16 output quantization.
    h3 = jnp.dot(h2.astype(bf16), w3_ref[...], preferred_element_type=f32)
    out = jnp.maximum(h3 + b3_ref[...] + x.astype(f32), 0.0)
    o_ref[0] = out.astype(o_ref.dtype)


def _vmem_bytes_estimate(HW, W, Cp, Pp):
    """Rough VMEM need: double-buffered I/O + weights, scratch, f32 temporaries."""
    bfb, f32b = 2, 4
    io = 2 * HW * Cp * bfb * 2                                   # x in + bf16 out
    wgt = 2 * (Cp * Pp + 3 * (3 * Pp) * Pp + Pp * Cp) * bfb      # w1, w2 slab, w3
    wgt += 2 * (2 * Pp + Cp) * f32b                              # biases
    scratch = (HW + 2 * W) * 3 * Pp * bfb
    temps = 3 * HW * Pp * f32b + 2 * HW * Cp * f32b              # h1/acc/h2, h3/out
    return io + wgt + scratch + temps


def bottleneck_forward(x_nchw, params):
    (w1_oihw, w2_oihw, w3_oihw,
     g1, be1, m1, v1, g2, be2, m2, v2, g3, be3, m3, v3) = params
    N, Cin, H, W = x_nchw.shape
    P = w1_oihw.shape[0]
    Cout = w3_oihw.shape[0]
    assert Cout == Cin, "residual add requires inplanes == planes * expansion"
    HW = H * W

    Cp = _round_up(Cin, LANE)   # padded Cin == padded Cout
    Pp = _round_up(P, LANE)

    def fold(g, b, m, v):
        s = (g / jnp.sqrt(v + BN_EPS)).astype(jnp.float32)
        return s, (b - m * s).astype(jnp.float32)

    s1, b1 = fold(g1, be1, m1, v1)
    s2, b2 = fold(g2, be2, m2, v2)
    s3, b3 = fold(g3, be3, m3, v3)

    # Fold BN scales into conv weights, pad channels to lane multiples, cast bf16.
    w1 = jnp.transpose(w1_oihw[:, :, 0, 0], (1, 0)).astype(jnp.float32) * s1[None, :]
    w1p = jnp.zeros((Cp, Pp), jnp.float32).at[:Cin, :P].set(w1).astype(jnp.bfloat16)

    w2 = jnp.transpose(w2_oihw, (2, 3, 1, 0)).astype(jnp.float32)        # (ky,kx,Pin,Pout)
    w2 = w2 * s2[None, None, None, :]
    w2p = jnp.zeros((3, 3, Pp, Pp), jnp.float32).at[:, :, :P, :P].set(w2)
    w2p = w2p.reshape(3, 3 * Pp, Pp).astype(jnp.bfloat16)                # (3, 3Pp, Pp)

    w3 = jnp.transpose(w3_oihw[:, :, 0, 0], (1, 0)).astype(jnp.float32) * s3[None, :]
    w3p = jnp.zeros((Pp, Cp), jnp.float32).at[:P, :Cout].set(w3).astype(jnp.bfloat16)

    b1p = jnp.zeros((1, Pp), jnp.float32).at[0, :P].set(b1)
    b2p = jnp.zeros((1, Pp), jnp.float32).at[0, :P].set(b2)
    b3p = jnp.zeros((1, Cp), jnp.float32).at[0, :Cout].set(b3)

    # NCHW -> (N, HW, Cp) bf16 (padded channels are zero).
    x = jnp.transpose(x_nchw, (0, 2, 3, 1)).reshape(N, HW, Cin)
    xp = jnp.zeros((N, HW, Cp), jnp.bfloat16).at[:, :, :Cin].set(x.astype(jnp.bfloat16))

    # VMEM budget: computed from actual buffer usage, capped for v7x headroom.
    est = _vmem_bytes_estimate(HW, W, Cp, Pp)
    vmem_limit = int(min(max(2 * est + (8 << 20), 32 << 20), 56 << 20))

    kernel = functools.partial(_bottleneck_kernel, H, W, Pp)
    full = lambda *s: pl.BlockSpec(s, lambda n: (0,) * len(s))

    out = pl.pallas_call(
        kernel,
        out_shape=jax.ShapeDtypeStruct((N, HW, Cp), jnp.bfloat16),
        grid=(N,),
        in_specs=[
            pl.BlockSpec((1, HW, Cp), lambda n: (n, 0, 0)),   # x
            full(Cp, Pp),                                     # w1 (BN scale folded)
            full(3, 3 * Pp, Pp),                              # w2 slab (BN scale folded)
            full(Pp, Cp),                                     # w3 (BN scale folded)
            full(1, Pp), full(1, Pp), full(1, Cp),            # bn biases
        ],
        out_specs=pl.BlockSpec((1, HW, Cp), lambda n: (n, 0, 0)),
        scratch_shapes=[pltpu.VMEM((HW + 2 * W, 3 * Pp), jnp.bfloat16)],
        compiler_params=pltpu.CompilerParams(
            dimension_semantics=("parallel",),
            vmem_limit_bytes=vmem_limit),
    )(xp, w1p, w2p, w3p, b1p, b2p, b3p)

    out = out[:, :, :Cout].reshape(N, H, W, Cout)
    return jnp.transpose(out, (0, 3, 1, 2))       # NCHW, bf16


def bottleneck_ref(x, params):
    """Pure-JAX reference (lax conv, NCHW, f32) for numerical validation."""
    (w1, w2, w3, g1, be1, m1, v1, g2, be2, m2, v2, g3, be3, m3, v3) = params

    def bn(y, g, b, m, v):
        s = g / jnp.sqrt(v + BN_EPS)
        return y * s[None, :, None, None] + (b - m * s)[None, :, None, None]

    def conv(y, w, pad):
        return jax.lax.conv_general_dilated(
            y, w, window_strides=(1, 1), padding=pad,
            dimension_numbers=("NCHW", "OIHW", "NCHW"))

    out = jax.nn.relu(bn(conv(x, w1, "VALID"), g1, be1, m1, v1))
    out = jax.nn.relu(bn(conv(out, w2, [(1, 1), (1, 1)]), g2, be2, m2, v2))
    out = bn(conv(out, w3, "VALID"), g3, be3, m3, v3)
    return jax.nn.relu(out + x)


if __name__ == "__main__":
    N, inplanes, planes, H, W = 2, 16, 4, 16, 16
    expansion = 4  # Bottleneck.expansion; inplanes == planes * expansion

    key = jax.random.PRNGKey(0)
    ks = jax.random.split(key, 8)
    x = jax.random.normal(ks[0], (N, inplanes, H, W), jnp.float32)
    w1 = jax.random.normal(ks[1], (planes, inplanes, 1, 1), jnp.float32) * 0.2
    w2 = jax.random.normal(ks[2], (planes, planes, 3, 3), jnp.float32) * 0.2
    w3 = jax.random.normal(ks[3], (planes * expansion, planes, 1, 1), jnp.float32) * 0.2

    def bn_params(k, c):
        k1, k2, k3, k4 = jax.random.split(k, 4)
        g = jax.random.uniform(k1, (c,), jnp.float32, 0.5, 1.5)
        b = jax.random.normal(k2, (c,), jnp.float32) * 0.1
        m = jax.random.normal(k3, (c,), jnp.float32) * 0.1
        v = jax.random.uniform(k4, (c,), jnp.float32, 0.5, 1.5)
        return g, b, m, v

    g1, be1, m1, v1 = bn_params(ks[4], planes)
    g2, be2, m2, v2 = bn_params(ks[5], planes)
    g3, be3, m3, v3 = bn_params(ks[6], planes * expansion)
    params = (w1, w2, w3, g1, be1, m1, v1, g2, be2, m2, v2, g3, be3, m3, v3)

    out = jax.block_until_ready(bottleneck_forward(x, params))
    ref = jax.block_until_ready(bottleneck_ref(x, params))

    assert out.shape == (N, planes * expansion, H, W), out.shape
    out_f32 = out.astype(jnp.float32)
    # bf16 matmul operands + bf16 output store with f32 accumulation ->
    # loosened tolerance vs the f32 reference.
    err = float(jnp.max(jnp.abs(out_f32 - ref)))
    assert jnp.allclose(out_f32, ref, rtol=5e-2, atol=1e-1), err
    print("KERNEL_OK")
</pallas_src>

<mosaic_0001>
module attributes {stable_mosaic.version = 11 : i64} {
  func.func @_bottleneck_kernel(%arg0: i32, %arg1: memref<1x256x128xbf16, #tpu.memory_space<vmem>>, %arg2: memref<128x128xbf16, #tpu.memory_space<vmem>>, %arg3: memref<3x384x128xbf16, #tpu.memory_space<vmem>>, %arg4: memref<128x128xbf16, #tpu.memory_space<vmem>>, %arg5: memref<1x128xf32, #tpu.memory_space<vmem>>, %arg6: memref<1x128xf32, #tpu.memory_space<vmem>>, %arg7: memref<1x128xf32, #tpu.memory_space<vmem>>, %arg8: memref<1x256x128xbf16, #tpu.memory_space<vmem>>, %arg9: memref<288x384xbf16, #tpu.memory_space<vmem>>) attributes {dimension_semantics = [#tpu.dimension_semantics<parallel>], iteration_bounds = array<i64: 2>, scalar_prefetch = 0 : i64, scratch_operands = 1 : i64, tpu.core_type = #tpu.core_type<tc>, window_params = [{transform_indices = @transform_0, window_bounds = array<i64: 1, 256, 128>}, {pipeline_mode = #tpu.pipeline_mode<synchronous>, transform_indices = @transform_1, window_bounds = array<i64: 128, 128>}, {pipeline_mode = #tpu.pipeline_mode<synchronous>, transform_indices = @transform_2, window_bounds = array<i64: 3, 384, 128>}, {pipeline_mode = #tpu.pipeline_mode<synchronous>, transform_indices = @transform_3, window_bounds = array<i64: 128, 128>}, {pipeline_mode = #tpu.pipeline_mode<synchronous>, transform_indices = @transform_4, window_bounds = array<i64: 1, 128>}, {pipeline_mode = #tpu.pipeline_mode<synchronous>, transform_indices = @transform_5, window_bounds = array<i64: 1, 128>}, {pipeline_mode = #tpu.pipeline_mode<synchronous>, transform_indices = @transform_6, window_bounds = array<i64: 1, 128>}, {transform_indices = @transform_7, window_bounds = array<i64: 1, 256, 128>}]} {
    %c0 = arith.constant 0 : index
    %c0_0 = arith.constant 0 : index
    %c0_1 = arith.constant 0 : index
    %0 = vector.load %arg1[%c0, %c0_0, %c0_1] : memref<1x256x128xbf16, #tpu.memory_space<vmem>>, vector<1x256x128xbf16>
    %1 = vector.shape_cast %0 : vector<1x256x128xbf16> to vector<256x128xbf16>
    %c0_2 = arith.constant 0 : index
    %c0_3 = arith.constant 0 : index
    %2 = vector.load %arg2[%c0_2, %c0_3] : memref<128x128xbf16, #tpu.memory_space<vmem>>, vector<128x128xbf16>
    %cst = arith.constant dense<0.000000e+00> : vector<256x128xf32>
    %3 = tpu.matmul %1, %2, %cst {dimension_numbers = #tpu.dot_dimension_numbers<[1], [0], [0], [1], [0, 0, 1, 1], [], []>} : vector<256x128xbf16>, vector<128x128xbf16>, vector<256x128xf32> -> vector<256x128xf32>
    %c0_4 = arith.constant 0 : index
    %c0_5 = arith.constant 0 : index
    %4 = vector.load %arg5[%c0_4, %c0_5] : memref<1x128xf32, #tpu.memory_space<vmem>>, vector<1x128xf32>
    %5 = vector.broadcast %4 : vector<1x128xf32> to vector<256x128xf32>
    %6 = arith.addf %3, %5 : vector<256x128xf32>
    %cst_6 = arith.constant 0.000000e+00 : f32
    %7 = vector.broadcast %cst_6 : f32 to vector<256x128xf32>
    %8 = arith.maximumf %6, %7 : vector<256x128xf32>
    %9 = arith.truncf %8 : vector<256x128xf32> to vector<256x128xbf16>
    %10 = tpu.iota {dimensions = array<i32: 0>} : vector<256x1xi32>
    %c16_i32 = arith.constant 16 : i32
    %c0_i32 = arith.constant 0 : i32
    %11 = arith.cmpi eq, %c16_i32, %c0_i32 : i32
    %c1_i32 = arith.constant 1 : i32
    %12 = arith.select %11, %c1_i32, %c16_i32 : i32
    %13 = vector.broadcast %12 : i32 to vector<256x1xi32>
    %14 = arith.remsi %10, %13 : vector<256x1xi32>
    %c0_i32_7 = arith.constant 0 : i32
    %15 = vector.broadcast %c0_i32_7 : i32 to vector<256x1xi32>
    %16 = arith.cmpi ne, %14, %15 : vector<256x1xi32>
    %c0_i32_8 = arith.constant 0 : i32
    %17 = vector.broadcast %c0_i32_8 : i32 to vector<256x1xi32>
    %18 = arith.cmpi slt, %14, %17 : vector<256x1xi32>
    %c0_i32_9 = arith.constant 0 : i32
    %19 = arith.cmpi slt, %12, %c0_i32_9 : i32
    %20 = vector.broadcast %19 : i1 to vector<256x1xi1>
    %21 = vector.broadcast %20 : vector<256x1xi1> to vector<256x1xi1>
    %22 = arith.xori %18, %21 : vector<256x1xi1>
    %23 = arith.andi %22, %16 : vector<256x1xi1>
    %24 = vector.broadcast %12 : i32 to vector<256x1xi32>
    %25 = arith.addi %14, %24 : vector<256x1xi32>
    %26 = arith.select %23, %25, %14 : vector<256x1xi1>, vector<256x1xi32>
    %cst_10 = arith.constant 0.000000e+00 : bf16
    %27 = vector.broadcast %cst_10 : bf16 to vector<16x384xbf16>
    %cst_11 = arith.constant 0.000000e+00 : bf16
    %28 = vector.broadcast %cst_11 : bf16 to vector<1x128xbf16>
    %c0_12 = arith.constant 0 : index
    %c0_13 = arith.constant 0 : index
    %29 = vector.load %arg9[%c0_12, %c0_13] : memref<288x384xbf16, #tpu.memory_space<vmem>>, vector<16x384xbf16>
    tpu.vector_store %arg9[%c0_12, %c0_13], %27 {strides = array<i32>} : memref<288x384xbf16, #tpu.memory_space<vmem>>, vector<16x384xbf16>,
    %c272 = arith.constant 272 : index
    %c0_14 = arith.constant 0 : index
    %30 = vector.load %arg9[%c272, %c0_14] : memref<288x384xbf16, #tpu.memory_space<vmem>>, vector<16x384xbf16>
    tpu.vector_store %arg9[%c272, %c0_14], %27 {strides = array<i32>} : memref<288x384xbf16, #tpu.memory_space<vmem>>, vector<16x384xbf16>,
    %c16 = arith.constant 16 : index
    %c128 = arith.constant 128 : index
    %31 = vector.load %arg9[%c16, %c128] : memref<288x384xbf16, #tpu.memory_space<vmem>>, vector<256x128xbf16>
    tpu.vector_store %arg9[%c16, %c128], %9 {strides = array<i32>} : memref<288x384xbf16, #tpu.memory_space<vmem>>, vector<256x128xbf16>,
    %c16_15 = arith.constant 16 : index
    %c0_16 = arith.constant 0 : index
    %32 = vector.load %arg9[%c16_15, %c0_16] : memref<288x384xbf16, #tpu.memory_space<vmem>>, vector<1x128xbf16>
    tpu.vector_store %arg9[%c16_15, %c0_16], %28 {strides = array<i32>} : memref<288x384xbf16, #tpu.memory_space<vmem>>, vector<1x128xbf16>,
    %33 = vector.extract_strided_slice %26 {offsets = [1, 0], sizes = [255, 1], strides = [1, 1]} : vector<256x1xi32> to vector<255x1xi32>
    %c1_i32_17 = arith.constant 1 : i32
    %34 = vector.broadcast %c1_i32_17 : i32 to vector<255x1xi32>
    %35 = arith.cmpi sge, %33, %34 : vector<255x1xi32>
    %36 = vector.extract_strided_slice %9 {offsets = [0, 0], sizes = [255, 128], strides = [1, 1]} : vector<256x128xbf16> to vector<255x128xbf16>
    %c0_i32_18 = arith.constant 0 : i32
    %37 = arith.sitofp %c0_i32_18 : i32 to bf16
    %38 = vector.shape_cast %35 : vector<255x1xi1> to vector<255x1xi1>
    %39 = vector.broadcast %38 : vector<255x1xi1> to vector<255x128xi1>
    %40 = vector.broadcast %37 : bf16 to vector<255x128xbf16>
    %41 = arith.select %39, %36, %40 : vector<255x128xi1>, vector<255x128xbf16>
    %c17 = arith.constant 17 : index
    %c0_19 = arith.constant 0 : index
    %42 = vector.load %arg9[%c17, %c0_19] : memref<288x384xbf16, #tpu.memory_space<vmem>>, vector<255x128xbf16>
    tpu.vector_store %arg9[%c17, %c0_19], %41 {strides = array<i32>} : memref<288x384xbf16, #tpu.memory_space<vmem>>, vector<255x128xbf16>,
    %43 = vector.extract_strided_slice %26 {offsets = [0, 0], sizes = [255, 1], strides = [1, 1]} : vector<256x1xi32> to vector<255x1xi32>
    %c14_i32 = arith.constant 14 : i32
    %44 = vector.broadcast %c14_i32 : i32 to vector<255x1xi32>
    %45 = arith.cmpi sle, %43, %44 : vector<255x1xi32>
    %46 = vector.extract_strided_slice %9 {offsets = [1, 0], sizes = [255, 128], strides = [1, 1]} : vector<256x128xbf16> to vector<255x128xbf16>
    %c0_i32_20 = arith.constant 0 : i32
    %47 = arith.sitofp %c0_i32_20 : i32 to bf16
    %48 = vector.shape_cast %45 : vector<255x1xi1> to vector<255x1xi1>
    %49 = vector.broadcast %48 : vector<255x1xi1> to vector<255x128xi1>
    %50 = vector.broadcast %47 : bf16 to vector<255x128xbf16>
    %51 = arith.select %49, %46, %50 : vector<255x128xi1>, vector<255x128xbf16>
    %c16_21 = arith.constant 16 : index
    %c256 = arith.constant 256 : index
    %52 = vector.load %arg9[%c16_21, %c256] : memref<288x384xbf16, #tpu.memory_space<vmem>>, vector<255x128xbf16>
    tpu.vector_store %arg9[%c16_21, %c256], %51 {strides = array<i32>} : memref<288x384xbf16, #tpu.memory_space<vmem>>, vector<255x128xbf16>,
    %c271 = arith.constant 271 : index
    %c256_22 = arith.constant 256 : index
    %53 = vector.load %arg9[%c271, %c256_22] : memref<288x384xbf16, #tpu.memory_space<vmem>>, vector<1x128xbf16>
    tpu.vector_store %arg9[%c271, %c256_22], %28 {strides = array<i32>} : memref<288x384xbf16, #tpu.memory_space<vmem>>, vector<1x128xbf16>,
    %c0_23 = arith.constant 0 : index
    %c0_24 = arith.constant 0 : index
    %54 = vector.load %arg9[%c0_23, %c0_24] : memref<288x384xbf16, #tpu.memory_space<vmem>>, vector<256x384xbf16>
    %c0_25 = arith.constant 0 : index
    %c0_26 = arith.constant 0 : index
    %c0_27 = arith.constant 0 : index
    %55 = vector.load %arg3[%c0_25, %c0_26, %c0_27] : memref<3x384x128xbf16, #tpu.memory_space<vmem>>, vector<1x384x128xbf16>
    %56 = vector.shape_cast %55 : vector<1x384x128xbf16> to vector<384x128xbf16>
    %cst_28 = arith.constant dense<0.000000e+00> : vector<256x128xf32>
    %57 = tpu.matmul %54, %56, %cst_28 {dimension_numbers = #tpu.dot_dimension_numbers<[1], [0], [0], [1], [0, 0, 1, 1], [], []>} : vector<256x384xbf16>, vector<384x128xbf16>, vector<256x128xf32> -> vector<256x128xf32>
    %c16_29 = arith.constant 16 : index
    %c0_30 = arith.constant 0 : index
    %58 = vector.load %arg9[%c16_29, %c0_30] : memref<288x384xbf16, #tpu.memory_space<vmem>>, vector<256x384xbf16>
    %c1 = arith.constant 1 : index
    %c0_31 = arith.constant 0 : index
    %c0_32 = arith.constant 0 : index
    %59 = vector.load %arg3[%c1, %c0_31, %c0_32] : memref<3x384x128xbf16, #tpu.memory_space<vmem>>, vector<1x384x128xbf16>
    %60 = vector.shape_cast %59 : vector<1x384x128xbf16> to vector<384x128xbf16>
    %cst_33 = arith.constant dense<0.000000e+00> : vector<256x128xf32>
    %61 = tpu.matmul %58, %60, %cst_33 {dimension_numbers = #tpu.dot_dimension_numbers<[1], [0], [0], [1], [0, 0, 1, 1], [], []>} : vector<256x384xbf16>, vector<384x128xbf16>, vector<256x128xf32> -> vector<256x128xf32>
    %62 = arith.addf %57, %61 : vector<256x128xf32>
    %c32 = arith.constant 32 : index
    %c0_34 = arith.constant 0 : index
    %63 = vector.load %arg9[%c32, %c0_34] : memref<288x384xbf16, #tpu.memory_space<vmem>>, vector<256x384xbf16>
    %c2 = arith.constant 2 : index
    %c0_35 = arith.constant 0 : index
    %c0_36 = arith.constant 0 : index
    %64 = vector.load %arg3[%c2, %c0_35, %c0_36] : memref<3x384x128xbf16, #tpu.memory_space<vmem>>, vector<1x384x128xbf16>
    %65 = vector.shape_cast %64 : vector<1x384x128xbf16> to vector<384x128xbf16>
    %cst_37 = arith.constant dense<0.000000e+00> : vector<256x128xf32>
    %66 = tpu.matmul %63, %65, %cst_37 {dimension_numbers = #tpu.dot_dimension_numbers<[1], [0], [0], [1], [0, 0, 1, 1], [], []>} : vector<256x384xbf16>, vector<384x128xbf16>, vector<256x128xf32> -> vector<256x128xf32>
    %67 = arith.addf %62, %66 : vector<256x128xf32>
    %c0_38 = arith.constant 0 : index
    %c0_39 = arith.constant 0 : index
    %68 = vector.load %arg6[%c0_38, %c0_39] : memref<1x128xf32, #tpu.memory_space<vmem>>, vector<1x128xf32>
    %69 = vector.broadcast %68 : vector<1x128xf32> to vector<256x128xf32>
    %70 = arith.addf %67, %69 : vector<256x128xf32>
    %cst_40 = arith.constant 0.000000e+00 : f32
    %71 = vector.broadcast %cst_40 : f32 to vector<256x128xf32>
    %72 = arith.maximumf %70, %71 : vector<256x128xf32>
    %73 = arith.truncf %72 : vector<256x128xf32> to vector<256x128xbf16>
    %c0_41 = arith.constant 0 : index
    %c0_42 = arith.constant 0 : index
    %74 = vector.load %arg4[%c0_41, %c0_42] : memref<128x128xbf16, #tpu.memory_space<vmem>>, vector<128x128xbf16>
    %cst_43 = arith.constant dense<0.000000e+00> : vector<256x128xf32>
    %75 = tpu.matmul %73, %74, %cst_43 {dimension_numbers = #tpu.dot_dimension_numbers<[1], [0], [0], [1], [0, 0, 1, 1], [], []>} : vector<256x128xbf16>, vector<128x128xbf16>, vector<256x128xf32> -> vector<256x128xf32>
    %c0_44 = arith.constant 0 : index
    %c0_45 = arith.constant 0 : index
    %76 = vector.load %arg7[%c0_44, %c0_45] : memref<1x128xf32, #tpu.memory_space<vmem>>, vector<1x128xf32>
    %77 = vector.broadcast %76 : vector<1x128xf32> to vector<256x128xf32>
    %78 = arith.addf %75, %77 : vector<256x128xf32>
    %79 = arith.extf %1 : vector<256x128xbf16> to vector<256x128xf32>
    %80 = arith.addf %78, %79 : vector<256x128xf32>
    %cst_46 = arith.constant 0.000000e+00 : f32
    %81 = vector.broadcast %cst_46 : f32 to vector<256x128xf32>
    %82 = arith.maximumf %80, %81 : vector<256x128xf32>
    %83 = arith.truncf %82 : vector<256x128xf32> to vector<256x128xbf16>
    %c0_47 = arith.constant 0 : index
    %c0_48 = arith.constant 0 : index
    %c0_49 = arith.constant 0 : index
    %84 = vector.load %arg8[%c0_47, %c0_48, %c0_49] : memref<1x256x128xbf16, #tpu.memory_space<vmem>>, vector<1x256x128xbf16>
    %85 = vector.shape_cast %84 : vector<1x256x128xbf16> to vector<256x128xbf16>
    %86 = vector.shape_cast %83 : vector<256x128xbf16> to vector<1x256x128xbf16>
    tpu.vector_store %arg8[%c0_47, %c0_48, %c0_49], %86 {strides = array<i32>} : memref<1x256x128xbf16, #tpu.memory_space<vmem>>, vector<1x256x128xbf16>,
    return
  }
  func.func @transform_0(%arg0: i32) -> (i32, i32, i32) {
    %c0_i32 = arith.constant 0 : i32
    %c0_i32_0 = arith.constant 0 : i32
    %c0_i32_1 = arith.constant 0 : i32
    return %arg0, %c0_i32, %c0_i32_0 : i32, i32, i32
  }
  func.func @transform_1(%arg0: i32) -> (i32, i32) {
    %c0_i32 = arith.constant 0 : i32
    %c0_i32_0 = arith.constant 0 : i32
    %c0_i32_1 = arith.constant 0 : i32
    return %c0_i32, %c0_i32_0 : i32, i32
  }
  func.func @transform_2(%arg0: i32) -> (i32, i32, i32) {
    %c0_i32 = arith.constant 0 : i32
    %c0_i32_0 = arith.constant 0 : i32
    %c0_i32_1 = arith.constant 0 : i32
    %c0_i32_2 = arith.constant 0 : i32
    return %c0_i32, %c0_i32_0, %c0_i32_1 : i32, i32, i32
  }
  func.func @transform_3(%arg0: i32) -> (i32, i32) {
    %c0_i32 = arith.constant 0 : i32
    %c0_i32_0 = arith.constant 0 : i32
    %c0_i32_1 = arith.constant 0 : i32
    return %c0_i32, %c0_i32_0 : i32, i32
  }
  func.func @transform_4(%arg0: i32) -> (i32, i32) {
    %c0_i32 = arith.constant 0 : i32
    %c0_i32_0 = arith.constant 0 : i32
    %c0_i32_1 = arith.constant 0 : i32
    return %c0_i32, %c0_i32_0 : i32, i32
  }
  func.func @transform_5(%arg0: i32) -> (i32, i32) {
    %c0_i32 = arith.constant 0 : i32
    %c0_i32_0 = arith.constant 0 : i32
    %c0_i32_1 = arith.constant 0 : i32
    return %c0_i32, %c0_i32_0 : i32, i32
  }
  func.func @transform_6(%arg0: i32) -> (i32, i32) {
    %c0_i32 = arith.constant 0 : i32
    %c0_i32_0 = arith.constant 0 : i32
    %c0_i32_1 = arith.constant 0 : i32
    return %c0_i32, %c0_i32_0 : i32, i32
  }
  func.func @transform_7(%arg0: i32) -> (i32, i32, i32) {
    %c0_i32 = arith.constant 0 : i32
    %c0_i32_0 = arith.constant 0 : i32
    %c0_i32_1 = arith.constant 0 : i32
    return %arg0, %c0_i32, %c0_i32_0 : i32, i32, i32
  }
}

</mosaic_0001>

<llo_original>
// kernel: tpu_custom_call.1
$region0: #{tpu_custom_call.1}
  #allocation0 [shape = 'u32[]', space=smem, size = 0x4, offset = 0x4, fixed_abs, tag = 'smem constant byte address 0x4 - core index']
  #allocation1 [shape = 'u32[144,128]{1,0:T(1,128)}', space=vmem, size = 0x12000, scoped, tag = 'internal scratch']
  #allocation2 [shape = 'bf16[288,384]{1,0:T(16,128)(2,1)}', space=vmem, size = 0x36000, scoped, tag = 'scratch operand']
  %s0 = inlined_call_operand.hbm [shape: bf16[2,256,128], index: 0, kind: input, shape index: {}]
  %s1 = inlined_call_operand.hbm [shape: bf16[128,128], index: 1, kind: input, shape index: {}]
  %s2 = inlined_call_operand.hbm [shape: bf16[3,384,128], index: 2, kind: input, shape index: {}]
  %s3 = inlined_call_operand.hbm [shape: bf16[128,128], index: 3, kind: input, shape index: {}]
  %s4 = inlined_call_operand.vmem [shape: f32[1,128], index: 4, kind: input, shape index: {}]
  %s5 = inlined_call_operand.vmem [shape: f32[1,128], index: 5, kind: input, shape index: {}]
  %s6 = inlined_call_operand.vmem [shape: f32[1,128], index: 6, kind: input, shape index: {}]
  %s7 = inlined_call_operand.hbm [shape: bf16[2,256,128], index: 7, kind: output, shape index: {}]
  %s8 = sld [smem:[#allocation0]]
  $region77: #{tpu_custom_call.1} parent=0
    _
  %s10 = ssub.s32 1, %s8
  %s11 = scalar_select 0, %s10, %s8
  $region1: #{tpu_custom_call.1} parent=0
    #allocation3 [shape = 'u8[131072]{0}', space=vmem, size = 0x20000, scoped, tag = 'input window, operand 0']
    #allocation4 [shape = 's32[2]{0}', space=sflag, size = 0x8, scoped, tag = 'scoped memory for tpu_custom_call.1']
    #allocation5 [shape = 's32[2]{0}', space=sflag, size = 0x8, scoped, tag = 'scoped memory for tpu_custom_call.1']
    #allocation6 [shape = 'u8[32768]{0}', space=vmem, size = 0x8000, scoped, tag = 'input window, operand 1, single buffered']
    #allocation7 [shape = 's32[1]{0}', space=sflag, size = 0x4, scoped, tag = 'scoped memory for tpu_custom_call.1']
    #allocation8 [shape = 'u8[294912]{0}', space=vmem, size = 0x48000, scoped, tag = 'input window, operand 2, single buffered']
    #allocation9 [shape = 'u8[32768]{0}', space=vmem, size = 0x8000, scoped, tag = 'input window, operand 3, single buffered']
    #allocation10 [shape = 's32[1]{0}', space=sflag, size = 0x4, scoped, tag = 'scoped memory for tpu_custom_call.1']
    #allocation11 [shape = 'u8[131072]{0}', space=vmem, size = 0x20000, scoped, tag = 'output window, operand 0']
    %12 = vsyncpa [#allocation4], 0
    %s13 = scalar_lea.sflag [#allocation4], 1
    %14 = vsyncpa %s13, 0
    %15 = vsyncpa [#allocation7], 0
    %16 = vsyncpa [#allocation10], 0
    %17 = vsyncpa [#allocation5], 0
    %s18 = scalar_lea.sflag [#allocation5], 1
    %19 = vsyncpa %s18, 0
    loop: start=0, step=1, limit=4
    $region2: #{tpu_custom_call.1} parent=1 // loop_pre_header
      _
    $region3: #{tpu_custom_call.1} parent=1 // loop_header
      %s21 = sphi 0, %s25
      %p22 = scmp.ge.s32.totalorder %s21, 4
      %s31 = sphi 0, %s33
      %s34 = sphi 0, %s31
      %s35 = sphi 0, %s34
      %s51 = sphi 0, %s35
      %s55 = sphi 0, %s55
      %s57 = sphi 0, %s55
      %s58 = sphi 0, %s57
      %s72 = sphi 0, %s58
      %s76 = sphi 0, %s76
      %s78 = sphi 0, %s76
      %s79 = sphi 0, %s78
      %s93 = sphi 0, %s79
      %s97 = sphi 0, %s97
      %s99 = sphi 0, %s97
      %s100 = sphi 0, %s99
      %s114 = sphi 0, %s100
      %s118 = sphi 0, %s118
      %s120 = sphi 0, %s118
      %s121 = sphi 0, %s120
      %s135 = sphi 0, %s121
      %s139 = sphi 0, %s139
      %s141 = sphi 0, %s139
      %s142 = sphi 0, %s141
      %s156 = sphi 0, %s142
      %s160 = sphi 0, %s160
      %s162 = sphi 0, %s160
      %s163 = sphi 0, %s162
      %s177 = sphi 0, %s163
      %s183 = sphi 0, %s185
      %s186 = sphi 0, %s183
      %s187 = sphi 0, %s186
      %s203 = sphi 0, %s187
    $region4: #{tpu_custom_call.1} parent=1 // loop_header_branch
      %24 = sbr.rel (%p22) target = $region8
    $region5: #{tpu_custom_call.1} parent=1 // loop_body
      %s26 = ssub.s32 %s21, 1
      %s27 = ssub.s32 %s21, 2
      %s28 = sadd.s32 %s21, 1
      %s29 = ssub.s32 %s21, %s28
      %p30 = scmp.eq.s32.totalorder %s29, 0
      %s32 = sadd.s32 %s31, 1
      %s33 = scalar_select %p30, %s31, %s32
      %p36 = pneg %p30
      %p37 = scmp.eq.s32.totalorder %s21, 1
      %p38 = por %p36, %p37
      %p39 = scmp.ne.s32.totalorder %s31, %s34
      %p40 = scmp.eq.s32.totalorder %s21, 0
      %p41 = por %p39, %p40
      %p42 = scmp.ne.s32.totalorder %s31, %s34
      %p43 = scmp.eq.s32.totalorder %s26, 1
      %p44 = por %p42, %p43
      %p45 = scmp.ne.s32.totalorder %s34, %s35
      %p46 = scmp.eq.s32.totalorder %s26, 0
      %p47 = por %p45, %p46
      %p48 = scmp.ne.s32.totalorder %s34, %s35
      %p49 = scmp.eq.s32.totalorder %s27, 1
      %p50 = por %p48, %p49
      %p52 = scmp.ne.s32.totalorder %s35, %s51
      %p53 = scmp.eq.s32.totalorder %s27, 0
      %p54 = por %p52, %p53
      %s56 = sadd.s32 %s55, 1
      %p59 = scmp.eq.s32.totalorder %s21, 1
      %p60 = scmp.ne.s32.totalorder %s55, %s57
      %p61 = scmp.eq.s32.totalorder %s21, 0
      %p62 = por %p60, %p61
      %p63 = scmp.ne.s32.totalorder %s55, %s57
      %p64 = scmp.eq.s32.totalorder %s26, 1
      %p65 = por %p63, %p64
      %p66 = scmp.ne.s32.totalorder %s57, %s58
      %p67 = scmp.eq.s32.totalorder %s26, 0
      %p68 = por %p66, %p67
      %p69 = scmp.ne.s32.totalorder %s57, %s58
      %p70 = scmp.eq.s32.totalorder %s27, 1
      %p71 = por %p69, %p70
      %p73 = scmp.ne.s32.totalorder %s58, %s72
      %p74 = scmp.eq.s32.totalorder %s27, 0
      %p75 = por %p73, %p74
      %s77 = sadd.s32 %s76, 1
      %p80 = scmp.eq.s32.totalorder %s21, 1
      %p81 = scmp.ne.s32.totalorder %s76, %s78
      %p82 = scmp.eq.s32.totalorder %s21, 0
      %p83 = por %p81, %p82
      %p84 = scmp.ne.s32.totalorder %s76, %s78
      %p85 = scmp.eq.s32.totalorder %s26, 1
      %p86 = por %p84, %p85
      %p87 = scmp.ne.s32.totalorder %s78, %s79
      %p88 = scmp.eq.s32.totalorder %s26, 0
      %p89 = por %p87, %p88
      %p90 = scmp.ne.s32.totalorder %s78, %s79
      %p91 = scmp.eq.s32.totalorder %s27, 1
      %p92 = por %p90, %p91
      %p94 = scmp.ne.s32.totalorder %s79, %s93
      %p95 = scmp.eq.s32.totalorder %s27, 0
      %p96 = por %p94, %p95
      %s98 = sadd.s32 %s97, 1
      %p101 = scmp.eq.s32.totalorder %s21, 1
      %p102 = scmp.ne.s32.totalorder %s97, %s99
      %p103 = scmp.eq.s32.totalorder %s21, 0
      %p104 = por %p102, %p103
      %p105 = scmp.ne.s32.totalorder %s97, %s99
      %p106 = scmp.eq.s32.totalorder %s26, 1
      %p107 = por %p105, %p106
      %p108 = scmp.ne.s32.totalorder %s99, %s100
      %p109 = scmp.eq.s32.totalorder %s26, 0
      %p110 = por %p108, %p109
      %p111 = scmp.ne.s32.totalorder %s99, %s100
      %p112 = scmp.eq.s32.totalorder %s27, 1
      %p113 = por %p111, %p112
      %p115 = scmp.ne.s32.totalorder %s100, %s114
      %p116 = scmp.eq.s32.totalorder %s27, 0
      %p117 = por %p115, %p116
      %s119 = sadd.s32 %s118, 1
      %p122 = scmp.eq.s32.totalorder %s21, 1
      %p123 = scmp.ne.s32.totalorder %s118, %s120
      %p124 = scmp.eq.s32.totalorder %s21, 0
      %p125 = por %p123, %p124
      %p126 = scmp.ne.s32.totalorder %s118, %s120
      %p127 = scmp.eq.s32.totalorder %s26, 1
      %p128 = por %p126, %p127
      %p129 = scmp.ne.s32.totalorder %s120, %s121
      %p130 = scmp.eq.s32.totalorder %s26, 0
      %p131 = por %p129, %p130
      %p132 = scmp.ne.s32.totalorder %s120, %s121
      %p133 = scmp.eq.s32.totalorder %s27, 1
      %p134 = por %p132, %p133
      %p136 = scmp.ne.s32.totalorder %s121, %s135
      %p137 = scmp.eq.s32.totalorder %s27, 0
      %p138 = por %p136, %p137
      %s140 = sadd.s32 %s139, 1
      %p143 = scmp.eq.s32.totalorder %s21, 1
      %p144 = scmp.ne.s32.totalorder %s139, %s141
      %p145 = scmp.eq.s32.totalorder %s21, 0
      %p146 = por %p144, %p145
      %p147 = scmp.ne.s32.totalorder %s139, %s141
      %p148 = scmp.eq.s32.totalorder %s26, 1
      %p149 = por %p147, %p148
      %p150 = scmp.ne.s32.totalorder %s141, %s142
      %p151 = scmp.eq.s32.totalorder %s26, 0
      %p152 = por %p150, %p151
      %p153 = scmp.ne.s32.totalorder %s141, %s142
      %p154 = scmp.eq.s32.totalorder %s27, 1
      %p155 = por %p153, %p154
      %p157 = scmp.ne.s32.totalorder %s142, %s156
      %p158 = scmp.eq.s32.totalorder %s27, 0
      %p159 = por %p157, %p158
      %s161 = sadd.s32 %s160, 1
      %p164 = scmp.eq.s32.totalorder %s21, 1
      %p165 = scmp.ne.s32.totalorder %s160, %s162
      %p166 = scmp.eq.s32.totalorder %s21, 0
      %p167 = por %p165, %p166
      %p168 = scmp.ne.s32.totalorder %s160, %s162
      %p169 = scmp.eq.s32.totalorder %s26, 1
      %p170 = por %p168, %p169
      %p171 = scmp.ne.s32.totalorder %s162, %s163
      %p172 = scmp.eq.s32.totalorder %s26, 0
      %p173 = por %p171, %p172
      %p174 = scmp.ne.s32.totalorder %s162, %s163
      %p175 = scmp.eq.s32.totalorder %s27, 1
      %p176 = por %p174, %p175
      %p178 = scmp.ne.s32.totalorder %s163, %s177
      %p179 = scmp.eq.s32.totalorder %s27, 0
      %p180 = por %p178, %p179
      %s181 = ssub.s32 %s21, %s28
      %p182 = scmp.eq.s32.totalorder %s181, 0
      %s184 = sadd.s32 %s183, 1
      %s185 = scalar_select %p182, %s183, %s184
      %p188 = pneg %p182
      %p189 = scmp.eq.s32.totalorder %s21, 1
      %p190 = por %p188, %p189
      %p191 = scmp.ne.s32.totalorder %s183, %s186
      %p192 = scmp.eq.s32.totalorder %s21, 0
      %p193 = por %p191, %p192
      %p194 = scmp.ne.s32.totalorder %s183, %s186
      %p195 = scmp.eq.s32.totalorder %s26, 1
      %p196 = por %p194, %p195
      %p197 = scmp.ne.s32.totalorder %s186, %s187
      %p198 = scmp.eq.s32.totalorder %s26, 0
      %p199 = por %p197, %p198
      %p200 = scmp.ne.s32.totalorder %s186, %s187
      %p201 = scmp.eq.s32.totalorder %s27, 1
      %p202 = por %p200, %p201
      %p204 = scmp.ne.s32.totalorder %s187, %s203
      %p205 = scmp.eq.s32.totalorder %s27, 0
      %p206 = por %p204, %p205
      %p207 = scmp.le.s32.totalorder 1, %s21
      %p208 = scmp.lt.s32.totalorder %s21, 3
      %p209 = pnand %p207, %p208
      %p210 = pneg %p209
      // Predicated region
      $region9: #{tpu_custom_call.1} parent=5 // pred_check
        _
      $region10: #{tpu_custom_call.1} parent=5 // pred_check_branch
        %212 = sbr.rel (%p209) target = $region12
      $region11: #{tpu_custom_call.1} parent=5 // pred_region
        %s213 = ssub.s32 %s21, 1
        // Predicated region
        $region13: #{tpu_custom_call.1} parent=11 // pred_check
          %p214 = pneg %p68
        $region14: #{tpu_custom_call.1} parent=11 // pred_check_branch
          %216 = sbr.rel (%p214) target = $region16
        $region15: #{tpu_custom_call.1} parent=11 // pred_region
          %s218 = ssub.s32 1024, 1024
          %219 = vsyncadd [#allocation7], %s218
          %s220 = sshll.u32 [#allocation6], 4
          %s221 = int_to_ptr.vmem [resolvable:$true] %s220
          %226 = dma.hbm_to_vmem [thread:$0]  %s1, 1024, %s221, [#allocation7], 64, 64, 4
        $region16: #{tpu_custom_call.1} parent=11 // pred_fallthru
          _
        // Predicated region
        $region17: #{tpu_custom_call.1} parent=11 // pred_check
          %p227 = pneg %p89
        $region18: #{tpu_custom_call.1} parent=11 // pred_check_branch
          %229 = sbr.rel (%p227) target = $region20
        $region19: #{tpu_custom_call.1} parent=11 // pred_region
          %s231 = ssub.s32 9216, 9216
          %232 = vsyncadd [#allocation7], %s231
          %s233 = sshll.u32 [#allocation8], 4
          %s234 = int_to_ptr.vmem [resolvable:$true] %s233
          %239 = dma.hbm_to_vmem [thread:$0]  %s2, 9216, %s234, [#allocation7], 64, 64, 4
        $region20: #{tpu_custom_call.1} parent=11 // pred_fallthru
          _
        // Predicated region
        $region21: #{tpu_custom_call.1} parent=11 // pred_check
          %p240 = pneg %p110
        $region22: #{tpu_custom_call.1} parent=11 // pred_check_branch
          %242 = sbr.rel (%p240) target = $region24
        $region23: #{tpu_custom_call.1} parent=11 // pred_region
          %s244 = ssub.s32 1024, 1024
          %245 = vsyncadd [#allocation10], %s244
          %s246 = sshll.u32 [#allocation9], 4
          %s247 = int_to_ptr.vmem [resolvable:$true] %s246
          %252 = dma.hbm_to_vmem [thread:$0]  %s3, 1024, %s247, [#allocation10], 64, 64, 4
        $region24: #{tpu_custom_call.1} parent=11 // pred_fallthru
          _
        // Predicated region
        $region25: #{tpu_custom_call.1} parent=11 // pred_check
          %p253 = pneg %p131
        $region26: #{tpu_custom_call.1} parent=11 // pred_check_branch
          %255 = sbr.rel (%p253) target = $region28
        $region27: #{tpu_custom_call.1} parent=11 // pred_region
          _
        $region28: #{tpu_custom_call.1} parent=11 // pred_fallthru
          _
        // Predicated region
        $region29: #{tpu_custom_call.1} parent=11 // pred_check
          %p256 = pneg %p152
        $region30: #{tpu_custom_call.1} parent=11 // pred_check_branch
          %258 = sbr.rel (%p256) target = $region32
        $region31: #{tpu_custom_call.1} parent=11 // pred_region
          _
        $region32: #{tpu_custom_call.1} parent=11 // pred_fallthru
          _
        // Predicated region
        $region33: #{tpu_custom_call.1} parent=11 // pred_check
          %p259 = pneg %p173
        $region34: #{tpu_custom_call.1} parent=11 // pred_check_branch
          %261 = sbr.rel (%p259) target = $region36
        $region35: #{tpu_custom_call.1} parent=11 // pred_region
          _
        $region36: #{tpu_custom_call.1} parent=11 // pred_fallthru
          _
      $region12: #{tpu_custom_call.1} parent=5 // pred_fallthru
        _
      %p262 = scmp.lt.s32.totalorder %s21, 2
      // Predicated region
      $region37: #{tpu_custom_call.1} parent=5 // pred_check
        %p263 = pneg %p262
      $region38: #{tpu_custom_call.1} parent=5 // pred_check_branch
        %265 = sbr.rel (%p263) target = $region40
      $region39: #{tpu_custom_call.1} parent=5 // pred_region
        // Predicated region
        $region41: #{tpu_custom_call.1} parent=39 // pred_check
          %p266 = pneg %p41
        $region42: #{tpu_custom_call.1} parent=39 // pred_check_branch
          %268 = sbr.rel (%p266) target = $region44
        $region43: #{tpu_custom_call.1} parent=39 // pred_region
          %s269 = sand.u32 %s31, 1
          %s270 = scalar_lea.sflag [#allocation4], %s269
          %s271 = sand.u32 %s31, 1
          %s272 = smul.addr %s271, 128
          %s273 = scalar_lea.vmem [#allocation3], %s272
          %s275 = ssub.s32 2048, 2048
          %276 = vsyncadd %s270, %s275
          %s277 = smul.addr %s21, 32
          %s278 = smul.addr %s277, 64
          %s279 = scalar_lea.hbm %s0, %s278
          %s280 = sshll.u32 %s273, 4
          %s281 = int_to_ptr.vmem [resolvable:$true] %s280
          %286 = dma.hbm_to_vmem [thread:$0]  %s279, 2048, %s281, %s270, 64, 64, 4
        $region44: #{tpu_custom_call.1} parent=39 // pred_fallthru
          _
      $region40: #{tpu_custom_call.1} parent=5 // pred_fallthru
        _
      %p287 = scmp.le.s32.totalorder 1, %s21
      %p288 = scmp.lt.s32.totalorder %s21, 3
      %p289 = pnand %p287, %p288
      %p290 = pneg %p289
      // Predicated region
      $region45: #{tpu_custom_call.1} parent=5 // pred_check
        _
      $region46: #{tpu_custom_call.1} parent=5 // pred_check_branch
        %292 = sbr.rel (%p289) target = $region48
      $region47: #{tpu_custom_call.1} parent=5 // pred_region
        %s293 = ssub.s32 %s21, 1
        %s294 = sand.u32 %s34, 1
        %s295 = scalar_lea.sflag [#allocation4], %s294
        %s296 = sand.u32 %s34, 1
        %s297 = smul.addr %s296, 128
        %s298 = scalar_lea.vmem [#allocation3], %s297
        // Predicated region
        $region49: #{tpu_custom_call.1} parent=47 // pred_check
          %p299 = pneg %p47
        $region50: #{tpu_custom_call.1} parent=47 // pred_check_branch
          %301 = sbr.rel (%p299) target = $region52
        $region51: #{tpu_custom_call.1} parent=47 // pred_region
          %302 = dma.done %s295, 2048
        $region52: #{tpu_custom_call.1} parent=47 // pred_fallthru
          _
        // Predicated region
        $region53: #{tpu_custom_call.1} parent=47 // pred_check
          %p303 = pneg %p68
        $region54: #{tpu_custom_call.1} parent=47 // pred_check_branch
          %305 = sbr.rel (%p303) target = $region56
        $region55: #{tpu_custom_call.1} parent=47 // pred_region
          %306 = dma.done [#allocation7], 1024
        $region56: #{tpu_custom_call.1} parent=47 // pred_fallthru
          _
        // Predicated region
        $region57: #{tpu_custom_call.1} parent=47 // pred_check
          %p307 = pneg %p89
        $region58: #{tpu_custom_call.1} parent=47 // pred_check_branch
          %309 = sbr.rel (%p307) target = $region60
        $region59: #{tpu_custom_call.1} parent=47 // pred_region
          %310 = dma.done [#allocation7], 9216
        $region60: #{tpu_custom_call.1} parent=47 // pred_fallthru
          _
        // Predicated region
        $region61: #{tpu_custom_call.1} parent=47 // pred_check
          %p311 = pneg %p110
        $region62: #{tpu_custom_call.1} parent=47 // pred_check_branch
          %313 = sbr.rel (%p311) target = $region64
        $region63: #{tpu_custom_call.1} parent=47 // pred_region
          %314 = dma.done [#allocation10], 1024
        $region64: #{tpu_custom_call.1} parent=47 // pred_fallthru
          _
        %s315 = sand.u32 %s34, 1
        %s316 = scalar_lea.sflag [#allocation4], %s315
        %s317 = sand.u32 %s34, 1
        %s318 = smul.addr %s317, 128
        %s319 = scalar_lea.vmem [#allocation3], %s318
        %p320 = pneg %p47
        %p321 = pneg %p44
        %p322 = pneg %p68
        %p323 = pneg %p65
        %p324 = pneg %p89
        %p325 = pneg %p86
        %p326 = pneg %p110
        %p327 = pneg %p107
        %p328 = pneg %p131
        %p329 = pneg %p128
        %p330 = pneg %p152
        %p331 = pneg %p149
        %p332 = pneg %p173
        %p333 = pneg %p170
        %p334 = pneg %p199
        %p335 = pneg %p196
        %s336 = sand.u32 %s186, 1
        %s337 = scalar_lea.sflag [#allocation5], %s336
        %s338 = sand.u32 %s186, 1
        %s339 = smul.addr %s338, 128
        %s340 = scalar_lea.vmem [#allocation11], %s339
        %v344 = vld [vmem:[%s298] sm:$0xf]
        %v345 = vld [vmem:[%s298 + $0x4] sm:$0xf]
        %v346 = vld [vmem:[%s298 + $0x8] sm:$0xf]
        %v347 = vld [vmem:[%s298 + $0xc] sm:$0xf]
        %v348 = vld [vmem:[%s298 + $0x10] sm:$0xf]
        %v349 = vld [vmem:[%s298 + $0x14] sm:$0xf]
        %v350 = vld [vmem:[%s298 + $0x18] sm:$0xf]
        %v351 = vld [vmem:[%s298 + $0x1c] sm:$0xf]
        %v352 = vld [vmem:[%s298 + $0x20] sm:$0xf]
        %v353 = vld [vmem:[%s298 + $0x24] sm:$0xf]
        %v354 = vld [vmem:[%s298 + $0x28] sm:$0xf]
        %v355 = vld [vmem:[%s298 + $0x2c] sm:$0xf]
        %v356 = vld [vmem:[%s298 + $0x30] sm:$0xf]
        %v357 = vld [vmem:[%s298 + $0x34] sm:$0xf]
        %v358 = vld [vmem:[%s298 + $0x38] sm:$0xf]
        %v359 = vld [vmem:[%s298 + $0x3c] sm:$0xf]
        %v360 = vld [vmem:[%s298 + $0x40] sm:$0xf]
        %v361 = vld [vmem:[%s298 + $0x44] sm:$0xf]
        %v362 = vld [vmem:[%s298 + $0x48] sm:$0xf]
        %v363 = vld [vmem:[%s298 + $0x4c] sm:$0xf]
        %v364 = vld [vmem:[%s298 + $0x50] sm:$0xf]
        %v365 = vld [vmem:[%s298 + $0x54] sm:$0xf]
        %v366 = vld [vmem:[%s298 + $0x58] sm:$0xf]
        %v367 = vld [vmem:[%s298 + $0x5c] sm:$0xf]
        %v368 = vld [vmem:[%s298 + $0x60] sm:$0xf]
        %v369 = vld [vmem:[%s298 + $0x64] sm:$0xf]
        %v370 = vld [vmem:[%s298 + $0x68] sm:$0xf]
        %v371 = vld [vmem:[%s298 + $0x6c] sm:$0xf]
        %v372 = vld [vmem:[%s298 + $0x70] sm:$0xf]
        %v373 = vld [vmem:[%s298 + $0x74] sm:$0xf]
        %v374 = vld [vmem:[%s298 + $0x78] sm:$0xf]
        %v375 = vld [vmem:[%s298 + $0x7c] sm:$0xf]
        %v376 = vld [vmem:[#allocation6] sm:$0xf]
        %v377 = vld [vmem:[#allocation6 + $0x4] sm:$0xf]
        %v378 = vld [vmem:[#allocation6 + $0x8] sm:$0xf]
        %v379 = vld [vmem:[#allocation6 + $0xc] sm:$0xf]
        %v380 = vld [vmem:[#allocation6 + $0x10] sm:$0xf]
        %v381 = vld [vmem:[#allocation6 + $0x14] sm:$0xf]
        %v382 = vld [vmem:[#allocation6 + $0x18] sm:$0xf]
        %v383 = vld [vmem:[#allocation6 + $0x1c] sm:$0xf]
        %v384 = vld [vmem:[#allocation6 + $0x20] sm:$0xf]
        %v385 = vld [vmem:[#allocation6 + $0x24] sm:$0xf]
        %v386 = vld [vmem:[#allocation6 + $0x28] sm:$0xf]
        %v387 = vld [vmem:[#allocation6 + $0x2c] sm:$0xf]
        %v388 = vld [vmem:[#allocation6 + $0x30] sm:$0xf]
        %v389 = vld [vmem:[#allocation6 + $0x34] sm:$0xf]
        %v390 = vld [vmem:[#allocation6 + $0x38] sm:$0xf]
        %v391 = vld [vmem:[#allocation6 + $0x3c] sm:$0xf]
        %v392 = vld [vmem:[%s4] sm:$0x1]
        %v394 = vlaneseq
        %v395 = vshrl.u32 %v394, 7
        %v396 = vsub.s32 0, %v395
        %v397 = vrot.slane %v392, %v396
        %v431 = vunpack.c.l.b16 %v344
        %v432 = vunpack.c.l.b16 %v345
        %v433 = vunpack.c.l.b16 %v346
        %v434 = vunpack.c.l.b16 %v347
        %v435 = vunpack.c.l.b16 %v348
        %v436 = vunpack.c.l.b16 %v349
        %v437 = vunpack.c.l.b16 %v350
        %v438 = vunpack.c.l.b16 %v351
        %v439 = vunpack.c.l.b16 %v352
        %v440 = vunpack.c.l.b16 %v353
        %v441 = vunpack.c.l.b16 %v354
        %v442 = vunpack.c.l.b16 %v355
        %v443 = vunpack.c.l.b16 %v356
        %v444 = vunpack.c.l.b16 %v357
        %v445 = vunpack.c.l.b16 %v358
        %v446 = vunpack.c.l.b16 %v359
        %v447 = vunpack.c.l.b16 %v360
        %v448 = vunpack.c.l.b16 %v361
        %v449 = vunpack.c.l.b16 %v362
        %v450 = vunpack.c.l.b16 %v363
        %v451 = vunpack.c.l.b16 %v364
        %v452 = vunpack.c.l.b16 %v365
        %v453 = vunpack.c.l.b16 %v366
        %v454 = vunpack.c.l.b16 %v367
        %v455 = vunpack.c.l.b16 %v368
        %v456 = vunpack.c.l.b16 %v369
        %v457 = vunpack.c.l.b16 %v370
        %v458 = vunpack.c.l.b16 %v371
        %v459 = vunpack.c.l.b16 %v372
        %v460 = vunpack.c.l.b16 %v373
        %v461 = vunpack.c.l.b16 %v374
        %v462 = vunpack.c.l.b16 %v375
        %v463 = vpack.c.b16 %v432, %v431
        %v464 = vpack.c.b16 %v434, %v433
        %v465 = vpack.c.b16 %v436, %v435
        %v466 = vpack.c.b16 %v438, %v437
        %v467 = vpack.c.b16 %v440, %v439
        %v468 = vpack.c.b16 %v442, %v441
        %v469 = vpack.c.b16 %v444, %v443
        %v470 = vpack.c.b16 %v446, %v445
        %v471 = vpack.c.b16 %v448, %v447
        %v472 = vpack.c.b16 %v450, %v449
        %v473 = vpack.c.b16 %v452, %v451
        %v474 = vpack.c.b16 %v454, %v453
        %v475 = vpack.c.b16 %v456, %v455
        %v476 = vpack.c.b16 %v458, %v457
        %v477 = vpack.c.b16 %v460, %v459
        %v478 = vpack.c.b16 %v462, %v461
        %v511 = vunpack.c.l.b16 %v376
        %v512 = vunpack.c.l.b16 %v377
        %v513 = vunpack.c.l.b16 %v378
        %v514 = vunpack.c.l.b16 %v379
        %v515 = vunpack.c.l.b16 %v380
        %v516 = vunpack.c.l.b16 %v381
        %v517 = vunpack.c.l.b16 %v382
        %v518 = vunpack.c.l.b16 %v383
        %v519 = vunpack.c.l.b16 %v384
        %v520 = vunpack.c.l.b16 %v385
        %v521 = vunpack.c.l.b16 %v386
        %v522 = vunpack.c.l.b16 %v387
        %v523 = vunpack.c.l.b16 %v388
        %v524 = vunpack.c.l.b16 %v389
        %v525 = vunpack.c.l.b16 %v390
        %v526 = vunpack.c.l.b16 %v391
        %v527 = vpack.c.b16 %v512, %v511
        %v528 = vpack.c.b16 %v514, %v513
        %v529 = vpack.c.b16 %v516, %v515
        %v530 = vpack.c.b16 %v518, %v517
        %v531 = vpack.c.b16 %v520, %v519
        %v532 = vpack.c.b16 %v522, %v521
        %v533 = vpack.c.b16 %v524, %v523
        %v534 = vpack.c.b16 %v526, %v525
        %543 = vmatprep.subr.bf16.mxu0 0
        %544 = vmatpush1.bf16.msra.mxu0 %v527
        %545 = vmatprep.subr.bf16.mxu0 0
        %546 = vmatpush1.bf16.msra.mxu0 %v528
        %547 = vmatprep.subr.bf16.mxu0 0
        %548 = vmatpush1.bf16.msra.mxu0 %v529
        %549 = vmatprep.subr.bf16.mxu0 0
        %550 = vmatpush1.bf16.msra.mxu0 %v530
        %551 = vmatprep.subr.bf16.mxu0 0
        %552 = vmatpush1.bf16.msra.mxu0 %v531
        %553 = vmatprep.subr.bf16.mxu0 0
        %554 = vmatpush1.bf16.msra.mxu0 %v532
        %555 = vmatprep.subr.bf16.mxu0 0
        %556 = vmatpush1.bf16.msra.mxu0 %v533
        %557 = vmatprep.subr.bf16.mxu0 0
        %558 = vmatpush1.bf16.msra.mxu0 %v534
        %559 = vmatprep.subr.bf16.mxu0 0
        %560 = vmatpush1.bf16.msra.mxu0 0
        %561 = vmatprep.subr.bf16.mxu0 0
        %562 = vmatpush1.bf16.msra.mxu0 0
        %563 = vmatprep.subr.bf16.mxu0 0
        %564 = vmatpush1.bf16.msra.mxu0 0
        %565 = vmatprep.subr.bf16.mxu0 0
        %566 = vmatpush1.bf16.msra.mxu0 0
        %567 = vmatprep.subr.bf16.mxu0 0
        %568 = vmatpush1.bf16.msra.mxu0 0
        %569 = vmatprep.subr.bf16.mxu0 0
        %570 = vmatpush1.bf16.msra.mxu0 0
        %571 = vmatprep.subr.bf16.mxu0 0
        %572 = vmatpush1.bf16.msra.mxu0 0
        %573 = vmatprep.subr.bf16.mxu0 0
        %574 = vmatpush1.bf16.msra.mxu0 0
        %575 = vmatprep.mubr.bf16.mxu0 0
        %576 = vmatmul.mubr.bf16.gmra.mrb[0].mxu0 %v463
        %v577 = vpop.f32.mrb[0].mxu0
        %v578 = vadd.f32 %v397, %v577
        %v579 = vpop.f32.mrb[0].mxu0
        %v580 = vpop.f32.mrb[0].mxu0
        %v581 = vadd.f32 %v397, %v580
        %v582 = vpop.f32.mrb[0].mxu0
        %583 = vmatprep.mubr.bf16.mxu0 0
        %584 = vmatmul.mubr.bf16.gmra.mrb[0].mxu0 %v464
        %v585 = vpop.f32.mrb[0].mxu0
        %v586 = vadd.f32 %v397, %v585
        %v587 = vpop.f32.mrb[0].mxu0
        %v588 = vpop.f32.mrb[0].mxu0
        %v589 = vadd.f32 %v397, %v588
        %v590 = vpop.f32.mrb[0].mxu0
        %591 = vmatprep.mubr.bf16.mxu0 0
        %592 = vmatmul.mubr.bf16.gmra.mrb[0].mxu0 %v465
        %v593 = vpop.f32.mrb[0].mxu0
        %v594 = vadd.f32 %v397, %v593
        %v595 = vpop.f32.mrb[0].mxu0
        %v596 = vpop.f32.mrb[0].mxu0
        %v597 = vadd.f32 %v397, %v596
        %v598 = vpop.f32.mrb[0].mxu0
        %599 = vmatprep.mubr.bf16.mxu0 0
        %600 = vmatmul.mubr.bf16.gmra.mrb[0].mxu0 %v466
        %v601 = vpop.f32.mrb[0].mxu0
        %v602 = vadd.f32 %v397, %v601
        %v603 = vpop.f32.mrb[0].mxu0
        %v604 = vpop.f32.mrb[0].mxu0
        %v605 = vadd.f32 %v397, %v604
        %v606 = vpop.f32.mrb[0].mxu0
        %607 = vmatprep.mubr.bf16.mxu0 0
        %608 = vmatmul.mubr.bf16.gmra.mrb[0].mxu0 %v467
        %v609 = vpop.f32.mrb[0].mxu0
        %v610 = vadd.f32 %v397, %v609
        %v611 = vpop.f32.mrb[0].mxu0
        %v612 = vpop.f32.mrb[0].mxu0
        %v613 = vadd.f32 %v397, %v612
        %v614 = vpop.f32.mrb[0].mxu0
        %615 = vmatprep.mubr.bf16.mxu0 0
        %616 = vmatmul.mubr.bf16.gmra.mrb[0].mxu0 %v468
        %v617 = vpop.f32.mrb[0].mxu0
        %v618 = vadd.f32 %v397, %v617
        %v619 = vpop.f32.mrb[0].mxu0
        %v620 = vpop.f32.mrb[0].mxu0
        %v621 = vadd.f32 %v397, %v620
        %v622 = vpop.f32.mrb[0].mxu0
        %623 = vmatprep.mubr.bf16.mxu0 0
        %624 = vmatmul.mubr.bf16.gmra.mrb[0].mxu0 %v469
        %v625 = vpop.f32.mrb[0].mxu0
        %v626 = vadd.f32 %v397, %v625
        %v627 = vpop.f32.mrb[0].mxu0
        %v628 = vpop.f32.mrb[0].mxu0
        %v629 = vadd.f32 %v397, %v628
        %v630 = vpop.f32.mrb[0].mxu0
        %631 = vmatprep.mubr.bf16.mxu0 0
        %632 = vmatmul.mubr.bf16.gmra.mrb[0].mxu0 %v470
        %v633 = vpop.f32.mrb[0].mxu0
        %v634 = vadd.f32 %v397, %v633
        %v635 = vpop.f32.mrb[0].mxu0
        %v636 = vpop.f32.mrb[0].mxu0
        %v637 = vadd.f32 %v397, %v636
        %v638 = vpop.f32.mrb[0].mxu0
        %639 = vmatprep.mubr.bf16.mxu0 0
        %640 = vmatmul.mubr.bf16.gmra.mrb[0].mxu0 %v471
        %v641 = vpop.f32.mrb[0].mxu0
        %v642 = vadd.f32 %v397, %v641
        %v643 = vpop.f32.mrb[0].mxu0
        %v644 = vpop.f32.mrb[0].mxu0
        %v645 = vadd.f32 %v397, %v644
        %v646 = vpop.f32.mrb[0].mxu0
        %647 = vmatprep.mubr.bf16.mxu0 0
        %648 = vmatmul.mubr.bf16.gmra.mrb[0].mxu0 %v472
        %v649 = vpop.f32.mrb[0].mxu0
        %v650 = vadd.f32 %v397, %v649
        %v651 = vpop.f32.mrb[0].mxu0
        %v652 = vpop.f32.mrb[0].mxu0
        %v653 = vadd.f32 %v397, %v652
        %v654 = vpop.f32.mrb[0].mxu0
        %655 = vmatprep.mubr.bf16.mxu0 0
        %656 = vmatmul.mubr.bf16.gmra.mrb[0].mxu0 %v473
        %v657 = vpop.f32.mrb[0].mxu0
        %v658 = vadd.f32 %v397, %v657
        %v659 = vpop.f32.mrb[0].mxu0
        %v660 = vpop.f32.mrb[0].mxu0
        %v661 = vadd.f32 %v397, %v660
        %v662 = vpop.f32.mrb[0].mxu0
        %663 = vmatprep.mubr.bf16.mxu0 0
        %664 = vmatmul.mubr.bf16.gmra.mrb[0].mxu0 %v474
        %v665 = vpop.f32.mrb[0].mxu0
        %v666 = vadd.f32 %v397, %v665
        %v667 = vpop.f32.mrb[0].mxu0
        %v668 = vpop.f32.mrb[0].mxu0
        %v669 = vadd.f32 %v397, %v668
        %v670 = vpop.f32.mrb[0].mxu0
        %671 = vmatprep.mubr.bf16.mxu0 0
        %672 = vmatmul.mubr.bf16.gmra.mrb[0].mxu0 %v475
        %v673 = vpop.f32.mrb[0].mxu0
        %v674 = vadd.f32 %v397, %v673
        %v675 = vpop.f32.mrb[0].mxu0
        %v676 = vpop.f32.mrb[0].mxu0
        %v677 = vadd.f32 %v397, %v676
        %v678 = vpop.f32.mrb[0].mxu0
        %679 = vmatprep.mubr.bf16.mxu0 0
        %680 = vmatmul.mubr.bf16.gmra.mrb[0].mxu0 %v476
        %v681 = vpop.f32.mrb[0].mxu0
        %v682 = vadd.f32 %v397, %v681
        %v683 = vpop.f32.mrb[0].mxu0
        %v684 = vpop.f32.mrb[0].mxu0
        %v685 = vadd.f32 %v397, %v684
        %v686 = vpop.f32.mrb[0].mxu0
        %687 = vmatprep.mubr.bf16.mxu0 0
        %688 = vmatmul.mubr.bf16.gmra.mrb[0].mxu0 %v477
        %v689 = vpop.f32.mrb[0].mxu0
        %v690 = vadd.f32 %v397, %v689
        %v691 = vpop.f32.mrb[0].mxu0
        %v692 = vpop.f32.mrb[0].mxu0
        %v693 = vadd.f32 %v397, %v692
        %v694 = vpop.f32.mrb[0].mxu0
        %695 = vmatprep.mubr.bf16.mxu0 0
        %696 = vmatmul.mubr.bf16.gmra.mrb[0].mxu0 %v478
        %v697 = vpop.f32.mrb[0].mxu0
        %v698 = vadd.f32 %v397, %v697
        %v699 = vpop.f32.mrb[0].mxu0
        %v700 = vpop.f32.mrb[0].mxu0
        %v701 = vadd.f32 %v397, %v700
        %v702 = vpop.f32.mrb[0].mxu0
        %703 = vdwg.mxu0
        %v704 = vmax.f32 %v578, 0.0
        %v705 = vmax.f32 %v581, 0.0
        %v706 = vmax.f32 %v586, 0.0
        %v707 = vmax.f32 %v589, 0.0
        %v708 = vmax.f32 %v594, 0.0
        %v709 = vmax.f32 %v597, 0.0
        %v710 = vmax.f32 %v602, 0.0
        %v711 = vmax.f32 %v605, 0.0
        %v712 = vmax.f32 %v610, 0.0
        %v713 = vmax.f32 %v613, 0.0
        %v714 = vmax.f32 %v618, 0.0
        %v715 = vmax.f32 %v621, 0.0
        %v716 = vmax.f32 %v626, 0.0
        %v717 = vmax.f32 %v629, 0.0
        %v718 = vmax.f32 %v634, 0.0
        %v719 = vmax.f32 %v637, 0.0
        %v720 = vmax.f32 %v642, 0.0
        %v721 = vmax.f32 %v645, 0.0
        %v722 = vmax.f32 %v650, 0.0
        %v723 = vmax.f32 %v653, 0.0
        %v724 = vmax.f32 %v658, 0.0
        %v725 = vmax.f32 %v661, 0.0
        %v726 = vmax.f32 %v666, 0.0
        %v727 = vmax.f32 %v669, 0.0
        %v728 = vmax.f32 %v674, 0.0
        %v729 = vmax.f32 %v677, 0.0
        %v730 = vmax.f32 %v682, 0.0
        %v731 = vmax.f32 %v685, 0.0
        %v732 = vmax.f32 %v690, 0.0
        %v733 = vmax.f32 %v693, 0.0
        %v734 = vmax.f32 %v698, 0.0
        %v735 = vmax.f32 %v701, 0.0
        %v736 = vpack.c.bf16 %v705, %v704
        %v737 = vpack.c.bf16 %v707, %v706
        %v738 = vpack.c.bf16 %v709, %v708
        %v739 = vpack.c.bf16 %v711, %v710
        %v740 = vpack.c.bf16 %v713, %v712
        %v741 = vpack.c.bf16 %v715, %v714
        %v742 = vpack.c.bf16 %v717, %v716
        %v743 = vpack.c.bf16 %v719, %v718
        %v744 = vpack.c.bf16 %v721, %v720
        %v745 = vpack.c.bf16 %v723, %v722
        %v746 = vpack.c.bf16 %v725, %v724
        %v747 = vpack.c.bf16 %v727, %v726
        %v748 = vpack.c.bf16 %v729, %v728
        %v749 = vpack.c.bf16 %v731, %v730
        %v750 = vpack.c.bf16 %v733, %v732
        %v751 = vpack.c.bf16 %v735, %v734
        %v752 = vlaneseq
        %v753 = vshrl.u32 %v752, 7
        %v754 = vadd.s32 %v753, 8
        %v755 = vadd.s32 %v753, 16
        %v756 = vadd.s32 %v753, 24
        %v757 = vadd.s32 %v753, 32
        %v758 = vadd.s32 %v753, 40
        %v759 = vadd.s32 %v753, 48
        %v760 = vadd.s32 %v753, 56
        %v761 = vadd.s32 %v753, 64
        %v762 = vadd.s32 %v753, 72
        %v763 = vadd.s32 %v753, 80
        %v764 = vadd.s32 %v753, 88
        %v765 = vadd.s32 %v753, 96
        %v766 = vadd.s32 %v753, 104
        %v767 = vadd.s32 %v753, 112
        %v768 = vadd.s32 %v753, 120
        %v769 = vadd.s32 %v753, 128
        %v770 = vadd.s32 %v753, 136
        %v771 = vadd.s32 %v753, 144
        %v772 = vadd.s32 %v753, 152
        %v773 = vadd.s32 %v753, 160
        %v774 = vadd.s32 %v753, 168
        %v775 = vadd.s32 %v753, 176
        %v776 = vadd.s32 %v753, 184
        %v777 = vadd.s32 %v753, 192
        %v778 = vadd.s32 %v753, 200
        %v779 = vadd.s32 %v753, 208
        %v780 = vadd.s32 %v753, 216
        %v781 = vadd.s32 %v753, 224
        %v782 = vadd.s32 %v753, 232
        %v783 = vadd.s32 %v753, 240
        %v784 = vadd.s32 %v753, 248
        %vm785 = vcmp.lt.s32.totalorder %v753, 0
        %v786 = vsub.s32 0, %v753
        %v787 = vsel %vm785, %v786, %v753
        %v788 = vshrl.u32 %v787, 4
        %v789 = vand.u32 %v787, 15
        %v790 = vsub.s32 0, %v789
        %v791 = vsel %vm785, %v790, %v789
        %vm792 = vcmp.lt.s32.totalorder %v754, 0
        %v793 = vsub.s32 0, %v754
        %v794 = vsel %vm792, %v793, %v754
        %v795 = vshrl.u32 %v794, 4
        %v796 = vand.u32 %v794, 15
        %v797 = vsub.s32 0, %v796
        %v798 = vsel %vm792, %v797, %v796
        %vm799 = vcmp.lt.s32.totalorder %v755, 0
        %v800 = vsub.s32 0, %v755
        %v801 = vsel %vm799, %v800, %v755
        %v802 = vshrl.u32 %v801, 4
        %v803 = vand.u32 %v801, 15
        %v804 = vsub.s32 0, %v803
        %v805 = vsel %vm799, %v804, %v803
        %vm806 = vcmp.lt.s32.totalorder %v756, 0
        %v807 = vsub.s32 0, %v756
        %v808 = vsel %vm806, %v807, %v756
        %v809 = vshrl.u32 %v808, 4
        %v810 = vand.u32 %v808, 15
        %v811 = vsub.s32 0, %v810
        %v812 = vsel %vm806, %v811, %v810
        %vm813 = vcmp.lt.s32.totalorder %v757, 0
        %v814 = vsub.s32 0, %v757
        %v815 = vsel %vm813, %v814, %v757
        %v816 = vshrl.u32 %v815, 4
        %v817 = vand.u32 %v815, 15
        %v818 = vsub.s32 0, %v817
        %v819 = vsel %vm813, %v818, %v817
        %vm820 = vcmp.lt.s32.totalorder %v758, 0
        %v821 = vsub.s32 0, %v758
        %v822 = vsel %vm820, %v821, %v758
        %v823 = vshrl.u32 %v822, 4
        %v824 = vand.u32 %v822, 15
        %v825 = vsub.s32 0, %v824
        %v826 = vsel %vm820, %v825, %v824
        %vm827 = vcmp.lt.s32.totalorder %v759, 0
        %v828 = vsub.s32 0, %v759
        %v829 = vsel %vm827, %v828, %v759
        %v830 = vshrl.u32 %v829, 4
        %v831 = vand.u32 %v829, 15
        %v832 = vsub.s32 0, %v831
        %v833 = vsel %vm827, %v832, %v831
        %vm834 = vcmp.lt.s32.totalorder %v760, 0
        %v835 = vsub.s32 0, %v760
        %v836 = vsel %vm834, %v835, %v760
        %v837 = vshrl.u32 %v836, 4
        %v838 = vand.u32 %v836, 15
        %v839 = vsub.s32 0, %v838
        %v840 = vsel %vm834, %v839, %v838
        %vm841 = vcmp.lt.s32.totalorder %v761, 0
        %v842 = vsub.s32 0, %v761
        %v843 = vsel %vm841, %v842, %v761
        %v844 = vshrl.u32 %v843, 4
        %v845 = vand.u32 %v843, 15
        %v846 = vsub.s32 0, %v845
        %v847 = vsel %vm841, %v846, %v845
        %vm848 = vcmp.lt.s32.totalorder %v762, 0
        %v849 = vsub.s32 0, %v762
        %v850 = vsel %vm848, %v849, %v762
        %v851 = vshrl.u32 %v850, 4
        %v852 = vand.u32 %v850, 15
        %v853 = vsub.s32 0, %v852
        %v854 = vsel %vm848, %v853, %v852
        %vm855 = vcmp.lt.s32.totalorder %v763, 0
        %v856 = vsub.s32 0, %v763
        %v857 = vsel %vm855, %v856, %v763
        %v858 = vshrl.u32 %v857, 4
        %v859 = vand.u32 %v857, 15
        %v860 = vsub.s32 0, %v859
        %v861 = vsel %vm855, %v860, %v859
        %vm862 = vcmp.lt.s32.totalorder %v764, 0
        %v863 = vsub.s32 0, %v764
        %v864 = vsel %vm862, %v863, %v764
        %v865 = vshrl.u32 %v864, 4
        %v866 = vand.u32 %v864, 15
        %v867 = vsub.s32 0, %v866
        %v868 = vsel %vm862, %v867, %v866
        %vm869 = vcmp.lt.s32.totalorder %v765, 0
        %v870 = vsub.s32 0, %v765
        %v871 = vsel %vm869, %v870, %v765
        %v872 = vshrl.u32 %v871, 4
        %v873 = vand.u32 %v871, 15
        %v874 = vsub.s32 0, %v873
        %v875 = vsel %vm869, %v874, %v873
        %vm876 = vcmp.lt.s32.totalorder %v766, 0
        %v877 = vsub.s32 0, %v766
        %v878 = vsel %vm876, %v877, %v766
        %v879 = vshrl.u32 %v878, 4
        %v880 = vand.u32 %v878, 15
        %v881 = vsub.s32 0, %v880
        %v882 = vsel %vm876, %v881, %v880
        %vm883 = vcmp.lt.s32.totalorder %v767, 0
        %v884 = vsub.s32 0, %v767
        %v885 = vsel %vm883, %v884, %v767
        %v886 = vshrl.u32 %v885, 4
        %v887 = vand.u32 %v885, 15
        %v888 = vsub.s32 0, %v887
        %v889 = vsel %vm883, %v888, %v887
        %vm890 = vcmp.lt.s32.totalorder %v768, 0
        %v891 = vsub.s32 0, %v768
        %v892 = vsel %vm890, %v891, %v768
        %v893 = vshrl.u32 %v892, 4
        %v894 = vand.u32 %v892, 15
        %v895 = vsub.s32 0, %v894
        %v896 = vsel %vm890, %v895, %v894
        %vm897 = vcmp.lt.s32.totalorder %v769, 0
        %v898 = vsub.s32 0, %v769
        %v899 = vsel %vm897, %v898, %v769
        %v900 = vshrl.u32 %v899, 4
        %v901 = vand.u32 %v899, 15
        %v902 = vsub.s32 0, %v901
        %v903 = vsel %vm897, %v902, %v901
        %vm904 = vcmp.lt.s32.totalorder %v770, 0
        %v905 = vsub.s32 0, %v770
        %v906 = vsel %vm904, %v905, %v770
        %v907 = vshrl.u32 %v906, 4
        %v908 = vand.u32 %v906, 15
        %v909 = vsub.s32 0, %v908
        %v910 = vsel %vm904, %v909, %v908
        %vm911 = vcmp.lt.s32.totalorder %v771, 0
        %v912 = vsub.s32 0, %v771
        %v913 = vsel %vm911, %v912, %v771
        %v914 = vshrl.u32 %v913, 4
        %v915 = vand.u32 %v913, 15
        %v916 = vsub.s32 0, %v915
        %v917 = vsel %vm911, %v916, %v915
        %vm918 = vcmp.lt.s32.totalorder %v772, 0
        %v919 = vsub.s32 0, %v772
        %v920 = vsel %vm918, %v919, %v772
        %v921 = vshrl.u32 %v920, 4
        %v922 = vand.u32 %v920, 15
        %v923 = vsub.s32 0, %v922
        %v924 = vsel %vm918, %v923, %v922
        %vm925 = vcmp.lt.s32.totalorder %v773, 0
        %v926 = vsub.s32 0, %v773
        %v927 = vsel %vm925, %v926, %v773
        %v928 = vshrl.u32 %v927, 4
        %v929 = vand.u32 %v927, 15
        %v930 = vsub.s32 0, %v929
        %v931 = vsel %vm925, %v930, %v929
        %vm932 = vcmp.lt.s32.totalorder %v774, 0
        %v933 = vsub.s32 0, %v774
        %v934 = vsel %vm932, %v933, %v774
        %v935 = vshrl.u32 %v934, 4
        %v936 = vand.u32 %v934, 15
        %v937 = vsub.s32 0, %v936
        %v938 = vsel %vm932, %v937, %v936
        %vm939 = vcmp.lt.s32.totalorder %v775, 0
        %v940 = vsub.s32 0, %v775
        %v941 = vsel %vm939, %v940, %v775
        %v942 = vshrl.u32 %v941, 4
        %v943 = vand.u32 %v941, 15
        %v944 = vsub.s32 0, %v943
        %v945 = vsel %vm939, %v944, %v943
        %vm946 = vcmp.lt.s32.totalorder %v776, 0
        %v947 = vsub.s32 0, %v776
        %v948 = vsel %vm946, %v947, %v776
        %v949 = vshrl.u32 %v948, 4
        %v950 = vand.u32 %v948, 15
        %v951 = vsub.s32 0, %v950
        %v952 = vsel %vm946, %v951, %v950
        %vm953 = vcmp.lt.s32.totalorder %v777, 0
        %v954 = vsub.s32 0, %v777
        %v955 = vsel %vm953, %v954, %v777
        %v956 = vshrl.u32 %v955, 4
        %v957 = vand.u32 %v955, 15
        %v958 = vsub.s32 0, %v957
        %v959 = vsel %vm953, %v958, %v957
        %vm960 = vcmp.lt.s32.totalorder %v778, 0
        %v961 = vsub.s32 0, %v778
        %v962 = vsel %vm960, %v961, %v778
        %v963 = vshrl.u32 %v962, 4
        %v964 = vand.u32 %v962, 15
        %v965 = vsub.s32 0, %v964
        %v966 = vsel %vm960, %v965, %v964
        %vm967 = vcmp.lt.s32.totalorder %v779, 0
        %v968 = vsub.s32 0, %v779
        %v969 = vsel %vm967, %v968, %v779
        %v970 = vshrl.u32 %v969, 4
        %v971 = vand.u32 %v969, 15
        %v972 = vsub.s32 0, %v971
        %v973 = vsel %vm967, %v972, %v971
        %vm974 = vcmp.lt.s32.totalorder %v780, 0
        %v975 = vsub.s32 0, %v780
        %v976 = vsel %vm974, %v975, %v780
        %v977 = vshrl.u32 %v976, 4
        %v978 = vand.u32 %v976, 15
        %v979 = vsub.s32 0, %v978
        %v980 = vsel %vm974, %v979, %v978
        %vm981 = vcmp.lt.s32.totalorder %v781, 0
        %v982 = vsub.s32 0, %v781
        %v983 = vsel %vm981, %v982, %v781
        %v984 = vshrl.u32 %v983, 4
        %v985 = vand.u32 %v983, 15
        %v986 = vsub.s32 0, %v985
        %v987 = vsel %vm981, %v986, %v985
        %vm988 = vcmp.lt.s32.totalorder %v782, 0
        %v989 = vsub.s32 0, %v782
        %v990 = vsel %vm988, %v989, %v782
        %v991 = vshrl.u32 %v990, 4
        %v992 = vand.u32 %v990, 15
        %v993 = vsub.s32 0, %v992
        %v994 = vsel %vm988, %v993, %v992
        %vm995 = vcmp.lt.s32.totalorder %v783, 0
        %v996 = vsub.s32 0, %v783
        %v997 = vsel %vm995, %v996, %v783
        %v998 = vshrl.u32 %v997, 4
        %v999 = vand.u32 %v997, 15
        %v1000 = vsub.s32 0, %v999
        %v1001 = vsel %vm995, %v1000, %v999
        %vm1002 = vcmp.lt.s32.totalorder %v784, 0
        %v1003 = vsub.s32 0, %v784
        %v1004 = vsel %vm1002, %v1003, %v784
        %v1005 = vshrl.u32 %v1004, 4
        %v1006 = vand.u32 %v1004, 15
        %v1007 = vsub.s32 0, %v1006
        %v1008 = vsel %vm1002, %v1007, %v1006
        %vm1009 = vcmp.ne.s32.totalorder %v791, 0
        %vm1010 = vcmp.ne.s32.totalorder %v798, 0
        %vm1011 = vcmp.ne.s32.totalorder %v805, 0
        %vm1012 = vcmp.ne.s32.totalorder %v812, 0
        %vm1013 = vcmp.ne.s32.totalorder %v819, 0
        %vm1014 = vcmp.ne.s32.totalorder %v826, 0
        %vm1015 = vcmp.ne.s32.totalorder %v833, 0
        %vm1016 = vcmp.ne.s32.totalorder %v840, 0
        %vm1017 = vcmp.ne.s32.totalorder %v847, 0
        %vm1018 = vcmp.ne.s32.totalorder %v854, 0
        %vm1019 = vcmp.ne.s32.totalorder %v861, 0
        %vm1020 = vcmp.ne.s32.totalorder %v868, 0
        %vm1021 = vcmp.ne.s32.totalorder %v875, 0
        %vm1022 = vcmp.ne.s32.totalorder %v882, 0
        %vm1023 = vcmp.ne.s32.totalorder %v889, 0
        %vm1024 = vcmp.ne.s32.totalorder %v896, 0
        %vm1025 = vcmp.ne.s32.totalorder %v903, 0
        %vm1026 = vcmp.ne.s32.totalorder %v910, 0
        %vm1027 = vcmp.ne.s32.totalorder %v917, 0
        %vm1028 = vcmp.ne.s32.totalorder %v924, 0
        %vm1029 = vcmp.ne.s32.totalorder %v931, 0
        %vm1030 = vcmp.ne.s32.totalorder %v938, 0
        %vm1031 = vcmp.ne.s32.totalorder %v945, 0
        %vm1032 = vcmp.ne.s32.totalorder %v952, 0
        %vm1033 = vcmp.ne.s32.totalorder %v959, 0
        %vm1034 = vcmp.ne.s32.totalorder %v966, 0
        %vm1035 = vcmp.ne.s32.totalorder %v973, 0
        %vm1036 = vcmp.ne.s32.totalorder %v980, 0
        %vm1037 = vcmp.ne.s32.totalorder %v987, 0
        %vm1038 = vcmp.ne.s32.totalorder %v994, 0
        %vm1039 = vcmp.ne.s32.totalorder %v1001, 0
        %vm1040 = vcmp.ne.s32.totalorder %v1008, 0
        %vm1041 = vcmp.lt.s32.totalorder %v791, 0
        %vm1042 = vcmp.lt.s32.totalorder %v798, 0
        %vm1043 = vcmp.lt.s32.totalorder %v805, 0
        %vm1044 = vcmp.lt.s32.totalorder %v812, 0
        %vm1045 = vcmp.lt.s32.totalorder %v819, 0
        %vm1046 = vcmp.lt.s32.totalorder %v826, 0
        %vm1047 = vcmp.lt.s32.totalorder %v833, 0
        %vm1048 = vcmp.lt.s32.totalorder %v840, 0
        %vm1049 = vcmp.lt.s32.totalorder %v847, 0
        %vm1050 = vcmp.lt.s32.totalorder %v854, 0
        %vm1051 = vcmp.lt.s32.totalorder %v861, 0
        %vm1052 = vcmp.lt.s32.totalorder %v868, 0
        %vm1053 = vcmp.lt.s32.totalorder %v875, 0
        %vm1054 = vcmp.lt.s32.totalorder %v882, 0
        %vm1055 = vcmp.lt.s32.totalorder %v889, 0
        %vm1056 = vcmp.lt.s32.totalorder %v896, 0
        %vm1057 = vcmp.lt.s32.totalorder %v903, 0
        %vm1058 = vcmp.lt.s32.totalorder %v910, 0
        %vm1059 = vcmp.lt.s32.totalorder %v917, 0
        %vm1060 = vcmp.lt.s32.totalorder %v924, 0
        %vm1061 = vcmp.lt.s32.totalorder %v931, 0
        %vm1062 = vcmp.lt.s32.totalorder %v938, 0
        %vm1063 = vcmp.lt.s32.totalorder %v945, 0
        %vm1064 = vcmp.lt.s32.totalorder %v952, 0
        %vm1065 = vcmp.lt.s32.totalorder %v959, 0
        %vm1066 = vcmp.lt.s32.totalorder %v966, 0
        %vm1067 = vcmp.lt.s32.totalorder %v973, 0
        %vm1068 = vcmp.lt.s32.totalorder %v980, 0
        %vm1069 = vcmp.lt.s32.totalorder %v987, 0
        %vm1070 = vcmp.lt.s32.totalorder %v994, 0
        %vm1071 = vcmp.lt.s32.totalorder %v1001, 0
        %vm1072 = vcmp.lt.s32.totalorder %v1008, 0
        %vm1073 = vmand %vm1041, %vm1009
        %vm1074 = vmand %vm1042, %vm1010
        %vm1075 = vmand %vm1043, %vm1011
        %vm1076 = vmand %vm1044, %vm1012
        %vm1077 = vmand %vm1045, %vm1013
        %vm1078 = vmand %vm1046, %vm1014
        %vm1079 = vmand %vm1047, %vm1015
        %vm1080 = vmand %vm1048, %vm1016
        %vm1081 = vmand %vm1049, %vm1017
        %vm1082 = vmand %vm1050, %vm1018
        %vm1083 = vmand %vm1051, %vm1019
        %vm1084 = vmand %vm1052, %vm1020
        %vm1085 = vmand %vm1053, %vm1021
        %vm1086 = vmand %vm1054, %vm1022
        %vm1087 = vmand %vm1055, %vm1023
        %vm1088 = vmand %vm1056, %vm1024
        %vm1089 = vmand %vm1057, %vm1025
        %vm1090 = vmand %vm1058, %vm1026
        %vm1091 = vmand %vm1059, %vm1027
        %vm1092 = vmand %vm1060, %vm1028
        %vm1093 = vmand %vm1061, %vm1029
        %vm1094 = vmand %vm1062, %vm1030
        %vm1095 = vmand %vm1063, %vm1031
        %vm1096 = vmand %vm1064, %vm1032
        %vm1097 = vmand %vm1065, %vm1033
        %vm1098 = vmand %vm1066, %vm1034
        %vm1099 = vmand %vm1067, %vm1035
        %vm1100 = vmand %vm1068, %vm1036
        %vm1101 = vmand %vm1069, %vm1037
        %vm1102 = vmand %vm1070, %vm1038
        %vm1103 = vmand %vm1071, %vm1039
        %vm1104 = vmand %vm1072, %vm1040
        %v1105 = vadd.s32 %v791, 16
        %v1106 = vadd.s32 %v798, 16
        %v1107 = vadd.s32 %v805, 16
        %v1108 = vadd.s32 %v812, 16
        %v1109 = vadd.s32 %v819, 16
        %v1110 = vadd.s32 %v826, 16
        %v1111 = vadd.s32 %v833, 16
        %v1112 = vadd.s32 %v840, 16
        %v1113 = vadd.s32 %v847, 16
        %v1114 = vadd.s32 %v854, 16
        %v1115 = vadd.s32 %v861, 16
        %v1116 = vadd.s32 %v868, 16
        %v1117 = vadd.s32 %v875, 16
        %v1118 = vadd.s32 %v882, 16
        %v1119 = vadd.s32 %v889, 16
        %v1120 = vadd.s32 %v896, 16
        %v1121 = vadd.s32 %v903, 16
        %v1122 = vadd.s32 %v910, 16
        %v1123 = vadd.s32 %v917, 16
        %v1124 = vadd.s32 %v924, 16
        %v1125 = vadd.s32 %v931, 16
        %v1126 = vadd.s32 %v938, 16
        %v1127 = vadd.s32 %v945, 16
        %v1128 = vadd.s32 %v952, 16
        %v1129 = vadd.s32 %v959, 16
        %v1130 = vadd.s32 %v966, 16
        %v1131 = vadd.s32 %v973, 16
        %v1132 = vadd.s32 %v980, 16
        %v1133 = vadd.s32 %v987, 16
        %v1134 = vadd.s32 %v994, 16
        %v1135 = vadd.s32 %v1001, 16
        %v1136 = vadd.s32 %v1008, 16
        %v1137 = vsel %vm1073, %v1105, %v791
        %v1138 = vsel %vm1074, %v1106, %v798
        %v1139 = vsel %vm1075, %v1107, %v805
        %v1140 = vsel %vm1076, %v1108, %v812
        %v1141 = vsel %vm1077, %v1109, %v819
        %v1142 = vsel %vm1078, %v1110, %v826
        %v1143 = vsel %vm1079, %v1111, %v833
        %v1144 = vsel %vm1080, %v1112, %v840
        %v1145 = vsel %vm1081, %v1113, %v847
        %v1146 = vsel %vm1082, %v1114, %v854
        %v1147 = vsel %vm1083, %v1115, %v861
        %v1148 = vsel %vm1084, %v1116, %v868
        %v1149 = vsel %vm1085, %v1117, %v875
        %v1150 = vsel %vm1086, %v1118, %v882
        %v1151 = vsel %vm1087, %v1119, %v889
        %v1152 = vsel %vm1088, %v1120, %v896
        %v1153 = vsel %vm1089, %v1121, %v903
        %v1154 = vsel %vm1090, %v1122, %v910
        %v1155 = vsel %vm1091, %v1123, %v917
        %v1156 = vsel %vm1092, %v1124, %v924
        %v1157 = vsel %vm1093, %v1125, %v931
        %v1158 = vsel %vm1094, %v1126, %v938
        %v1159 = vsel %vm1095, %v1127, %v945
        %v1160 = vsel %vm1096, %v1128, %v952
        %v1161 = vsel %vm1097, %v1129, %v959
        %v1162 = vsel %vm1098, %v1130, %v966
        %v1163 = vsel %vm1099, %v1131, %v973
        %v1164 = vsel %vm1100, %v1132, %v980
        %v1165 = vsel %vm1101, %v1133, %v987
        %v1166 = vsel %vm1102, %v1134, %v994
        %v1167 = vsel %vm1103, %v1135, %v1001
        %v1168 = vsel %vm1104, %v1136, %v1008
        %1169 = vst [vmem:[#allocation2] sm:$0xff] 0
        %1170 = vst [vmem:[#allocation2 + $0x8] sm:$0xff] 0
        %1171 = vst [vmem:[#allocation2 + $0x10] sm:$0xff] 0
        %1172 = vst [vmem:[#allocation2 + $0x198] sm:$0xff] 0
        %1173 = vst [vmem:[#allocation2 + $0x1a0] sm:$0xff] 0
        %1174 = vst [vmem:[#allocation2 + $0x1a8] sm:$0xff] 0
        %1175 = vst [vmem:[#allocation2 + $0x20] sm:$0xff] %v736
        %1176 = vst [vmem:[#allocation2 + $0x38] sm:$0xff] %v737
        %1177 = vst [vmem:[#allocation2 + $0x50] sm:$0xff] %v738
        %1178 = vst [vmem:[#allocation2 + $0x68] sm:$0xff] %v739
        %1179 = vst [vmem:[#allocation2 + $0x80] sm:$0xff] %v740
        %1180 = vst [vmem:[#allocation2 + $0x98] sm:$0xff] %v741
        %1181 = vst [vmem:[#allocation2 + $0xb0] sm:$0xff] %v742
        %1182 = vst [vmem:[#allocation2 + $0xc8] sm:$0xff] %v743
        %1183 = vst [vmem:[#allocation2 + $0xe0] sm:$0xff] %v744
        %1184 = vst [vmem:[#allocation2 + $0xf8] sm:$0xff] %v745
        %1185 = vst [vmem:[#allocation2 + $0x110] sm:$0xff] %v746
        %1186 = vst [vmem:[#allocation2 + $0x128] sm:$0xff] %v747
        %1187 = vst [vmem:[#allocation2 + $0x140] sm:$0xff] %v748
        %1188 = vst [vmem:[#allocation2 + $0x158] sm:$0xff] %v749
        %1189 = vst [vmem:[#allocation2 + $0x170] sm:$0xff] %v750
        %1190 = vst [vmem:[#allocation2 + $0x188] sm:$0xff] %v751
        %vm1191 = vcmask 1040384
        %vm1192 = vsmask.f32 256
        %vm1193 = vmand %vm1191, %vm1192
        %v1194 = vld [vmem:[#allocation2 + $0x18] sm:$0x1]
        %v1195 = vsel %vm1193, 0, %v1194
        %1196 = vst [vmem:[#allocation2 + $0x18] sm:$0x1] %v1195
        %vm1197 = vcmp.ge.s32.totalorder %v1137, 1
        %vm1198 = vcmp.ge.s32.totalorder %v1138, 1
        %vm1199 = vcmp.ge.s32.totalorder %v1139, 1
        %vm1200 = vcmp.ge.s32.totalorder %v1140, 1
        %vm1201 = vcmp.ge.s32.totalorder %v1141, 1
        %vm1202 = vcmp.ge.s32.totalorder %v1142, 1
        %vm1203 = vcmp.ge.s32.totalorder %v1143, 1
        %vm1204 = vcmp.ge.s32.totalorder %v1144, 1
        %vm1205 = vcmp.ge.s32.totalorder %v1145, 1
        %vm1206 = vcmp.ge.s32.totalorder %v1146, 1
        %vm1207 = vcmp.ge.s32.totalorder %v1147, 1
        %vm1208 = vcmp.ge.s32.totalorder %v1148, 1
        %vm1209 = vcmp.ge.s32.totalorder %v1149, 1
        %vm1210 = vcmp.ge.s32.totalorder %v1150, 1
        %vm1211 = vcmp.ge.s32.totalorder %v1151, 1
        %vm1212 = vcmp.ge.s32.totalorder %v1152, 1
        %vm1213 = vcmp.ge.s32.totalorder %v1153, 1
        %vm1214 = vcmp.ge.s32.totalorder %v1154, 1
        %vm1215 = vcmp.ge.s32.totalorder %v1155, 1
        %vm1216 = vcmp.ge.s32.totalorder %v1156, 1
        %vm1217 = vcmp.ge.s32.totalorder %v1157, 1
        %vm1218 = vcmp.ge.s32.totalorder %v1158, 1
        %vm1219 = vcmp.ge.s32.totalorder %v1159, 1
        %vm1220 = vcmp.ge.s32.totalorder %v1160, 1
        %vm1221 = vcmp.ge.s32.totalorder %v1161, 1
        %vm1222 = vcmp.ge.s32.totalorder %v1162, 1
        %vm1223 = vcmp.ge.s32.totalorder %v1163, 1
        %vm1224 = vcmp.ge.s32.totalorder %v1164, 1
        %vm1225 = vcmp.ge.s32.totalorder %v1165, 1
        %vm1226 = vcmp.ge.s32.totalorder %v1166, 1
        %vm1227 = vcmp.ge.s32.totalorder %v1167, 1
        %vm1228 = vcmp.ge.s32.totalorder %v1168, 1
        %v1229 = vsel %vm1197, 1, 0
        %v1230 = vsel %vm1198, 1, 0
        %v1231 = vsel %vm1199, 1, 0
        %v1232 = vsel %vm1200, 1, 0
        %v1233 = vsel %vm1201, 1, 0
        %v1234 = vsel %vm1202, 1, 0
        %v1235 = vsel %vm1203, 1, 0
        %v1236 = vsel %vm1204, 1, 0
        %v1237 = vsel %vm1205, 1, 0
        %v1238 = vsel %vm1206, 1, 0
        %v1239 = vsel %vm1207, 1, 0
        %v1240 = vsel %vm1208, 1, 0
        %v1241 = vsel %vm1209, 1, 0
        %v1242 = vsel %vm1210, 1, 0
        %v1243 = vsel %vm1211, 1, 0
        %v1244 = vsel %vm1212, 1, 0
        %v1245 = vsel %vm1213, 1, 0
        %v1246 = vsel %vm1214, 1, 0
        %v1247 = vsel %vm1215, 1, 0
        %v1248 = vsel %vm1216, 1, 0
        %v1249 = vsel %vm1217, 1, 0
        %v1250 = vsel %vm1218, 1, 0
        %v1251 = vsel %vm1219, 1, 0
        %v1252 = vsel %vm1220, 1, 0
        %v1253 = vsel %vm1221, 1, 0
        %v1254 = vsel %vm1222, 1, 0
        %v1255 = vsel %vm1223, 1, 0
        %v1256 = vsel %vm1224, 1, 0
        %v1257 = vsel %vm1225, 1, 0
        %v1258 = vsel %vm1226, 1, 0
        %v1259 = vsel %vm1227, 1, 0
        %v1260 = vsel %vm1228, 1, 0
        %vm1261 = vcmp.eq.s32.totalorder %v1229, 1
        %vm1262 = vcmp.eq.s32.totalorder %v1230, 1
        %vm1263 = vcmp.eq.s32.totalorder %v1231, 1
        %vm1264 = vcmp.eq.s32.totalorder %v1232, 1
        %vm1265 = vcmp.eq.s32.totalorder %v1233, 1
        %vm1266 = vcmp.eq.s32.totalorder %v1234, 1
        %vm1267 = vcmp.eq.s32.totalorder %v1235, 1
        %vm1268 = vcmp.eq.s32.totalorder %v1236, 1
        %vm1269 = vcmp.eq.s32.totalorder %v1237, 1
        %vm1270 = vcmp.eq.s32.totalorder %v1238, 1
        %vm1271 = vcmp.eq.s32.totalorder %v1239, 1
        %vm1272 = vcmp.eq.s32.totalorder %v1240, 1
        %vm1273 = vcmp.eq.s32.totalorder %v1241, 1
        %vm1274 = vcmp.eq.s32.totalorder %v1242, 1
        %vm1275 = vcmp.eq.s32.totalorder %v1243, 1
        %vm1276 = vcmp.eq.s32.totalorder %v1244, 1
        %vm1277 = vcmp.eq.s32.totalorder %v1245, 1
        %vm1278 = vcmp.eq.s32.totalorder %v1246, 1
        %vm1279 = vcmp.eq.s32.totalorder %v1247, 1
        %vm1280 = vcmp.eq.s32.totalorder %v1248, 1
        %vm1281 = vcmp.eq.s32.totalorder %v1249, 1
        %vm1282 = vcmp.eq.s32.totalorder %v1250, 1
        %vm1283 = vcmp.eq.s32.totalorder %v1251, 1
        %vm1284 = vcmp.eq.s32.totalorder %v1252, 1
        %vm1285 = vcmp.eq.s32.totalorder %v1253, 1
        %vm1286 = vcmp.eq.s32.totalorder %v1254, 1
        %vm1287 = vcmp.eq.s32.totalorder %v1255, 1
        %vm1288 = vcmp.eq.s32.totalorder %v1256, 1
        %vm1289 = vcmp.eq.s32.totalorder %v1257, 1
        %vm1290 = vcmp.eq.s32.totalorder %v1258, 1
        %vm1291 = vcmp.eq.s32.totalorder %v1259, 1
        %vm1292 = vcmp.eq.s32.totalorder %v1260, 1
        %vm1293 = vmpackc.low %vm1261, %vm1261
        %vm1294 = vmpackc.low %vm1262, %vm1262
        %vm1295 = vmpackc.low %vm1263, %vm1263
        %vm1296 = vmpackc.low %vm1264, %vm1264
        %vm1297 = vmpackc.low %vm1265, %vm1265
        %vm1298 = vmpackc.low %vm1266, %vm1266
        %vm1299 = vmpackc.low %vm1267, %vm1267
        %vm1300 = vmpackc.low %vm1268, %vm1268
        %vm1301 = vmpackc.low %vm1269, %vm1269
        %vm1302 = vmpackc.low %vm1270, %vm1270
        %vm1303 = vmpackc.low %vm1271, %vm1271
        %vm1304 = vmpackc.low %vm1272, %vm1272
        %vm1305 = vmpackc.low %vm1273, %vm1273
        %vm1306 = vmpackc.low %vm1274, %vm1274
        %vm1307 = vmpackc.low %vm1275, %vm1275
        %vm1308 = vmpackc.low %vm1276, %vm1276
        %vm1309 = vmpackc.low %vm1277, %vm1277
        %vm1310 = vmpackc.low %vm1278, %vm1278
        %vm1311 = vmpackc.low %vm1279, %vm1279
        %vm1312 = vmpackc.low %vm1280, %vm1280
        %vm1313 = vmpackc.low %vm1281, %vm1281
        %vm1314 = vmpackc.low %vm1282, %vm1282
        %vm1315 = vmpackc.low %vm1283, %vm1283
        %vm1316 = vmpackc.low %vm1284, %vm1284
        %vm1317 = vmpackc.low %vm1285, %vm1285
        %vm1318 = vmpackc.low %vm1286, %vm1286
        %vm1319 = vmpackc.low %vm1287, %vm1287
        %vm1320 = vmpackc.low %vm1288, %vm1288
        %vm1321 = vmpackc.low %vm1289, %vm1289
        %vm1322 = vmpackc.low %vm1290, %vm1290
        %vm1323 = vmpackc.low %vm1291, %vm1291
        %vm1324 = vmpackc.low %vm1292, %vm1292
        %v1325 = vsel %vm1293, 65537, 0
        %v1326 = vsel %vm1294, 65537, 0
        %v1327 = vsel %vm1295, 65537, 0
        %v1328 = vsel %vm1296, 65537, 0
        %v1329 = vsel %vm1297, 65537, 0
        %v1330 = vsel %vm1298, 65537, 0
        %v1331 = vsel %vm1299, 65537, 0
        %v1332 = vsel %vm1300, 65537, 0
        %v1333 = vsel %vm1301, 65537, 0
        %v1334 = vsel %vm1302, 65537, 0
        %v1335 = vsel %vm1303, 65537, 0
        %v1336 = vsel %vm1304, 65537, 0
        %v1337 = vsel %vm1305, 65537, 0
        %v1338 = vsel %vm1306, 65537, 0
        %v1339 = vsel %vm1307, 65537, 0
        %v1340 = vsel %vm1308, 65537, 0
        %v1341 = vsel %vm1309, 65537, 0
        %v1342 = vsel %vm1310, 65537, 0
        %v1343 = vsel %vm1311, 65537, 0
        %v1344 = vsel %vm1312, 65537, 0
        %v1345 = vsel %vm1313, 65537, 0
        %v1346 = vsel %vm1314, 65537, 0
        %v1347 = vsel %vm1315, 65537, 0
        %v1348 = vsel %vm1316, 65537, 0
        %v1349 = vsel %vm1317, 65537, 0
        %v1350 = vsel %vm1318, 65537, 0
        %v1351 = vsel %vm1319, 65537, 0
        %v1352 = vsel %vm1320, 65537, 0
        %v1353 = vsel %vm1321, 65537, 0
        %v1354 = vsel %vm1322, 65537, 0
        %v1355 = vsel %vm1323, 65537, 0
        %v1356 = vsel %vm1324, 65537, 0
        %v1357 = vunpack.c.l.b16 %v1325
        %v1358 = vunpack.c.l.b16 %v1326
        %v1359 = vunpack.c.l.b16 %v1327
        %v1360 = vunpack.c.l.b16 %v1328
        %v1361 = vunpack.c.l.b16 %v1329
        %v1362 = vunpack.c.l.b16 %v1330
        %v1363 = vunpack.c.l.b16 %v1331
        %v1364 = vunpack.c.l.b16 %v1332
        %v1365 = vunpack.c.l.b16 %v1333
        %v1366 = vunpack.c.l.b16 %v1334
        %v1367 = vunpack.c.l.b16 %v1335
        %v1368 = vunpack.c.l.b16 %v1336
        %v1369 = vunpack.c.l.b16 %v1337
        %v1370 = vunpack.c.l.b16 %v1338
        %v1371 = vunpack.c.l.b16 %v1339
        %v1372 = vunpack.c.l.b16 %v1340
        %v1373 = vunpack.c.l.b16 %v1341
        %v1374 = vunpack.c.l.b16 %v1342
        %v1375 = vunpack.c.l.b16 %v1343
        %v1376 = vunpack.c.l.b16 %v1344
        %v1377 = vunpack.c.l.b16 %v1345
        %v1378 = vunpack.c.l.b16 %v1346
        %v1379 = vunpack.c.l.b16 %v1347
        %v1380 = vunpack.c.l.b16 %v1348
        %v1381 = vunpack.c.l.b16 %v1349
        %v1382 = vunpack.c.l.b16 %v1350
        %v1383 = vunpack.c.l.b16 %v1351
        %v1384 = vunpack.c.l.b16 %v1352
        %v1385 = vunpack.c.l.b16 %v1353
        %v1386 = vunpack.c.l.b16 %v1354
        %v1387 = vunpack.c.l.b16 %v1355
        %v1388 = vunpack.c.l.b16 %v1356
        %v1389 = vpack.c.b16 %v1358, %v1357
        %v1390 = vpack.c.b16 %v1360, %v1359
        %v1391 = vpack.c.b16 %v1362, %v1361
        %v1392 = vpack.c.b16 %v1364, %v1363
        %v1393 = vpack.c.b16 %v1366, %v1365
        %v1394 = vpack.c.b16 %v1368, %v1367
        %v1395 = vpack.c.b16 %v1370, %v1369
        %v1396 = vpack.c.b16 %v1372, %v1371
        %v1397 = vpack.c.b16 %v1374, %v1373
        %v1398 = vpack.c.b16 %v1376, %v1375
        %v1399 = vpack.c.b16 %v1378, %v1377
        %v1400 = vpack.c.b16 %v1380, %v1379
        %v1401 = vpack.c.b16 %v1382, %v1381
        %v1402 = vpack.c.b16 %v1384, %v1383
        %v1403 = vpack.c.b16 %v1386, %v1385
        %v1404 = vpack.c.b16 %v1388, %v1387
        %vm1405 = vsmask.f32 7424
        %v1407 = vshrl.u32 %v1389, 16
        %v1409 = vshll.u32 %v1389, 16
        %v1411 = vrot.slane %v1409, 1
        %v1412 = vor.u32 %v1407, %v1411
        %v1414 = vshll.u32 %v1390, 16
        %v1416 = vrot.slane %v1414, 1
        %v1417 = vsel %vm1405, %v1412, %v1416
        %v1418 = vshrl.u32 %v1390, 16
        %v1420 = vor.u32 %v1418, %v1416
        %v1422 = vshll.u32 %v1391, 16
        %v1424 = vrot.slane %v1422, 1
        %v1425 = vsel %vm1405, %v1420, %v1424
        %v1426 = vshrl.u32 %v1391, 16
        %v1428 = vor.u32 %v1426, %v1424
        %v1430 = vshll.u32 %v1392, 16
        %v1432 = vrot.slane %v1430, 1
        %v1433 = vsel %vm1405, %v1428, %v1432
        %v1434 = vshrl.u32 %v1392, 16
        %v1436 = vor.u32 %v1434, %v1432
        %v1438 = vshll.u32 %v1393, 16
        %v1440 = vrot.slane %v1438, 1
        %v1441 = vsel %vm1405, %v1436, %v1440
        %v1442 = vshrl.u32 %v1393, 16
        %v1444 = vor.u32 %v1442, %v1440
        %v1446 = vshll.u32 %v1394, 16
        %v1448 = vrot.slane %v1446, 1
        %v1449 = vsel %vm1405, %v1444, %v1448
        %v1450 = vshrl.u32 %v1394, 16
        %v1452 = vor.u32 %v1450, %v1448
        %v1454 = vshll.u32 %v1395, 16
        %v1456 = vrot.slane %v1454, 1
        %v1457 = vsel %vm1405, %v1452, %v1456
        %v1458 = vshrl.u32 %v1395, 16
        %v1460 = vor.u32 %v1458, %v1456
        %v1462 = vshll.u32 %v1396, 16
        %v1464 = vrot.slane %v1462, 1
        %v1465 = vsel %vm1405, %v1460, %v1464
        %v1466 = vshrl.u32 %v1396, 16
        %v1468 = vor.u32 %v1466, %v1464
        %v1470 = vshll.u32 %v1397, 16
        %v1472 = vrot.slane %v1470, 1
        %v1473 = vsel %vm1405, %v1468, %v1472
        %v1474 = vshrl.u32 %v1397, 16
        %v1476 = vor.u32 %v1474, %v1472
        %v1478 = vshll.u32 %v1398, 16
        %v1480 = vrot.slane %v1478, 1
        %v1481 = vsel %vm1405, %v1476, %v1480
        %v1482 = vshrl.u32 %v1398, 16
        %v1484 = vor.u32 %v1482, %v1480
        %v1486 = vshll.u32 %v1399, 16
        %v1488 = vrot.slane %v1486, 1
        %v1489 = vsel %vm1405, %v1484, %v1488
        %v1490 = vshrl.u32 %v1399, 16
        %v1492 = vor.u32 %v1490, %v1488
        %v1494 = vshll.u32 %v1400, 16
        %v1496 = vrot.slane %v1494, 1
        %v1497 = vsel %vm1405, %v1492, %v1496
        %v1498 = vshrl.u32 %v1400, 16
        %v1500 = vor.u32 %v1498, %v1496
        %v1502 = vshll.u32 %v1401, 16
        %v1504 = vrot.slane %v1502, 1
        %v1505 = vsel %vm1405, %v1500, %v1504
        %v1506 = vshrl.u32 %v1401, 16
        %v1508 = vor.u32 %v1506, %v1504
        %v1510 = vshll.u32 %v1402, 16
        %v1512 = vrot.slane %v1510, 1
        %v1513 = vsel %vm1405, %v1508, %v1512
        %v1514 = vshrl.u32 %v1402, 16
        %v1516 = vor.u32 %v1514, %v1512
        %v1518 = vshll.u32 %v1403, 16
        %v1520 = vrot.slane %v1518, 1
        %v1521 = vsel %vm1405, %v1516, %v1520
        %v1522 = vshrl.u32 %v1403, 16
        %v1524 = vor.u32 %v1522, %v1520
        %v1526 = vshll.u32 %v1404, 16
        %v1528 = vrot.slane %v1526, 1
        %v1529 = vsel %vm1405, %v1524, %v1528
        %v1530 = vshrl.u32 %v1404, 16
        %v1532 = vor.u32 %v1530, %v1528
        %vm1533 = vcmp.ne.s16.totalorder %v1417, 0
        %vm1534 = vcmp.ne.s16.totalorder %v1425, 0
        %vm1535 = vcmp.ne.s16.totalorder %v1433, 0
        %vm1536 = vcmp.ne.s16.totalorder %v1441, 0
        %vm1537 = vcmp.ne.s16.totalorder %v1449, 0
        %vm1538 = vcmp.ne.s16.totalorder %v1457, 0
        %vm1539 = vcmp.ne.s16.totalorder %v1465, 0
        %vm1540 = vcmp.ne.s16.totalorder %v1473, 0
        %vm1541 = vcmp.ne.s16.totalorder %v1481, 0
        %vm1542 = vcmp.ne.s16.totalorder %v1489, 0
        %vm1543 = vcmp.ne.s16.totalorder %v1497, 0
        %vm1544 = vcmp.ne.s16.totalorder %v1505, 0
        %vm1545 = vcmp.ne.s16.totalorder %v1513, 0
        %vm1546 = vcmp.ne.s16.totalorder %v1521, 0
        %vm1547 = vcmp.ne.s16.totalorder %v1529, 0
        %vm1548 = vcmp.ne.s16.totalorder %v1532, 0
        %v1549 = vsel %vm1533, %v736, 0
        %v1550 = vsel %vm1534, %v737, 0
        %v1551 = vsel %vm1535, %v738, 0
        %v1552 = vsel %vm1536, %v739, 0
        %v1553 = vsel %vm1537, %v740, 0
        %v1554 = vsel %vm1538, %v741, 0
        %v1555 = vsel %vm1539, %v742, 0
        %v1556 = vsel %vm1540, %v743, 0
        %v1557 = vsel %vm1541, %v744, 0
        %v1558 = vsel %vm1542, %v745, 0
        %v1559 = vsel %vm1543, %v746, 0
        %v1560 = vsel %vm1544, %v747, 0
        %v1561 = vsel %vm1545, %v748, 0
        %v1562 = vsel %vm1546, %v749, 0
        %v1563 = vsel %vm1547, %v750, 0
        %v1564 = vsel %vm1548, %v751, 0
        %v1566 = vshrl.u32 %v1549, 16
        %v1568 = vrot.slane %v1566, 7
        %v1569 = vshll.u32 %v1549, 16
        %v1571 = vor.u32 %v1568, %v1569
        %v1573 = vshrl.u32 %v1550, 16
        %v1575 = vrot.slane %v1573, 7
        %v1576 = vshll.u32 %v1550, 16
        %v1578 = vor.u32 %v1575, %v1576
        %v1579 = vsel %vm1192, %v1568, %v1578
        %v1581 = vshrl.u32 %v1551, 16
        %v1583 = vrot.slane %v1581, 7
        %v1584 = vshll.u32 %v1551, 16
        %v1586 = vor.u32 %v1583, %v1584
        %v1587 = vsel %vm1192, %v1575, %v1586
        %v1589 = vshrl.u32 %v1552, 16
        %v1591 = vrot.slane %v1589, 7
        %v1592 = vshll.u32 %v1552, 16
        %v1594 = vor.u32 %v1591, %v1592
        %v1595 = vsel %vm1192, %v1583, %v1594
        %v1597 = vshrl.u32 %v1553, 16
        %v1599 = vrot.slane %v1597, 7
        %v1600 = vshll.u32 %v1553, 16
        %v1602 = vor.u32 %v1599, %v1600
        %v1603 = vsel %vm1192, %v1591, %v1602
        %v1605 = vshrl.u32 %v1554, 16
        %v1607 = vrot.slane %v1605, 7
        %v1608 = vshll.u32 %v1554, 16
        %v1610 = vor.u32 %v1607, %v1608
        %v1611 = vsel %vm1192, %v1599, %v1610
        %v1613 = vshrl.u32 %v1555, 16
        %v1615 = vrot.slane %v1613, 7
        %v1616 = vshll.u32 %v1555, 16
        %v1618 = vor.u32 %v1615, %v1616
        %v1619 = vsel %vm1192, %v1607, %v1618
        %v1621 = vshrl.u32 %v1556, 16
        %v1623 = vrot.slane %v1621, 7
        %v1624 = vshll.u32 %v1556, 16
        %v1626 = vor.u32 %v1623, %v1624
        %v1627 = vsel %vm1192, %v1615, %v1626
        %v1629 = vshrl.u32 %v1557, 16
        %v1631 = vrot.slane %v1629, 7
        %v1632 = vshll.u32 %v1557, 16
        %v1634 = vor.u32 %v1631, %v1632
        %v1635 = vsel %vm1192, %v1623, %v1634
        %v1637 = vshrl.u32 %v1558, 16
        %v1639 = vrot.slane %v1637, 7
        %v1640 = vshll.u32 %v1558, 16
        %v1642 = vor.u32 %v1639, %v1640
        %v1643 = vsel %vm1192, %v1631, %v1642
        %v1645 = vshrl.u32 %v1559, 16
        %v1647 = vrot.slane %v1645, 7
        %v1648 = vshll.u32 %v1559, 16
        %v1650 = vor.u32 %v1647, %v1648
        %v1651 = vsel %vm1192, %v1639, %v1650
        %v1653 = vshrl.u32 %v1560, 16
        %v1655 = vrot.slane %v1653, 7
        %v1656 = vshll.u32 %v1560, 16
        %v1658 = vor.u32 %v1655, %v1656
        %v1659 = vsel %vm1192, %v1647, %v1658
        %v1661 = vshrl.u32 %v1561, 16
        %v1663 = vrot.slane %v1661, 7
        %v1664 = vshll.u32 %v1561, 16
        %v1666 = vor.u32 %v1663, %v1664
        %v1667 = vsel %vm1192, %v1655, %v1666
        %v1669 = vshrl.u32 %v1562, 16
        %v1671 = vrot.slane %v1669, 7
        %v1672 = vshll.u32 %v1562, 16
        %v1674 = vor.u32 %v1671, %v1672
        %v1675 = vsel %vm1192, %v1663, %v1674
        %v1677 = vshrl.u32 %v1563, 16
        %v1679 = vrot.slane %v1677, 7
        %v1680 = vshll.u32 %v1563, 16
        %v1682 = vor.u32 %v1679, %v1680
        %v1683 = vsel %vm1192, %v1671, %v1682
        %v1685 = vshrl.u32 %v1564, 16
        %v1687 = vrot.slane %v1685, 7
        %v1688 = vshll.u32 %v1564, 16
        %v1690 = vor.u32 %v1687, %v1688
        %v1691 = vsel %vm1192, %v1679, %v1690
        %vm1708 = vcmask 1047552
        %vm1709 = vsmask.f32 7938
        %vm1710 = vmand %vm1708, %vm1709
        %v1711 = vld [vmem:[#allocation2 + $0x18] sm:$0xff]
        %v1712 = vsel %vm1710, %v1571, %v1711
        %1713 = vst [vmem:[#allocation2 + $0x18] sm:$0xff] %v1712
        %1714 = vst [vmem:[#allocation2 + $0x30] sm:$0xff] %v1579
        %1715 = vst [vmem:[#allocation2 + $0x48] sm:$0xff] %v1587
        %1716 = vst [vmem:[#allocation2 + $0x60] sm:$0xff] %v1595
        %1717 = vst [vmem:[#allocation2 + $0x78] sm:$0xff] %v1603
        %1718 = vst [vmem:[#allocation2 + $0x90] sm:$0xff] %v1611
        %1719 = vst [vmem:[#allocation2 + $0xa8] sm:$0xff] %v1619
        %1720 = vst [vmem:[#allocation2 + $0xc0] sm:$0xff] %v1627
        %1721 = vst [vmem:[#allocation2 + $0xd8] sm:$0xff] %v1635
        %1722 = vst [vmem:[#allocation2 + $0xf0] sm:$0xff] %v1643
        %1723 = vst [vmem:[#allocation2 + $0x108] sm:$0xff] %v1651
        %1724 = vst [vmem:[#allocation2 + $0x120] sm:$0xff] %v1659
        %1725 = vst [vmem:[#allocation2 + $0x138] sm:$0xff] %v1667
        %1726 = vst [vmem:[#allocation2 + $0x150] sm:$0xff] %v1675
        %1727 = vst [vmem:[#allocation2 + $0x168] sm:$0xff] %v1683
        %1728 = vst [vmem:[#allocation2 + $0x180] sm:$0xff] %v1691
        %vm1729 = vcmp.le.s32.totalorder %v1137, 14
        %vm1730 = vcmp.le.s32.totalorder %v1138, 14
        %vm1731 = vcmp.le.s32.totalorder %v1139, 14
        %vm1732 = vcmp.le.s32.totalorder %v1140, 14
        %vm1733 = vcmp.le.s32.totalorder %v1141, 14
        %vm1734 = vcmp.le.s32.totalorder %v1142, 14
        %vm1735 = vcmp.le.s32.totalorder %v1143, 14
        %vm1736 = vcmp.le.s32.totalorder %v1144, 14
        %vm1737 = vcmp.le.s32.totalorder %v1145, 14
        %vm1738 = vcmp.le.s32.totalorder %v1146, 14
        %vm1739 = vcmp.le.s32.totalorder %v1147, 14
        %vm1740 = vcmp.le.s32.totalorder %v1148, 14
        %vm1741 = vcmp.le.s32.totalorder %v1149, 14
        %vm1742 = vcmp.le.s32.totalorder %v1150, 14
        %vm1743 = vcmp.le.s32.totalorder %v1151, 14
        %vm1744 = vcmp.le.s32.totalorder %v1152, 14
        %vm1745 = vcmp.le.s32.totalorder %v1153, 14
        %vm1746 = vcmp.le.s32.totalorder %v1154, 14
        %vm1747 = vcmp.le.s32.totalorder %v1155, 14
        %vm1748 = vcmp.le.s32.totalorder %v1156, 14
        %vm1749 = vcmp.le.s32.totalorder %v1157, 14
        %vm1750 = vcmp.le.s32.totalorder %v1158, 14
        %vm1751 = vcmp.le.s32.totalorder %v1159, 14
        %vm1752 = vcmp.le.s32.totalorder %v1160, 14
        %vm1753 = vcmp.le.s32.totalorder %v1161, 14
        %vm1754 = vcmp.le.s32.totalorder %v1162, 14
        %vm1755 = vcmp.le.s32.totalorder %v1163, 14
        %vm1756 = vcmp.le.s32.totalorder %v1164, 14
        %vm1757 = vcmp.le.s32.totalorder %v1165, 14
        %vm1758 = vcmp.le.s32.totalorder %v1166, 14
        %vm1759 = vcmp.le.s32.totalorder %v1167, 14
        %vm1760 = vcmp.le.s32.totalorder %v1168, 14
        %v1761 = vsel %vm1729, 1, 0
        %v1762 = vsel %vm1730, 1, 0
        %v1763 = vsel %vm1731, 1, 0
        %v1764 = vsel %vm1732, 1, 0
        %v1765 = vsel %vm1733, 1, 0
        %v1766 = vsel %vm1734, 1, 0
        %v1767 = vsel %vm1735, 1, 0
        %v1768 = vsel %vm1736, 1, 0
        %v1769 = vsel %vm1737, 1, 0
        %v1770 = vsel %vm1738, 1, 0
        %v1771 = vsel %vm1739, 1, 0
        %v1772 = vsel %vm1740, 1, 0
        %v1773 = vsel %vm1741, 1, 0
        %v1774 = vsel %vm1742, 1, 0
        %v1775 = vsel %vm1743, 1, 0
        %v1776 = vsel %vm1744, 1, 0
        %v1777 = vsel %vm1745, 1, 0
        %v1778 = vsel %vm1746, 1, 0
        %v1779 = vsel %vm1747, 1, 0
        %v1780 = vsel %vm1748, 1, 0
        %v1781 = vsel %vm1749, 1, 0
        %v1782 = vsel %vm1750, 1, 0
        %v1783 = vsel %vm1751, 1, 0
        %v1784 = vsel %vm1752, 1, 0
        %v1785 = vsel %vm1753, 1, 0
        %v1786 = vsel %vm1754, 1, 0
        %v1787 = vsel %vm1755, 1, 0
        %v1788 = vsel %vm1756, 1, 0
        %v1789 = vsel %vm1757, 1, 0
        %v1790 = vsel %vm1758, 1, 0
        %v1791 = vsel %vm1759, 1, 0
        %v1792 = vsel %vm1760, 1, 0
        %vm1793 = vcmp.eq.s32.totalorder %v1761, 1
        %vm1794 = vcmp.eq.s32.totalorder %v1762, 1
        %vm1795 = vcmp.eq.s32.totalorder %v1763, 1
        %vm1796 = vcmp.eq.s32.totalorder %v1764, 1
        %vm1797 = vcmp.eq.s32.totalorder %v1765, 1
        %vm1798 = vcmp.eq.s32.totalorder %v1766, 1
        %vm1799 = vcmp.eq.s32.totalorder %v1767, 1
        %vm1800 = vcmp.eq.s32.totalorder %v1768, 1
        %vm1801 = vcmp.eq.s32.totalorder %v1769, 1
        %vm1802 = vcmp.eq.s32.totalorder %v1770, 1
        %vm1803 = vcmp.eq.s32.totalorder %v1771, 1
        %vm1804 = vcmp.eq.s32.totalorder %v1772, 1
        %vm1805 = vcmp.eq.s32.totalorder %v1773, 1
        %vm1806 = vcmp.eq.s32.totalorder %v1774, 1
        %vm1807 = vcmp.eq.s32.totalorder %v1775, 1
        %vm1808 = vcmp.eq.s32.totalorder %v1776, 1
        %vm1809 = vcmp.eq.s32.totalorder %v1777, 1
        %vm1810 = vcmp.eq.s32.totalorder %v1778, 1
        %vm1811 = vcmp.eq.s32.totalorder %v1779, 1
        %vm1812 = vcmp.eq.s32.totalorder %v1780, 1
        %vm1813 = vcmp.eq.s32.totalorder %v1781, 1
        %vm1814 = vcmp.eq.s32.totalorder %v1782, 1
        %vm1815 = vcmp.eq.s32.totalorder %v1783, 1
        %vm1816 = vcmp.eq.s32.totalorder %v1784, 1
        %vm1817 = vcmp.eq.s32.totalorder %v1785, 1
        %vm1818 = vcmp.eq.s32.totalorder %v1786, 1
        %vm1819 = vcmp.eq.s32.totalorder %v1787, 1
        %vm1820 = vcmp.eq.s32.totalorder %v1788, 1
        %vm1821 = vcmp.eq.s32.totalorder %v1789, 1
        %vm1822 = vcmp.eq.s32.totalorder %v1790, 1
        %vm1823 = vcmp.eq.s32.totalorder %v1791, 1
        %vm1824 = vcmp.eq.s32.totalorder %v1792, 1
        %vm1825 = vmpackc.low %vm1793, %vm1793
        %vm1826 = vmpackc.low %vm1794, %vm1794
        %vm1827 = vmpackc.low %vm1795, %vm1795
        %vm1828 = vmpackc.low %vm1796, %vm1796
        %vm1829 = vmpackc.low %vm1797, %vm1797
        %vm1830 = vmpackc.low %vm1798, %vm1798
        %vm1831 = vmpackc.low %vm1799, %vm1799
        %vm1832 = vmpackc.low %vm1800, %vm1800
        %vm1833 = vmpackc.low %vm1801, %vm1801
        %vm1834 = vmpackc.low %vm1802, %vm1802
        %vm1835 = vmpackc.low %vm1803, %vm1803
        %vm1836 = vmpackc.low %vm1804, %vm1804
        %vm1837 = vmpackc.low %vm1805, %vm1805
        %vm1838 = vmpackc.low %vm1806, %vm1806
        %vm1839 = vmpackc.low %vm1807, %vm1807
        %vm1840 = vmpackc.low %vm1808, %vm1808
        %vm1841 = vmpackc.low %vm1809, %vm1809
        %vm1842 = vmpackc.low %vm1810, %vm1810
        %vm1843 = vmpackc.low %vm1811, %vm1811
        %vm1844 = vmpackc.low %vm1812, %vm1812
        %vm1845 = vmpackc.low %vm1813, %vm1813
        %vm1846 = vmpackc.low %vm1814, %vm1814
        %vm1847 = vmpackc.low %vm1815, %vm1815
        %vm1848 = vmpackc.low %vm1816, %vm1816
        %vm1849 = vmpackc.low %vm1817, %vm1817
        %vm1850 = vmpackc.low %vm1818, %vm1818
        %vm1851 = vmpackc.low %vm1819, %vm1819
        %vm1852 = vmpackc.low %vm1820, %vm1820
        %vm1853 = vmpackc.low %vm1821, %vm1821
        %vm1854 = vmpackc.low %vm1822, %vm1822
        %vm1855 = vmpackc.low %vm1823, %vm1823
        %vm1856 = vmpackc.low %vm1824, %vm1824
        %v1857 = vsel %vm1825, 65537, 0
        %v1858 = vsel %vm1826, 65537, 0
        %v1859 = vsel %vm1827, 65537, 0
        %v1860 = vsel %vm1828, 65537, 0
        %v1861 = vsel %vm1829, 65537, 0
        %v1862 = vsel %vm1830, 65537, 0
        %v1863 = vsel %vm1831, 65537, 0
        %v1864 = vsel %vm1832, 65537, 0
        %v1865 = vsel %vm1833, 65537, 0
        %v1866 = vsel %vm1834, 65537, 0
        %v1867 = vsel %vm1835, 65537, 0
        %v1868 = vsel %vm1836, 65537, 0
        %v1869 = vsel %vm1837, 65537, 0
        %v1870 = vsel %vm1838, 65537, 0
        %v1871 = vsel %vm1839, 65537, 0
        %v1872 = vsel %vm1840, 65537, 0
        %v1873 = vsel %vm1841, 65537, 0
        %v1874 = vsel %vm1842, 65537, 0
        %v1875 = vsel %vm1843, 65537, 0
        %v1876 = vsel %vm1844, 65537, 0
        %v1877 = vsel %vm1845, 65537, 0
        %v1878 = vsel %vm1846, 65537, 0
        %v1879 = vsel %vm1847, 65537, 0
        %v1880 = vsel %vm1848, 65537, 0
        %v1881 = vsel %vm1849, 65537, 0
        %v1882 = vsel %vm1850, 65537, 0
        %v1883 = vsel %vm1851, 65537, 0
        %v1884 = vsel %vm1852, 65537, 0
        %v1885 = vsel %vm1853, 65537, 0
        %v1886 = vsel %vm1854, 65537, 0
        %v1887 = vsel %vm1855, 65537, 0
        %v1888 = vsel %vm1856, 65537, 0
        %v1889 = vunpack.c.l.b16 %v1857
        %v1890 = vunpack.c.l.b16 %v1858
        %v1891 = vunpack.c.l.b16 %v1859
        %v1892 = vunpack.c.l.b16 %v1860
        %v1893 = vunpack.c.l.b16 %v1861
        %v1894 = vunpack.c.l.b16 %v1862
        %v1895 = vunpack.c.l.b16 %v1863
        %v1896 = vunpack.c.l.b16 %v1864
        %v1897 = vunpack.c.l.b16 %v1865
        %v1898 = vunpack.c.l.b16 %v1866
        %v1899 = vunpack.c.l.b16 %v1867
        %v1900 = vunpack.c.l.b16 %v1868
        %v1901 = vunpack.c.l.b16 %v1869
        %v1902 = vunpack.c.l.b16 %v1870
        %v1903 = vunpack.c.l.b16 %v1871
        %v1904 = vunpack.c.l.b16 %v1872
        %v1905 = vunpack.c.l.b16 %v1873
        %v1906 = vunpack.c.l.b16 %v1874
        %v1907 = vunpack.c.l.b16 %v1875
        %v1908 = vunpack.c.l.b16 %v1876
        %v1909 = vunpack.c.l.b16 %v1877
        %v1910 = vunpack.c.l.b16 %v1878
        %v1911 = vunpack.c.l.b16 %v1879
        %v1912 = vunpack.c.l.b16 %v1880
        %v1913 = vunpack.c.l.b16 %v1881
        %v1914 = vunpack.c.l.b16 %v1882
        %v1915 = vunpack.c.l.b16 %v1883
        %v1916 = vunpack.c.l.b16 %v1884
        %v1917 = vunpack.c.l.b16 %v1885
        %v1918 = vunpack.c.l.b16 %v1886
        %v1919 = vunpack.c.l.b16 %v1887
        %v1920 = vunpack.c.l.b16 %v1888
        %v1921 = vpack.c.b16 %v1890, %v1889
        %v1922 = vpack.c.b16 %v1892, %v1891
        %v1923 = vpack.c.b16 %v1894, %v1893
        %v1924 = vpack.c.b16 %v1896, %v1895
        %v1925 = vpack.c.b16 %v1898, %v1897
        %v1926 = vpack.c.b16 %v1900, %v1899
        %v1927 = vpack.c.b16 %v1902, %v1901
        %v1928 = vpack.c.b16 %v1904, %v1903
        %v1929 = vpack.c.b16 %v1906, %v1905
        %v1930 = vpack.c.b16 %v1908, %v1907
        %v1931 = vpack.c.b16 %v1910, %v1909
        %v1932 = vpack.c.b16 %v1912, %v1911
        %v1933 = vpack.c.b16 %v1914, %v1913
        %v1934 = vpack.c.b16 %v1916, %v1915
        %v1935 = vpack.c.b16 %v1918, %v1917
        %v1936 = vpack.c.b16 %v1920, %v1919
        %v1938 = vshrl.u32 %v1921, 16
        %v1940 = vrot.slane %v1938, 7
        %v1941 = vshll.u32 %v1921, 16
        %v1943 = vor.u32 %v1940, %v1941
        %v1945 = vshrl.u32 %v1922, 16
        %v1947 = vrot.slane %v1945, 7
        %v1948 = vshll.u32 %v1922, 16
        %v1950 = vor.u32 %v1947, %v1948
        %v1951 = vsel %vm1192, %v1940, %v1950
        %v1953 = vshrl.u32 %v1923, 16
        %v1955 = vrot.slane %v1953, 7
        %v1956 = vshll.u32 %v1923, 16
        %v1958 = vor.u32 %v1955, %v1956
        %v1959 = vsel %vm1192, %v1947, %v1958
        %v1961 = vshrl.u32 %v1924, 16
        %v1963 = vrot.slane %v1961, 7
        %v1964 = vshll.u32 %v1924, 16
        %v1966 = vor.u32 %v1963, %v1964
        %v1967 = vsel %vm1192, %v1955, %v1966
        %v1969 = vshrl.u32 %v1925, 16
        %v1971 = vrot.slane %v1969, 7
        %v1972 = vshll.u32 %v1925, 16
        %v1974 = vor.u32 %v1971, %v1972
        %v1975 = vsel %vm1192, %v1963, %v1974
        %v1977 = vshrl.u32 %v1926, 16
        %v1979 = vrot.slane %v1977, 7
        %v1980 = vshll.u32 %v1926, 16
        %v1982 = vor.u32 %v1979, %v1980
        %v1983 = vsel %vm1192, %v1971, %v1982
        %v1985 = vshrl.u32 %v1927, 16
        %v1987 = vrot.slane %v1985, 7
        %v1988 = vshll.u32 %v1927, 16
        %v1990 = vor.u32 %v1987, %v1988
        %v1991 = vsel %vm1192, %v1979, %v1990
        %v1993 = vshrl.u32 %v1928, 16
        %v1995 = vrot.slane %v1993, 7
        %v1996 = vshll.u32 %v1928, 16
        %v1998 = vor.u32 %v1995, %v1996
        %v1999 = vsel %vm1192, %v1987, %v1998
        %v2001 = vshrl.u32 %v1929, 16
        %v2003 = vrot.slane %v2001, 7
        %v2004 = vshll.u32 %v1929, 16
        %v2006 = vor.u32 %v2003, %v2004
        %v2007 = vsel %vm1192, %v1995, %v2006
        %v2009 = vshrl.u32 %v1930, 16
        %v2011 = vrot.slane %v2009, 7
        %v2012 = vshll.u32 %v1930, 16
        %v2014 = vor.u32 %v2011, %v2012
        %v2015 = vsel %vm1192, %v2003, %v2014
        %v2017 = vshrl.u32 %v1931, 16
        %v2019 = vrot.slane %v2017, 7
        %v2020 = vshll.u32 %v1931, 16
        %v2022 = vor.u32 %v2019, %v2020
        %v2023 = vsel %vm1192, %v2011, %v2022
        %v2025 = vshrl.u32 %v1932, 16
        %v2027 = vrot.slane %v2025, 7
        %v2028 = vshll.u32 %v1932, 16
        %v2030 = vor.u32 %v2027, %v2028
        %v2031 = vsel %vm1192, %v2019, %v2030
        %v2033 = vshrl.u32 %v1933, 16
        %v2035 = vrot.slane %v2033, 7
        %v2036 = vshll.u32 %v1933, 16
        %v2038 = vor.u32 %v2035, %v2036
        %v2039 = vsel %vm1192, %v2027, %v2038
        %v2041 = vshrl.u32 %v1934, 16
        %v2043 = vrot.slane %v2041, 7
        %v2044 = vshll.u32 %v1934, 16
        %v2046 = vor.u32 %v2043, %v2044
        %v2047 = vsel %vm1192, %v2035, %v2046
        %v2049 = vshrl.u32 %v1935, 16
        %v2051 = vrot.slane %v2049, 7
        %v2052 = vshll.u32 %v1935, 16
        %v2054 = vor.u32 %v2051, %v2052
        %v2055 = vsel %vm1192, %v2043, %v2054
        %v2057 = vshrl.u32 %v1936, 16
        %v2059 = vrot.slane %v2057, 7
        %v2060 = vshll.u32 %v1936, 16
        %v2062 = vor.u32 %v2059, %v2060
        %v2063 = vsel %vm1192, %v2051, %v2062
        %vm2064 = vcmp.ne.s16.totalorder %v1943, 0
        %vm2065 = vcmp.ne.s16.totalorder %v1951, 0
        %vm2066 = vcmp.ne.s16.totalorder %v1959, 0
        %vm2067 = vcmp.ne.s16.totalorder %v1967, 0
        %vm2068 = vcmp.ne.s16.totalorder %v1975, 0
        %vm2069 = vcmp.ne.s16.totalorder %v1983, 0
        %vm2070 = vcmp.ne.s16.totalorder %v1991, 0
        %vm2071 = vcmp.ne.s16.totalorder %v1999, 0
        %vm2072 = vcmp.ne.s16.totalorder %v2007, 0
        %vm2073 = vcmp.ne.s16.totalorder %v2015, 0
        %vm2074 = vcmp.ne.s16.totalorder %v2023, 0
        %vm2075 = vcmp.ne.s16.totalorder %v2031, 0
        %vm2076 = vcmp.ne.s16.totalorder %v2039, 0
        %vm2077 = vcmp.ne.s16.totalorder %v2047, 0
        %vm2078 = vcmp.ne.s16.totalorder %v2055, 0
        %vm2079 = vcmp.ne.s16.totalorder %v2063, 0
        %v2080 = vsel %vm2064, %v736, 0
        %v2081 = vsel %vm2065, %v737, 0
        %v2082 = vsel %vm2066, %v738, 0
        %v2083 = vsel %vm2067, %v739, 0
        %v2084 = vsel %vm2068, %v740, 0
        %v2085 = vsel %vm2069, %v741, 0
        %v2086 = vsel %vm2070, %v742, 0
        %v2087 = vsel %vm2071, %v743, 0
        %v2088 = vsel %vm2072, %v744, 0
        %v2089 = vsel %vm2073, %v745, 0
        %v2090 = vsel %vm2074, %v746, 0
        %v2091 = vsel %vm2075, %v747, 0
        %v2092 = vsel %vm2076, %v748, 0
        %v2093 = vsel %vm2077, %v749, 0
        %v2094 = vsel %vm2078, %v750, 0
        %v2095 = vsel %vm2079, %v751, 0
        %v2097 = vshrl.u32 %v2080, 16
        %v2099 = vshll.u32 %v2080, 16
        %v2101 = vrot.slane %v2099, 1
        %v2102 = vor.u32 %v2097, %v2101
        %v2104 = vshll.u32 %v2081, 16
        %v2106 = vrot.slane %v2104, 1
        %v2107 = vsel %vm1405, %v2102, %v2106
        %v2108 = vshrl.u32 %v2081, 16
        %v2110 = vor.u32 %v2108, %v2106
        %v2112 = vshll.u32 %v2082, 16
        %v2114 = vrot.slane %v2112, 1
        %v2115 = vsel %vm1405, %v2110, %v2114
        %v2116 = vshrl.u32 %v2082, 16
        %v2118 = vor.u32 %v2116, %v2114
        %v2120 = vshll.u32 %v2083, 16
        %v2122 = vrot.slane %v2120, 1
        %v2123 = vsel %vm1405, %v2118, %v2122
        %v2124 = vshrl.u32 %v2083, 16
        %v2126 = vor.u32 %v2124, %v2122
        %v2128 = vshll.u32 %v2084, 16
        %v2130 = vrot.slane %v2128, 1
        %v2131 = vsel %vm1405, %v2126, %v2130
        %v2132 = vshrl.u32 %v2084, 16
        %v2134 = vor.u32 %v2132, %v2130
        %v2136 = vshll.u32 %v2085, 16
        %v2138 = vrot.slane %v2136, 1
        %v2139 = vsel %vm1405, %v2134, %v2138
        %v2140 = vshrl.u32 %v2085, 16
        %v2142 = vor.u32 %v2140, %v2138
        %v2144 = vshll.u32 %v2086, 16
        %v2146 = vrot.slane %v2144, 1
        %v2147 = vsel %vm1405, %v2142, %v2146
        %v2148 = vshrl.u32 %v2086, 16
        %v2150 = vor.u32 %v2148, %v2146
        %v2152 = vshll.u32 %v2087, 16
        %v2154 = vrot.slane %v2152, 1
        %v2155 = vsel %vm1405, %v2150, %v2154
        %v2156 = vshrl.u32 %v2087, 16
        %v2158 = vor.u32 %v2156, %v2154
        %v2160 = vshll.u32 %v2088, 16
        %v2162 = vrot.slane %v2160, 1
        %v2163 = vsel %vm1405, %v2158, %v2162
        %v2164 = vshrl.u32 %v2088, 16
        %v2166 = vor.u32 %v2164, %v2162
        %v2168 = vshll.u32 %v2089, 16
        %v2170 = vrot.slane %v2168, 1
        %v2171 = vsel %vm1405, %v2166, %v2170
        %v2172 = vshrl.u32 %v2089, 16
        %v2174 = vor.u32 %v2172, %v2170
        %v2176 = vshll.u32 %v2090, 16
        %v2178 = vrot.slane %v2176, 1
        %v2179 = vsel %vm1405, %v2174, %v2178
        %v2180 = vshrl.u32 %v2090, 16
        %v2182 = vor.u32 %v2180, %v2178
        %v2184 = vshll.u32 %v2091, 16
        %v2186 = vrot.slane %v2184, 1
        %v2187 = vsel %vm1405, %v2182, %v2186
        %v2188 = vshrl.u32 %v2091, 16
        %v2190 = vor.u32 %v2188, %v2186
        %v2192 = vshll.u32 %v2092, 16
        %v2194 = vrot.slane %v2192, 1
        %v2195 = vsel %vm1405, %v2190, %v2194
        %v2196 = vshrl.u32 %v2092, 16
        %v2198 = vor.u32 %v2196, %v2194
        %v2200 = vshll.u32 %v2093, 16
        %v2202 = vrot.slane %v2200, 1
        %v2203 = vsel %vm1405, %v2198, %v2202
        %v2204 = vshrl.u32 %v2093, 16
        %v2206 = vor.u32 %v2204, %v2202
        %v2208 = vshll.u32 %v2094, 16
        %v2210 = vrot.slane %v2208, 1
        %v2211 = vsel %vm1405, %v2206, %v2210
        %v2212 = vshrl.u32 %v2094, 16
        %v2214 = vor.u32 %v2212, %v2210
        %v2216 = vshll.u32 %v2095, 16
        %v2218 = vrot.slane %v2216, 1
        %v2219 = vsel %vm1405, %v2214, %v2218
        %v2220 = vshrl.u32 %v2095, 16
        %v2222 = vor.u32 %v2220, %v2218
        %2239 = vst [vmem:[#allocation2 + $0x28] sm:$0xff] %v2107
        %2240 = vst [vmem:[#allocation2 + $0x40] sm:$0xff] %v2115
        %2241 = vst [vmem:[#allocation2 + $0x58] sm:$0xff] %v2123
        %2242 = vst [vmem:[#allocation2 + $0x70] sm:$0xff] %v2131
        %2243 = vst [vmem:[#allocation2 + $0x88] sm:$0xff] %v2139
        %2244 = vst [vmem:[#allocation2 + $0xa0] sm:$0xff] %v2147
        %2245 = vst [vmem:[#allocation2 + $0xb8] sm:$0xff] %v2155
        %2246 = vst [vmem:[#allocation2 + $0xd0] sm:$0xff] %v2163
        %2247 = vst [vmem:[#allocation2 + $0xe8] sm:$0xff] %v2171
        %2248 = vst [vmem:[#allocation2 + $0x100] sm:$0xff] %v2179
        %2249 = vst [vmem:[#allocation2 + $0x118] sm:$0xff] %v2187
        %2250 = vst [vmem:[#allocation2 + $0x130] sm:$0xff] %v2195
        %2251 = vst [vmem:[#allocation2 + $0x148] sm:$0xff] %v2203
        %2252 = vst [vmem:[#allocation2 + $0x160] sm:$0xff] %v2211
        %2253 = vst [vmem:[#allocation2 + $0x178] sm:$0xff] %v2219
        %vm2254 = vmand %vm1708, %vm1405
        %v2255 = vld [vmem:[#allocation2 + $0x190] sm:$0xff]
        %v2256 = vsel %vm2254, %v2222, %v2255
        %2257 = vst [vmem:[#allocation2 + $0x190] sm:$0xff] %v2256
        %vm2258 = vcmask 1047559
        %vm2259 = vsmask.f32 7966
        %vm2260 = vmand %vm2258, %vm2259
        %v2261 = vld [vmem:[#allocation2 + $0x190] sm:$0x80]
        %v2262 = vsel %vm2260, 0, %v2261
        %2263 = vst [vmem:[#allocation2 + $0x190] sm:$0x80] %v2262
        %v2264 = vld [vmem:[#allocation2] sm:$0xff]
        %v2265 = vld [vmem:[#allocation2 + $0x8] sm:$0xff]
        %v2266 = vld [vmem:[#allocation2 + $0x10] sm:$0xff]
        %v2267 = vld [vmem:[#allocation2 + $0x18] sm:$0xff]
        %v2268 = vld [vmem:[#allocation2 + $0x20] sm:$0xff]
        %v2269 = vld [vmem:[#allocation2 + $0x28] sm:$0xff]
        %v2270 = vld [vmem:[#allocation2 + $0x30] sm:$0xff]
        %v2271 = vld [vmem:[#allocation2 + $0x38] sm:$0xff]
        %v2272 = vld [vmem:[#allocation2 + $0x40] sm:$0xff]
        %v2273 = vld [vmem:[#allocation2 + $0x48] sm:$0xff]
        %v2274 = vld [vmem:[#allocation2 + $0x50] sm:$0xff]
        %v2275 = vld [vmem:[#allocation2 + $0x58] sm:$0xff]
        %v2276 = vld [vmem:[#allocation2 + $0x60] sm:$0xff]
        %v2277 = vld [vmem:[#allocation2 + $0x68] sm:$0xff]
        %v2278 = vld [vmem:[#allocation2 + $0x70] sm:$0xff]
        %v2279 = vld [vmem:[#allocation2 + $0x78] sm:$0xff]
        %v2280 = vld [vmem:[#allocation2 + $0x80] sm:$0xff]
        %v2281 = vld [vmem:[#allocation2 + $0x88] sm:$0xff]
        %v2282 = vld [vmem:[#allocation2 + $0x90] sm:$0xff]
        %v2283 = vld [vmem:[#allocation2 + $0x98] sm:$0xff]
        %v2284 = vld [vmem:[#allocation2 + $0xa0] sm:$0xff]
        %v2285 = vld [vmem:[#allocation2 + $0xa8] sm:$0xff]
        %v2286 = vld [vmem:[#allocation2 + $0xb0] sm:$0xff]
        %v2287 = vld [vmem:[#allocation2 + $0xb8] sm:$0xff]
        %v2288 = vld [vmem:[#allocation2 + $0xc0] sm:$0xff]
        %v2289 = vld [vmem:[#allocation2 + $0xc8] sm:$0xff]
        %v2290 = vld [vmem:[#allocation2 + $0xd0] sm:$0xff]
        %v2291 = vld [vmem:[#allocation2 + $0xd8] sm:$0xff]
        %v2292 = vld [vmem:[#allocation2 + $0xe0] sm:$0xff]
        %v2293 = vld [vmem:[#allocation2 + $0xe8] sm:$0xff]
        %v2294 = vld [vmem:[#allocation2 + $0xf0] sm:$0xff]
        %v2295 = vld [vmem:[#allocation2 + $0xf8] sm:$0xff]
        %v2296 = vld [vmem:[#allocation2 + $0x100] sm:$0xff]
        %v2297 = vld [vmem:[#allocation2 + $0x108] sm:$0xff]
        %v2298 = vld [vmem:[#allocation2 + $0x110] sm:$0xff]
        %v2299 = vld [vmem:[#allocation2 + $0x118] sm:$0xff]
        %v2300 = vld [vmem:[#allocation2 + $0x120] sm:$0xff]
        %v2301 = vld [vmem:[#allocation2 + $0x128] sm:$0xff]
        %v2302 = vld [vmem:[#allocation2 + $0x130] sm:$0xff]
        %v2303 = vld [vmem:[#allocation2 + $0x138] sm:$0xff]
        %v2304 = vld [vmem:[#allocation2 + $0x140] sm:$0xff]
        %v2305 = vld [vmem:[#allocation2 + $0x148] sm:$0xff]
        %v2306 = vld [vmem:[#allocation2 + $0x150] sm:$0xff]
        %v2307 = vld [vmem:[#allocation2 + $0x158] sm:$0xff]
        %v2308 = vld [vmem:[#allocation2 + $0x160] sm:$0xff]
        %v2309 = vld [vmem:[#allocation2 + $0x168] sm:$0xff]
        %v2310 = vld [vmem:[#allocation2 + $0x170] sm:$0xff]
        %v2311 = vld [vmem:[#allocation2 + $0x178] sm:$0xff]
        %v2312 = vld [vmem:[#allocation8] sm:$0xf]
        %v2313 = vld [vmem:[#allocation8 + $0x4] sm:$0xf]
        %v2314 = vld [vmem:[#allocation8 + $0x8] sm:$0xf]
        %v2315 = vld [vmem:[#allocation8 + $0xc] sm:$0xf]
        %v2316 = vld [vmem:[#allocation8 + $0x10] sm:$0xf]
        %v2317 = vld [vmem:[#allocation8 + $0x14] sm:$0xf]
        %v2318 = vld [vmem:[#allocation8 + $0x18] sm:$0xf]
        %v2319 = vld [vmem:[#allocation8 + $0x1c] sm:$0xf]
        %v2320 = vld [vmem:[#allocation8 + $0x20] sm:$0xf]
        %v2321 = vld [vmem:[#allocation8 + $0x24] sm:$0xf]
        %v2322 = vld [vmem:[#allocation8 + $0x28] sm:$0xf]
        %v2323 = vld [vmem:[#allocation8 + $0x2c] sm:$0xf]
        %v2324 = vld [vmem:[#allocation8 + $0x30] sm:$0xf]
        %v2325 = vld [vmem:[#allocation8 + $0x34] sm:$0xf]
        %v2326 = vld [vmem:[#allocation8 + $0x38] sm:$0xf]
        %v2327 = vld [vmem:[#allocation8 + $0x3c] sm:$0xf]
        %v2328 = vld [vmem:[#allocation8 + $0x40] sm:$0xf]
        %v2329 = vld [vmem:[#allocation8 + $0x44] sm:$0xf]
        %v2330 = vld [vmem:[#allocation8 + $0x48] sm:$0xf]
        %v2331 = vld [vmem:[#allocation8 + $0x4c] sm:$0xf]
        %v2332 = vld [vmem:[#allocation8 + $0x50] sm:$0xf]
        %v2333 = vld [vmem:[#allocation8 + $0x54] sm:$0xf]
        %v2334 = vld [vmem:[#allocation8 + $0x58] sm:$0xf]
        %v2335 = vld [vmem:[#allocation8 + $0x5c] sm:$0xf]
        %v2336 = vld [vmem:[#allocation8 + $0x60] sm:$0xf]
        %v2337 = vld [vmem:[#allocation8 + $0x64] sm:$0xf]
        %v2338 = vld [vmem:[#allocation8 + $0x68] sm:$0xf]
        %v2339 = vld [vmem:[#allocation8 + $0x6c] sm:$0xf]
        %v2340 = vld [vmem:[#allocation8 + $0x70] sm:$0xf]
        %v2341 = vld [vmem:[#allocation8 + $0x74] sm:$0xf]
        %v2342 = vld [vmem:[#allocation8 + $0x78] sm:$0xf]
        %v2343 = vld [vmem:[#allocation8 + $0x7c] sm:$0xf]
        %v2344 = vld [vmem:[#allocation8 + $0x80] sm:$0xf]
        %v2345 = vld [vmem:[#allocation8 + $0x84] sm:$0xf]
        %v2346 = vld [vmem:[#allocation8 + $0x88] sm:$0xf]
        %v2347 = vld [vmem:[#allocation8 + $0x8c] sm:$0xf]
        %v2348 = vld [vmem:[#allocation8 + $0x90] sm:$0xf]
        %v2349 = vld [vmem:[#allocation8 + $0x94] sm:$0xf]
        %v2350 = vld [vmem:[#allocation8 + $0x98] sm:$0xf]
        %v2351 = vld [vmem:[#allocation8 + $0x9c] sm:$0xf]
        %v2352 = vld [vmem:[#allocation8 + $0xa0] sm:$0xf]
        %v2353 = vld [vmem:[#allocation8 + $0xa4] sm:$0xf]
        %v2354 = vld [vmem:[#allocation8 + $0xa8] sm:$0xf]
        %v2355 = vld [vmem:[#allocation8 + $0xac] sm:$0xf]
        %v2356 = vld [vmem:[#allocation8 + $0xb0] sm:$0xf]
        %v2357 = vld [vmem:[#allocation8 + $0xb4] sm:$0xf]
        %v2358 = vld [vmem:[#allocation8 + $0xb8] sm:$0xf]
        %v2359 = vld [vmem:[#allocation8 + $0xbc] sm:$0xf]
        %v2360 = vld [vmem:[#allocation2 + $0x180] sm:$0xff]
        %v2361 = vld [vmem:[#allocation2 + $0x188] sm:$0xff]
        %v2362 = vld [vmem:[#allocation2 + $0x190] sm:$0xff]
        %s2363 = scalar_lea.vmem [#allocation8], 192
        %v2364 = vld [vmem:[%s2363] sm:$0xf]
        %v2365 = vld [vmem:[%s2363 + $0x4] sm:$0xf]
        %v2366 = vld [vmem:[%s2363 + $0x8] sm:$0xf]
        %v2367 = vld [vmem:[%s2363 + $0xc] sm:$0xf]
        %v2368 = vld [vmem:[%s2363 + $0x10] sm:$0xf]
        %v2369 = vld [vmem:[%s2363 + $0x14] sm:$0xf]
        %v2370 = vld [vmem:[%s2363 + $0x18] sm:$0xf]
        %v2371 = vld [vmem:[%s2363 + $0x1c] sm:$0xf]
        %v2372 = vld [vmem:[%s2363 + $0x20] sm:$0xf]
        %v2373 = vld [vmem:[%s2363 + $0x24] sm:$0xf]
        %v2374 = vld [vmem:[%s2363 + $0x28] sm:$0xf]
        %v2375 = vld [vmem:[%s2363 + $0x2c] sm:$0xf]
        %v2376 = vld [vmem:[%s2363 + $0x30] sm:$0xf]
        %v2377 = vld [vmem:[%s2363 + $0x34] sm:$0xf]
        %v2378 = vld [vmem:[%s2363 + $0x38] sm:$0xf]
        %v2379 = vld [vmem:[%s2363 + $0x3c] sm:$0xf]
        %v2380 = vld [vmem:[%s2363 + $0x40] sm:$0xf]
        %v2381 = vld [vmem:[%s2363 + $0x44] sm:$0xf]
        %v2382 = vld [vmem:[%s2363 + $0x48] sm:$0xf]
        %v2383 = vld [vmem:[%s2363 + $0x4c] sm:$0xf]
        %v2384 = vld [vmem:[%s2363 + $0x50] sm:$0xf]
        %v2385 = vld [vmem:[%s2363 + $0x54] sm:$0xf]
        %v2386 = vld [vmem:[%s2363 + $0x58] sm:$0xf]
        %v2387 = vld [vmem:[%s2363 + $0x5c] sm:$0xf]
        %v2388 = vld [vmem:[%s2363 + $0x60] sm:$0xf]
        %v2389 = vld [vmem:[%s2363 + $0x64] sm:$0xf]
        %v2390 = vld [vmem:[%s2363 + $0x68] sm:$0xf]
        %v2391 = vld [vmem:[%s2363 + $0x6c] sm:$0xf]
        %v2392 = vld [vmem:[%s2363 + $0x70] sm:$0xf]
        %v2393 = vld [vmem:[%s2363 + $0x74] sm:$0xf]
        %v2394 = vld [vmem:[%s2363 + $0x78] sm:$0xf]
        %v2395 = vld [vmem:[%s2363 + $0x7c] sm:$0xf]
        %v2396 = vld [vmem:[%s2363 + $0x80] sm:$0xf]
        %v2397 = vld [vmem:[%s2363 + $0x84] sm:$0xf]
        %v2398 = vld [vmem:[%s2363 + $0x88] sm:$0xf]
        %v2399 = vld [vmem:[%s2363 + $0x8c] sm:$0xf]
        %v2400 = vld [vmem:[%s2363 + $0x90] sm:$0xf]
        %v2401 = vld [vmem:[%s2363 + $0x94] sm:$0xf]
        %v2402 = vld [vmem:[%s2363 + $0x98] sm:$0xf]
        %v2403 = vld [vmem:[%s2363 + $0x9c] sm:$0xf]
        %v2404 = vld [vmem:[%s2363 + $0xa0] sm:$0xf]
        %v2405 = vld [vmem:[%s2363 + $0xa4] sm:$0xf]
        %v2406 = vld [vmem:[%s2363 + $0xa8] sm:$0xf]
        %v2407 = vld [vmem:[%s2363 + $0xac] sm:$0xf]
        %v2408 = vld [vmem:[%s2363 + $0xb0] sm:$0xf]
        %v2409 = vld [vmem:[%s2363 + $0xb4] sm:$0xf]
        %v2410 = vld [vmem:[%s2363 + $0xb8] sm:$0xf]
        %v2411 = vld [vmem:[%s2363 + $0xbc] sm:$0xf]
        %v2460 = vunpack.c.l.b16 %v2364
        %v2461 = vunpack.c.l.b16 %v2365
        %v2462 = vunpack.c.l.b16 %v2366
        %v2463 = vunpack.c.l.b16 %v2367
        %v2464 = vunpack.c.l.b16 %v2368
        %v2465 = vunpack.c.l.b16 %v2369
        %v2466 = vunpack.c.l.b16 %v2370
        %v2467 = vunpack.c.l.b16 %v2371
        %v2468 = vunpack.c.l.b16 %v2372
        %v2469 = vunpack.c.l.b16 %v2373
        %v2470 = vunpack.c.l.b16 %v2374
        %v2471 = vunpack.c.l.b16 %v2375
        %v2472 = vunpack.c.l.b16 %v2376
        %v2473 = vunpack.c.l.b16 %v2377
        %v2474 = vunpack.c.l.b16 %v2378
        %v2475 = vunpack.c.l.b16 %v2379
        %v2476 = vunpack.c.l.b16 %v2380
        %v2477 = vunpack.c.l.b16 %v2381
        %v2478 = vunpack.c.l.b16 %v2382
        %v2479 = vunpack.c.l.b16 %v2383
        %v2480 = vunpack.c.l.b16 %v2384
        %v2481 = vunpack.c.l.b16 %v2385
        %v2482 = vunpack.c.l.b16 %v2386
        %v2483 = vunpack.c.l.b16 %v2387
        %v2484 = vunpack.c.l.b16 %v2388
        %v2485 = vunpack.c.l.b16 %v2389
        %v2486 = vunpack.c.l.b16 %v2390
        %v2487 = vunpack.c.l.b16 %v2391
        %v2488 = vunpack.c.l.b16 %v2392
        %v2489 = vunpack.c.l.b16 %v2393
        %v2490 = vunpack.c.l.b16 %v2394
        %v2491 = vunpack.c.l.b16 %v2395
        %v2492 = vunpack.c.l.b16 %v2396
        %v2493 = vunpack.c.l.b16 %v2397
        %v2494 = vunpack.c.l.b16 %v2398
        %v2495 = vunpack.c.l.b16 %v2399
        %v2496 = vunpack.c.l.b16 %v2400
        %v2497 = vunpack.c.l.b16 %v2401
        %v2498 = vunpack.c.l.b16 %v2402
        %v2499 = vunpack.c.l.b16 %v2403
        %v2500 = vunpack.c.l.b16 %v2404
        %v2501 = vunpack.c.l.b16 %v2405
        %v2502 = vunpack.c.l.b16 %v2406
        %v2503 = vunpack.c.l.b16 %v2407
        %v2504 = vunpack.c.l.b16 %v2408
        %v2505 = vunpack.c.l.b16 %v2409
        %v2506 = vunpack.c.l.b16 %v2410
        %v2507 = vunpack.c.l.b16 %v2411
        %v2508 = vpack.c.b16 %v2461, %v2460
        %v2509 = vpack.c.b16 %v2463, %v2462
        %v2510 = vpack.c.b16 %v2465, %v2464
        %v2511 = vpack.c.b16 %v2467, %v2466
        %v2512 = vpack.c.b16 %v2469, %v2468
        %v2513 = vpack.c.b16 %v2471, %v2470
        %v2514 = vpack.c.b16 %v2473, %v2472
        %v2515 = vpack.c.b16 %v2475, %v2474
        %v2516 = vpack.c.b16 %v2477, %v2476
        %v2517 = vpack.c.b16 %v2479, %v2478
        %v2518 = vpack.c.b16 %v2481, %v2480
        %v2519 = vpack.c.b16 %v2483, %v2482
        %v2520 = vpack.c.b16 %v2485, %v2484
        %v2521 = vpack.c.b16 %v2487, %v2486
        %v2522 = vpack.c.b16 %v2489, %v2488
        %v2523 = vpack.c.b16 %v2491, %v2490
        %v2524 = vpack.c.b16 %v2493, %v2492
        %v2525 = vpack.c.b16 %v2495, %v2494
        %v2526 = vpack.c.b16 %v2497, %v2496
        %v2527 = vpack.c.b16 %v2499, %v2498
        %v2528 = vpack.c.b16 %v2501, %v2500
        %v2529 = vpack.c.b16 %v2503, %v2502
        %v2530 = vpack.c.b16 %v2505, %v2504
        %v2531 = vpack.c.b16 %v2507, %v2506
        %2556 = vmatprep.subr.bf16.mxu0 0
        %2557 = vmatpush1.bf16.msra.mxu0 %v2508
        %2558 = vmatprep.subr.bf16.mxu0 0
        %2559 = vmatpush1.bf16.msra.mxu0 %v2509
        %2560 = vmatprep.subr.bf16.mxu0 0
        %2561 = vmatpush1.bf16.msra.mxu0 %v2510
        %2562 = vmatprep.subr.bf16.mxu0 0
        %2563 = vmatpush1.bf16.msra.mxu0 %v2511
        %2564 = vmatprep.subr.bf16.mxu0 0
        %2565 = vmatpush1.bf16.msra.mxu0 %v2512
        %2566 = vmatprep.subr.bf16.mxu0 0
        %2567 = vmatpush1.bf16.msra.mxu0 %v2513
        %2568 = vmatprep.subr.bf16.mxu0 0
        %2569 = vmatpush1.bf16.msra.mxu0 %v2514
        %2570 = vmatprep.subr.bf16.mxu0 0
        %2571 = vmatpush1.bf16.msra.mxu0 %v2515
        %2572 = vmatprep.subr.bf16.mxu0 0
        %2573 = vmatpush1.bf16.msra.mxu0 %v2516
        %2574 = vmatprep.subr.bf16.mxu0 0
        %2575 = vmatpush1.bf16.msra.mxu0 %v2517
        %2576 = vmatprep.subr.bf16.mxu0 0
        %2577 = vmatpush1.bf16.msra.mxu0 %v2518
        %2578 = vmatprep.subr.bf16.mxu0 0
        %2579 = vmatpush1.bf16.msra.mxu0 %v2519
        %2580 = vmatprep.subr.bf16.mxu0 0
        %2581 = vmatpush1.bf16.msra.mxu0 %v2520
        %2582 = vmatprep.subr.bf16.mxu0 0
        %2583 = vmatpush1.bf16.msra.mxu0 %v2521
        %2584 = vmatprep.subr.bf16.mxu0 0
        %2585 = vmatpush1.bf16.msra.mxu0 %v2522
        %2586 = vmatprep.subr.bf16.mxu0 0
        %2587 = vmatpush1.bf16.msra.mxu0 %v2523
        %2588 = vmatprep.mubr.bf16.mxu0 %v2268
        %2589 = vmatmul.mubr.bf16.gmra.mrb[0].mxu0 %v2267
        %v2590 = vpop.f32.mrb[0].mxu0
        %v2591 = vadd.f32 0.0, %v2590
        %v2592 = vpop.f32.mrb[0].mxu0
        %v2593 = vpop.f32.mrb[0].mxu0
        %v2594 = vadd.f32 0.0, %v2593
        %v2595 = vpop.f32.mrb[0].mxu0
        %2596 = vmatprep.mubr.bf16.mxu0 %v2271
        %2597 = vmatmul.mubr.bf16.gmra.mrb[0].mxu0 %v2270
        %v2598 = vpop.f32.mrb[0].mxu0
        %v2599 = vadd.f32 0.0, %v2598
        %v2600 = vpop.f32.mrb[0].mxu0
        %v2601 = vpop.f32.mrb[0].mxu0
        %v2602 = vadd.f32 0.0, %v2601
        %v2603 = vpop.f32.mrb[0].mxu0
        %2604 = vmatprep.mubr.bf16.mxu0 %v2274
        %2605 = vmatmul.mubr.bf16.gmra.mrb[0].mxu0 %v2273
        %v2606 = vpop.f32.mrb[0].mxu0
        %v2607 = vadd.f32 0.0, %v2606
        %v2608 = vpop.f32.mrb[0].mxu0
        %v2609 = vpop.f32.mrb[0].mxu0
        %v2610 = vadd.f32 0.0, %v2609
        %v2611 = vpop.f32.mrb[0].mxu0
        %2612 = vmatprep.mubr.bf16.mxu0 %v2277
        %2613 = vmatmul.mubr.bf16.gmra.mrb[0].mxu0 %v2276
        %v2614 = vpop.f32.mrb[0].mxu0
        %v2615 = vadd.f32 0.0, %v2614
        %v2616 = vpop.f32.mrb[0].mxu0
        %v2617 = vpop.f32.mrb[0].mxu0
        %v2618 = vadd.f32 0.0, %v2617
        %v2619 = vpop.f32.mrb[0].mxu0
        %2620 = vmatprep.mubr.bf16.mxu0 %v2280
        %2621 = vmatmul.mubr.bf16.gmra.mrb[0].mxu0 %v2279
        %v2622 = vpop.f32.mrb[0].mxu0
        %v2623 = vadd.f32 0.0, %v2622
        %v2624 = vpop.f32.mrb[0].mxu0
        %v2625 = vpop.f32.mrb[0].mxu0
        %v2626 = vadd.f32 0.0, %v2625
        %v2627 = vpop.f32.mrb[0].mxu0
        %2628 = vmatprep.mubr.bf16.mxu0 %v2283
        %2629 = vmatmul.mubr.bf16.gmra.mrb[0].mxu0 %v2282
        %v2630 = vpop.f32.mrb[0].mxu0
        %v2631 = vadd.f32 0.0, %v2630
        %v2632 = vpop.f32.mrb[0].mxu0
        %v2633 = vpop.f32.mrb[0].mxu0
        %v2634 = vadd.f32 0.0, %v2633
        %v2635 = vpop.f32.mrb[0].mxu0
        %2636 = vmatprep.mubr.bf16.mxu0 %v2286
        %2637 = vmatmul.mubr.bf16.gmra.mrb[0].mxu0 %v2285
        %v2638 = vpop.f32.mrb[0].mxu0
        %v2639 = vadd.f32 0.0, %v2638
        %v2640 = vpop.f32.mrb[0].mxu0
        %v2641 = vpop.f32.mrb[0].mxu0
        %v2642 = vadd.f32 0.0, %v2641
        %v2643 = vpop.f32.mrb[0].mxu0
        %2644 = vmatprep.mubr.bf16.mxu0 %v2289
        %2645 = vmatmul.mubr.bf16.gmra.mrb[0].mxu0 %v2288
        %v2646 = vpop.f32.mrb[0].mxu0
        %v2647 = vadd.f32 0.0, %v2646
        %v2648 = vpop.f32.mrb[0].mxu0
        %v2649 = vpop.f32.mrb[0].mxu0
        %v2650 = vadd.f32 0.0, %v2649
        %v2651 = vpop.f32.mrb[0].mxu0
        %2652 = vmatprep.mubr.bf16.mxu0 %v2292
        %2653 = vmatmul.mubr.bf16.gmra.mrb[0].mxu0 %v2291
        %v2654 = vpop.f32.mrb[0].mxu0
        %v2655 = vadd.f32 0.0, %v2654
        %v2656 = vpop.f32.mrb[0].mxu0
        %v2657 = vpop.f32.mrb[0].mxu0
        %v2658 = vadd.f32 0.0, %v2657
        %v2659 = vpop.f32.mrb[0].mxu0
        %2660 = vmatprep.mubr.bf16.mxu0 %v2295
        %2661 = vmatmul.mubr.bf16.gmra.mrb[0].mxu0 %v2294
        %v2662 = vpop.f32.mrb[0].mxu0
        %v2663 = vadd.f32 0.0, %v2662
        %v2664 = vpop.f32.mrb[0].mxu0
        %v2665 = vpop.f32.mrb[0].mxu0
        %v2666 = vadd.f32 0.0, %v2665
        %v2667 = vpop.f32.mrb[0].mxu0
        %2668 = vmatprep.mubr.bf16.mxu0 %v2298
        %2669 = vmatmul.mubr.bf16.gmra.mrb[0].mxu0 %v2297
        %v2670 = vpop.f32.mrb[0].mxu0
        %v2671 = vadd.f32 0.0, %v2670
        %v2672 = vpop.f32.mrb[0].mxu0
        %v2673 = vpop.f32.mrb[0].mxu0
        %v2674 = vadd.f32 0.0, %v2673
        %v2675 = vpop.f32.mrb[0].mxu0
        %2676 = vmatprep.mubr.bf16.mxu0 %v2301
        %2677 = vmatmul.mubr.bf16.gmra.mrb[0].mxu0 %v2300
        %v2678 = vpop.f32.mrb[0].mxu0
        %v2679 = vadd.f32 0.0, %v2678
        %v2680 = vpop.f32.mrb[0].mxu0
        %v2681 = vpop.f32.mrb[0].mxu0
        %v2682 = vadd.f32 0.0, %v2681
        %v2683 = vpop.f32.mrb[0].mxu0
        %2684 = vmatprep.mubr.bf16.mxu0 %v2304
        %2685 = vmatmul.mubr.bf16.gmra.mrb[0].mxu0 %v2303
        %v2686 = vpop.f32.mrb[0].mxu0
        %v2687 = vadd.f32 0.0, %v2686
        %v2688 = vpop.f32.mrb[0].mxu0
        %v2689 = vpop.f32.mrb[0].mxu0
        %v2690 = vadd.f32 0.0, %v2689
        %v2691 = vpop.f32.mrb[0].mxu0
        %2692 = vmatprep.mubr.bf16.mxu0 %v2307
        %2693 = vmatmul.mubr.bf16.gmra.mrb[0].mxu0 %v2306
        %v2694 = vpop.f32.mrb[0].mxu0
        %v2695 = vadd.f32 0.0, %v2694
        %v2696 = vpop.f32.mrb[0].mxu0
        %v2697 = vpop.f32.mrb[0].mxu0
        %v2698 = vadd.f32 0.0, %v2697
        %v2699 = vpop.f32.mrb[0].mxu0
        %2700 = vmatprep.mubr.bf16.mxu0 %v2310
        %2701 = vmatmul.mubr.bf16.gmra.mrb[0].mxu0 %v2309
        %v2702 = vpop.f32.mrb[0].mxu0
        %v2703 = vadd.f32 0.0, %v2702
        %v2704 = vpop.f32.mrb[0].mxu0
        %v2705 = vpop.f32.mrb[0].mxu0
        %v2706 = vadd.f32 0.0, %v2705
        %v2707 = vpop.f32.mrb[0].mxu0
        %2708 = vmatprep.mubr.bf16.mxu0 %v2361
        %2709 = vmatmul.mubr.bf16.gmra.mrb[0].mxu0 %v2360
        %v2710 = vpop.f32.mrb[0].mxu0
        %v2711 = vadd.f32 0.0, %v2710
        %v2712 = vpop.f32.mrb[0].mxu0
        %v2713 = vpop.f32.mrb[0].mxu0
        %v2714 = vadd.f32 0.0, %v2713
        %v2715 = vpop.f32.mrb[0].mxu0
        %2716 = vdwg.mxu0
        %2717 = vmatprep.subr.bf16.mxu0 0
        %2718 = vmatpush1.bf16.msra.mxu0 %v2524
        %2719 = vmatprep.subr.bf16.mxu0 0
        %2720 = vmatpush1.bf16.msra.mxu0 %v2525
        %2721 = vmatprep.subr.bf16.mxu0 0
        %2722 = vmatpush1.bf16.msra.mxu0 %v2526
        %2723 = vmatprep.subr.bf16.mxu0 0
        %2724 = vmatpush1.bf16.msra.mxu0 %v2527
        %2725 = vmatprep.subr.bf16.mxu0 0
        %2726 = vmatpush1.bf16.msra.mxu0 %v2528
        %2727 = vmatprep.subr.bf16.mxu0 0
        %2728 = vmatpush1.bf16.msra.mxu0 %v2529
        %2729 = vmatprep.subr.bf16.mxu0 0
        %2730 = vmatpush1.bf16.msra.mxu0 %v2530
        %2731 = vmatprep.subr.bf16.mxu0 0
        %2732 = vmatpush1.bf16.msra.mxu0 %v2531
        %2733 = vmatprep.subr.bf16.mxu0 0
        %2734 = vmatpush1.bf16.msra.mxu0 0
        %2735 = vmatprep.subr.bf16.mxu0 0
        %2736 = vmatpush1.bf16.msra.mxu0 0
        %2737 = vmatprep.subr.bf16.mxu0 0
        %2738 = vmatpush1.bf16.msra.mxu0 0
        %2739 = vmatprep.subr.bf16.mxu0 0
        %2740 = vmatpush1.bf16.msra.mxu0 0
        %2741 = vmatprep.subr.bf16.mxu0 0
        %2742 = vmatpush1.bf16.msra.mxu0 0
        %2743 = vmatprep.subr.bf16.mxu0 0
        %2744 = vmatpush1.bf16.msra.mxu0 0
        %2745 = vmatprep.subr.bf16.mxu0 0
        %2746 = vmatpush1.bf16.msra.mxu0 0
        %2747 = vmatprep.subr.bf16.mxu0 0
        %2748 = vmatpush1.bf16.msra.mxu0 0
        %2749 = vmatprep.mubr.bf16.mxu0 0
        %2750 = vmatmul.mubr.bf16.gmra.mrb[0].mxu0 %v2269
        %v2751 = vpop.f32.mrb[0].mxu0
        %v2752 = vadd.f32 %v2591, %v2751
        %v2753 = vpop.f32.mrb[0].mxu0
        %v2754 = vpop.f32.mrb[0].mxu0
        %v2755 = vadd.f32 %v2594, %v2754
        %v2756 = vpop.f32.mrb[0].mxu0
        %2757 = vmatprep.mubr.bf16.mxu0 0
        %2758 = vmatmul.mubr.bf16.gmra.mrb[0].mxu0 %v2272
        %v2759 = vpop.f32.mrb[0].mxu0
        %v2760 = vadd.f32 %v2599, %v2759
        %v2761 = vpop.f32.mrb[0].mxu0
        %v2762 = vpop.f32.mrb[0].mxu0
        %v2763 = vadd.f32 %v2602, %v2762
        %v2764 = vpop.f32.mrb[0].mxu0
        %2765 = vmatprep.mubr.bf16.mxu0 0
        %2766 = vmatmul.mubr.bf16.gmra.mrb[0].mxu0 %v2275
        %v2767 = vpop.f32.mrb[0].mxu0
        %v2768 = vadd.f32 %v2607, %v2767
        %v2769 = vpop.f32.mrb[0].mxu0
        %v2770 = vpop.f32.mrb[0].mxu0
        %v2771 = vadd.f32 %v2610, %v2770
        %v2772 = vpop.f32.mrb[0].mxu0
        %2773 = vmatprep.mubr.bf16.mxu0 0
        %2774 = vmatmul.mubr.bf16.gmra.mrb[0].mxu0 %v2278
        %v2775 = vpop.f32.mrb[0].mxu0
        %v2776 = vadd.f32 %v2615, %v2775
        %v2777 = vpop.f32.mrb[0].mxu0
        %v2778 = vpop.f32.mrb[0].mxu0
        %v2779 = vadd.f32 %v2618, %v2778
        %v2780 = vpop.f32.mrb[0].mxu0
        %2781 = vmatprep.mubr.bf16.mxu0 0
        %2782 = vmatmul.mubr.bf16.gmra.mrb[0].mxu0 %v2281
        %v2783 = vpop.f32.mrb[0].mxu0
        %v2784 = vadd.f32 %v2623, %v2783
        %v2785 = vpop.f32.mrb[0].mxu0
        %v2786 = vpop.f32.mrb[0].mxu0
        %v2787 = vadd.f32 %v2626, %v2786
        %v2788 = vpop.f32.mrb[0].mxu0
        %2789 = vmatprep.mubr.bf16.mxu0 0
        %2790 = vmatmul.mubr.bf16.gmra.mrb[0].mxu0 %v2284
        %v2791 = vpop.f32.mrb[0].mxu0
        %v2792 = vadd.f32 %v2631, %v2791
        %v2793 = vpop.f32.mrb[0].mxu0
        %v2794 = vpop.f32.mrb[0].mxu0
        %v2795 = vadd.f32 %v2634, %v2794
        %v2796 = vpop.f32.mrb[0].mxu0
        %2797 = vmatprep.mubr.bf16.mxu0 0
        %2798 = vmatmul.mubr.bf16.gmra.mrb[0].mxu0 %v2287
        %v2799 = vpop.f32.mrb[0].mxu0
        %v2800 = vadd.f32 %v2639, %v2799
        %v2801 = vpop.f32.mrb[0].mxu0
        %v2802 = vpop.f32.mrb[0].mxu0
        %v2803 = vadd.f32 %v2642, %v2802
        %v2804 = vpop.f32.mrb[0].mxu0
        %2805 = vmatprep.mubr.bf16.mxu0 0
        %2806 = vmatmul.mubr.bf16.gmra.mrb[0].mxu0 %v2290
        %v2807 = vpop.f32.mrb[0].mxu0
        %v2808 = vadd.f32 %v2647, %v2807
        %v2809 = vpop.f32.mrb[0].mxu0
        %v2810 = vpop.f32.mrb[0].mxu0
        %v2811 = vadd.f32 %v2650, %v2810
        %v2812 = vpop.f32.mrb[0].mxu0
        %2813 = vmatprep.mubr.bf16.mxu0 0
        %2814 = vmatmul.mubr.bf16.gmra.mrb[0].mxu0 %v2293
        %v2815 = vpop.f32.mrb[0].mxu0
        %v2816 = vadd.f32 %v2655, %v2815
        %v2817 = vpop.f32.mrb[0].mxu0
        %v2818 = vpop.f32.mrb[0].mxu0
        %v2819 = vadd.f32 %v2658, %v2818
        %v2820 = vpop.f32.mrb[0].mxu0
        %2821 = vmatprep.mubr.bf16.mxu0 0
        %2822 = vmatmul.mubr.bf16.gmra.mrb[0].mxu0 %v2296
        %v2823 = vpop.f32.mrb[0].mxu0
        %v2824 = vadd.f32 %v2663, %v2823
        %v2825 = vpop.f32.mrb[0].mxu0
        %v2826 = vpop.f32.mrb[0].mxu0
        %v2827 = vadd.f32 %v2666, %v2826
        %v2828 = vpop.f32.mrb[0].mxu0
        %2829 = vmatprep.mubr.bf16.mxu0 0
        %2830 = vmatmul.mubr.bf16.gmra.mrb[0].mxu0 %v2299
        %v2831 = vpop.f32.mrb[0].mxu0
        %v2832 = vadd.f32 %v2671, %v2831
        %v2833 = vpop.f32.mrb[0].mxu0
        %v2834 = vpop.f32.mrb[0].mxu0
        %v2835 = vadd.f32 %v2674, %v2834
        %v2836 = vpop.f32.mrb[0].mxu0
        %2837 = vmatprep.mubr.bf16.mxu0 0
        %2838 = vmatmul.mubr.bf16.gmra.mrb[0].mxu0 %v2302
        %v2839 = vpop.f32.mrb[0].mxu0
        %v2840 = vadd.f32 %v2679, %v2839
        %v2841 = vpop.f32.mrb[0].mxu0
        %v2842 = vpop.f32.mrb[0].mxu0
        %v2843 = vadd.f32 %v2682, %v2842
        %v2844 = vpop.f32.mrb[0].mxu0
        %2845 = vmatprep.mubr.bf16.mxu0 0
        %2846 = vmatmul.mubr.bf16.gmra.mrb[0].mxu0 %v2305
        %v2847 = vpop.f32.mrb[0].mxu0
        %v2848 = vadd.f32 %v2687, %v2847
        %v2849 = vpop.f32.mrb[0].mxu0
        %v2850 = vpop.f32.mrb[0].mxu0
        %v2851 = vadd.f32 %v2690, %v2850
        %v2852 = vpop.f32.mrb[0].mxu0
        %2853 = vmatprep.mubr.bf16.mxu0 0
        %2854 = vmatmul.mubr.bf16.gmra.mrb[0].mxu0 %v2308
        %v2855 = vpop.f32.mrb[0].mxu0
        %v2856 = vadd.f32 %v2695, %v2855
        %v2857 = vpop.f32.mrb[0].mxu0
        %v2858 = vpop.f32.mrb[0].mxu0
        %v2859 = vadd.f32 %v2698, %v2858
        %v2860 = vpop.f32.mrb[0].mxu0
        %2861 = vmatprep.mubr.bf16.mxu0 0
        %2862 = vmatmul.mubr.bf16.gmra.mrb[0].mxu0 %v2311
        %v2863 = vpop.f32.mrb[0].mxu0
        %v2864 = vadd.f32 %v2703, %v2863
        %v2865 = vpop.f32.mrb[0].mxu0
        %v2866 = vpop.f32.mrb[0].mxu0
        %v2867 = vadd.f32 %v2706, %v2866
        %v2868 = vpop.f32.mrb[0].mxu0
        %2869 = vmatprep.mubr.bf16.mxu0 0
        %2870 = vmatmul.mubr.bf16.gmra.mrb[0].mxu0 %v2362
        %v2871 = vpop.f32.mrb[0].mxu0
        %v2872 = vadd.f32 %v2711, %v2871
        %v2873 = vpop.f32.mrb[0].mxu0
        %v2874 = vpop.f32.mrb[0].mxu0
        %v2875 = vadd.f32 %v2714, %v2874
        %v2876 = vpop.f32.mrb[0].mxu0
        %2877 = vdwg.mxu0
        %v2926 = vunpack.c.l.b16 %v2312
        %v2927 = vunpack.c.l.b16 %v2313
        %v2928 = vunpack.c.l.b16 %v2314
        %v2929 = vunpack.c.l.b16 %v2315
        %v2930 = vunpack.c.l.b16 %v2316
        %v2931 = vunpack.c.l.b16 %v2317
        %v2932 = vunpack.c.l.b16 %v2318
        %v2933 = vunpack.c.l.b16 %v2319
        %v2934 = vunpack.c.l.b16 %v2320
        %v2935 = vunpack.c.l.b16 %v2321
        %v2936 = vunpack.c.l.b16 %v2322
        %v2937 = vunpack.c.l.b16 %v2323
        %v2938 = vunpack.c.l.b16 %v2324
        %v2939 = vunpack.c.l.b16 %v2325
        %v2940 = vunpack.c.l.b16 %v2326
        %v2941 = vunpack.c.l.b16 %v2327
        %v2942 = vunpack.c.l.b16 %v2328
        %v2943 = vunpack.c.l.b16 %v2329
        %v2944 = vunpack.c.l.b16 %v2330
        %v2945 = vunpack.c.l.b16 %v2331
        %v2946 = vunpack.c.l.b16 %v2332
        %v2947 = vunpack.c.l.b16 %v2333
        %v2948 = vunpack.c.l.b16 %v2334
        %v2949 = vunpack.c.l.b16 %v2335
        %v2950 = vunpack.c.l.b16 %v2336
        %v2951 = vunpack.c.l.b16 %v2337
        %v2952 = vunpack.c.l.b16 %v2338
        %v2953 = vunpack.c.l.b16 %v2339
        %v2954 = vunpack.c.l.b16 %v2340
        %v2955 = vunpack.c.l.b16 %v2341
        %v2956 = vunpack.c.l.b16 %v2342
        %v2957 = vunpack.c.l.b16 %v2343
        %v2958 = vunpack.c.l.b16 %v2344
        %v2959 = vunpack.c.l.b16 %v2345
        %v2960 = vunpack.c.l.b16 %v2346
        %v2961 = vunpack.c.l.b16 %v2347
        %v2962 = vunpack.c.l.b16 %v2348
        %v2963 = vunpack.c.l.b16 %v2349
        %v2964 = vunpack.c.l.b16 %v2350
        %v2965 = vunpack.c.l.b16 %v2351
        %v2966 = vunpack.c.l.b16 %v2352
        %v2967 = vunpack.c.l.b16 %v2353
        %v2968 = vunpack.c.l.b16 %v2354
        %v2969 = vunpack.c.l.b16 %v2355
        %v2970 = vunpack.c.l.b16 %v2356
        %v2971 = vunpack.c.l.b16 %v2357
        %v2972 = vunpack.c.l.b16 %v2358
        %v2973 = vunpack.c.l.b16 %v2359
        %v2974 = vpack.c.b16 %v2927, %v2926
        %v2975 = vpack.c.b16 %v2929, %v2928
        %v2976 = vpack.c.b16 %v2931, %v2930
        %v2977 = vpack.c.b16 %v2933, %v2932
        %v2978 = vpack.c.b16 %v2935, %v2934
        %v2979 = vpack.c.b16 %v2937, %v2936
        %v2980 = vpack.c.b16 %v2939, %v2938
        %v2981 = vpack.c.b16 %v2941, %v2940
        %v2982 = vpack.c.b16 %v2943, %v2942
        %v2983 = vpack.c.b16 %v2945, %v2944
        %v2984 = vpack.c.b16 %v2947, %v2946
        %v2985 = vpack.c.b16 %v2949, %v2948
        %v2986 = vpack.c.b16 %v2951, %v2950
        %v2987 = vpack.c.b16 %v2953, %v2952
        %v2988 = vpack.c.b16 %v2955, %v2954
        %v2989 = vpack.c.b16 %v2957, %v2956
        %v2990 = vpack.c.b16 %v2959, %v2958
        %v2991 = vpack.c.b16 %v2961, %v2960
        %v2992 = vpack.c.b16 %v2963, %v2962
        %v2993 = vpack.c.b16 %v2965, %v2964
        %v2994 = vpack.c.b16 %v2967, %v2966
        %v2995 = vpack.c.b16 %v2969, %v2968
        %v2996 = vpack.c.b16 %v2971, %v2970
        %v2997 = vpack.c.b16 %v2973, %v2972
        %3022 = vmatprep.subr.bf16.mxu0 0
        %3023 = vmatpush1.bf16.msra.mxu0 %v2974
        %3024 = vmatprep.subr.bf16.mxu0 0
        %3025 = vmatpush1.bf16.msra.mxu0 %v2975
        %3026 = vmatprep.subr.bf16.mxu0 0
        %3027 = vmatpush1.bf16.msra.mxu0 %v2976
        %3028 = vmatprep.subr.bf16.mxu0 0
        %3029 = vmatpush1.bf16.msra.mxu0 %v2977
        %3030 = vmatprep.subr.bf16.mxu0 0
        %3031 = vmatpush1.bf16.msra.mxu0 %v2978
        %3032 = vmatprep.subr.bf16.mxu0 0
        %3033 = vmatpush1.bf16.msra.mxu0 %v2979
        %3034 = vmatprep.subr.bf16.mxu0 0
        %3035 = vmatpush1.bf16.msra.mxu0 %v2980
        %3036 = vmatprep.subr.bf16.mxu0 0
        %3037 = vmatpush1.bf16.msra.mxu0 %v2981
        %3038 = vmatprep.subr.bf16.mxu0 0
        %3039 = vmatpush1.bf16.msra.mxu0 %v2982
        %3040 = vmatprep.subr.bf16.mxu0 0
        %3041 = vmatpush1.bf16.msra.mxu0 %v2983
        %3042 = vmatprep.subr.bf16.mxu0 0
        %3043 = vmatpush1.bf16.msra.mxu0 %v2984
        %3044 = vmatprep.subr.bf16.mxu0 0
        %3045 = vmatpush1.bf16.msra.mxu0 %v2985
        %3046 = vmatprep.subr.bf16.mxu0 0
        %3047 = vmatpush1.bf16.msra.mxu0 %v2986
        %3048 = vmatprep.subr.bf16.mxu0 0
        %3049 = vmatpush1.bf16.msra.mxu0 %v2987
        %3050 = vmatprep.subr.bf16.mxu0 0
        %3051 = vmatpush1.bf16.msra.mxu0 %v2988
        %3052 = vmatprep.subr.bf16.mxu0 0
        %3053 = vmatpush1.bf16.msra.mxu0 %v2989
        %3054 = vmatprep.mubr.bf16.mxu0 %v2265
        %3055 = vmatmul.mubr.bf16.gmra.mrb[0].mxu0 %v2264
        %v3056 = vpop.f32.mrb[0].mxu0
        %v3057 = vadd.f32 %v2752, %v3056
        %v3058 = vpop.f32.mrb[0].mxu0
        %v3059 = vpop.f32.mrb[0].mxu0
        %v3060 = vadd.f32 %v2755, %v3059
        %v3061 = vpop.f32.mrb[0].mxu0
        %3062 = vmatprep.mubr.bf16.mxu0 %v2268
        %3063 = vmatmul.mubr.bf16.gmra.mrb[0].mxu0 %v2267
        %v3064 = vpop.f32.mrb[0].mxu0
        %v3065 = vadd.f32 %v2760, %v3064
        %v3066 = vpop.f32.mrb[0].mxu0
        %v3067 = vpop.f32.mrb[0].mxu0
        %v3068 = vadd.f32 %v2763, %v3067
        %v3069 = vpop.f32.mrb[0].mxu0
        %3070 = vmatprep.mubr.bf16.mxu0 %v2271
        %3071 = vmatmul.mubr.bf16.gmra.mrb[0].mxu0 %v2270
        %v3072 = vpop.f32.mrb[0].mxu0
        %v3073 = vadd.f32 %v2768, %v3072
        %v3074 = vpop.f32.mrb[0].mxu0
        %v3075 = vpop.f32.mrb[0].mxu0
        %v3076 = vadd.f32 %v2771, %v3075
        %v3077 = vpop.f32.mrb[0].mxu0
        %3078 = vmatprep.mubr.bf16.mxu0 %v2274
        %3079 = vmatmul.mubr.bf16.gmra.mrb[0].mxu0 %v2273
        %v3080 = vpop.f32.mrb[0].mxu0
        %v3081 = vadd.f32 %v2776, %v3080
        %v3082 = vpop.f32.mrb[0].mxu0
        %v3083 = vpop.f32.mrb[0].mxu0
        %v3084 = vadd.f32 %v2779, %v3083
        %v3085 = vpop.f32.mrb[0].mxu0
        %3086 = vmatprep.mubr.bf16.mxu0 %v2277
        %3087 = vmatmul.mubr.bf16.gmra.mrb[0].mxu0 %v2276
        %v3088 = vpop.f32.mrb[0].mxu0
        %v3089 = vadd.f32 %v2784, %v3088
        %v3090 = vpop.f32.mrb[0].mxu0
        %v3091 = vpop.f32.mrb[0].mxu0
        %v3092 = vadd.f32 %v2787, %v3091
        %v3093 = vpop.f32.mrb[0].mxu0
        %3094 = vmatprep.mubr.bf16.mxu0 %v2280
        %3095 = vmatmul.mubr.bf16.gmra.mrb[0].mxu0 %v2279
        %v3096 = vpop.f32.mrb[0].mxu0
        %v3097 = vadd.f32 %v2792, %v3096
        %v3098 = vpop.f32.mrb[0].mxu0
        %v3099 = vpop.f32.mrb[0].mxu0
        %v3100 = vadd.f32 %v2795, %v3099
        %v3101 = vpop.f32.mrb[0].mxu0
        %3102 = vmatprep.mubr.bf16.mxu0 %v2283
        %3103 = vmatmul.mubr.bf16.gmra.mrb[0].mxu0 %v2282
        %v3104 = vpop.f32.mrb[0].mxu0
        %v3105 = vadd.f32 %v2800, %v3104
        %v3106 = vpop.f32.mrb[0].mxu0
        %v3107 = vpop.f32.mrb[0].mxu0
        %v3108 = vadd.f32 %v2803, %v3107
        %v3109 = vpop.f32.mrb[0].mxu0
        %3110 = vmatprep.mubr.bf16.mxu0 %v2286
        %3111 = vmatmul.mubr.bf16.gmra.mrb[0].mxu0 %v2285
        %v3112 = vpop.f32.mrb[0].mxu0
        %v3113 = vadd.f32 %v2808, %v3112
        %v3114 = vpop.f32.mrb[0].mxu0
        %v3115 = vpop.f32.mrb[0].mxu0
        %v3116 = vadd.f32 %v2811, %v3115
        %v3117 = vpop.f32.mrb[0].mxu0
        %3118 = vmatprep.mubr.bf16.mxu0 %v2289
        %3119 = vmatmul.mubr.bf16.gmra.mrb[0].mxu0 %v2288
        %v3120 = vpop.f32.mrb[0].mxu0
        %v3121 = vadd.f32 %v2816, %v3120
        %v3122 = vpop.f32.mrb[0].mxu0
        %v3123 = vpop.f32.mrb[0].mxu0
        %v3124 = vadd.f32 %v2819, %v3123
        %v3125 = vpop.f32.mrb[0].mxu0
        %3126 = vmatprep.mubr.bf16.mxu0 %v2292
        %3127 = vmatmul.mubr.bf16.gmra.mrb[0].mxu0 %v2291
        %v3128 = vpop.f32.mrb[0].mxu0
        %v3129 = vadd.f32 %v2824, %v3128
        %v3130 = vpop.f32.mrb[0].mxu0
        %v3131 = vpop.f32.mrb[0].mxu0
        %v3132 = vadd.f32 %v2827, %v3131
        %v3133 = vpop.f32.mrb[0].mxu0
        %3134 = vmatprep.mubr.bf16.mxu0 %v2295
        %3135 = vmatmul.mubr.bf16.gmra.mrb[0].mxu0 %v2294
        %v3136 = vpop.f32.mrb[0].mxu0
        %v3137 = vadd.f32 %v2832, %v3136
        %v3138 = vpop.f32.mrb[0].mxu0
        %v3139 = vpop.f32.mrb[0].mxu0
        %v3140 = vadd.f32 %v2835, %v3139
        %v3141 = vpop.f32.mrb[0].mxu0
        %3142 = vmatprep.mubr.bf16.mxu0 %v2298
        %3143 = vmatmul.mubr.bf16.gmra.mrb[0].mxu0 %v2297
        %v3144 = vpop.f32.mrb[0].mxu0
        %v3145 = vadd.f32 %v2840, %v3144
        %v3146 = vpop.f32.mrb[0].mxu0
        %v3147 = vpop.f32.mrb[0].mxu0
        %v3148 = vadd.f32 %v2843, %v3147
        %v3149 = vpop.f32.mrb[0].mxu0
        %3150 = vmatprep.mubr.bf16.mxu0 %v2301
        %3151 = vmatmul.mubr.bf16.gmra.mrb[0].mxu0 %v2300
        %v3152 = vpop.f32.mrb[0].mxu0
        %v3153 = vadd.f32 %v2848, %v3152
        %v3154 = vpop.f32.mrb[0].mxu0
        %v3155 = vpop.f32.mrb[0].mxu0
        %v3156 = vadd.f32 %v2851, %v3155
        %v3157 = vpop.f32.mrb[0].mxu0
        %3158 = vmatprep.mubr.bf16.mxu0 %v2304
        %3159 = vmatmul.mubr.bf16.gmra.mrb[0].mxu0 %v2303
        %v3160 = vpop.f32.mrb[0].mxu0
        %v3161 = vadd.f32 %v2856, %v3160
        %v3162 = vpop.f32.mrb[0].mxu0
        %v3163 = vpop.f32.mrb[0].mxu0
        %v3164 = vadd.f32 %v2859, %v3163
        %v3165 = vpop.f32.mrb[0].mxu0
        %3166 = vmatprep.mubr.bf16.mxu0 %v2307
        %3167 = vmatmul.mubr.bf16.gmra.mrb[0].mxu0 %v2306
        %v3168 = vpop.f32.mrb[0].mxu0
        %v3169 = vadd.f32 %v2864, %v3168
        %v3170 = vpop.f32.mrb[0].mxu0
        %v3171 = vpop.f32.mrb[0].mxu0
        %v3172 = vadd.f32 %v2867, %v3171
        %v3173 = vpop.f32.mrb[0].mxu0
        %3174 = vmatprep.mubr.bf16.mxu0 %v2310
        %3175 = vmatmul.mubr.bf16.gmra.mrb[0].mxu0 %v2309
        %v3176 = vpop.f32.mrb[0].mxu0
        %v3177 = vadd.f32 %v2872, %v3176
        %v3178 = vpop.f32.mrb[0].mxu0
        %v3179 = vpop.f32.mrb[0].mxu0
        %v3180 = vadd.f32 %v2875, %v3179
        %v3181 = vpop.f32.mrb[0].mxu0
        %3182 = vdwg.mxu0
        %3183 = vmatprep.subr.bf16.mxu0 0
        %3184 = vmatpush1.bf16.msra.mxu0 %v2990
        %3185 = vmatprep.subr.bf16.mxu0 0
        %3186 = vmatpush1.bf16.msra.mxu0 %v2991
        %3187 = vmatprep.subr.bf16.mxu0 0
        %3188 = vmatpush1.bf16.msra.mxu0 %v2992
        %3189 = vmatprep.subr.bf16.mxu0 0
        %3190 = vmatpush1.bf16.msra.mxu0 %v2993
        %3191 = vmatprep.subr.bf16.mxu0 0
        %3192 = vmatpush1.bf16.msra.mxu0 %v2994
        %3193 = vmatprep.subr.bf16.mxu0 0
        %3194 = vmatpush1.bf16.msra.mxu0 %v2995
        %3195 = vmatprep.subr.bf16.mxu0 0
        %3196 = vmatpush1.bf16.msra.mxu0 %v2996
        %3197 = vmatprep.subr.bf16.mxu0 0
        %3198 = vmatpush1.bf16.msra.mxu0 %v2997
        %3199 = vmatprep.subr.bf16.mxu0 0
        %3200 = vmatpush1.bf16.msra.mxu0 0
        %3201 = vmatprep.subr.bf16.mxu0 0
        %3202 = vmatpush1.bf16.msra.mxu0 0
        %3203 = vmatprep.subr.bf16.mxu0 0
        %3204 = vmatpush1.bf16.msra.mxu0 0
        %3205 = vmatprep.subr.bf16.mxu0 0
        %3206 = vmatpush1.bf16.msra.mxu0 0
        %3207 = vmatprep.subr.bf16.mxu0 0
        %3208 = vmatpush1.bf16.msra.mxu0 0
        %3209 = vmatprep.subr.bf16.mxu0 0
        %3210 = vmatpush1.bf16.msra.mxu0 0
        %3211 = vmatprep.subr.bf16.mxu0 0
        %3212 = vmatpush1.bf16.msra.mxu0 0
        %3213 = vmatprep.subr.bf16.mxu0 0
        %3214 = vmatpush1.bf16.msra.mxu0 0
        %3215 = vmatprep.mubr.bf16.mxu0 0
        %3216 = vmatmul.mubr.bf16.gmra.mrb[0].mxu0 %v2266
        %v3217 = vpop.f32.mrb[0].mxu0
        %v3218 = vadd.f32 %v3057, %v3217
        %v3219 = vpop.f32.mrb[0].mxu0
        %v3220 = vpop.f32.mrb[0].mxu0
        %v3221 = vadd.f32 %v3060, %v3220
        %v3222 = vpop.f32.mrb[0].mxu0
        %3223 = vmatprep.mubr.bf16.mxu0 0
        %3224 = vmatmul.mubr.bf16.gmra.mrb[0].mxu0 %v2269
        %v3225 = vpop.f32.mrb[0].mxu0
        %v3226 = vadd.f32 %v3065, %v3225
        %v3227 = vpop.f32.mrb[0].mxu0
        %v3228 = vpop.f32.mrb[0].mxu0
        %v3229 = vadd.f32 %v3068, %v3228
        %v3230 = vpop.f32.mrb[0].mxu0
        %3231 = vmatprep.mubr.bf16.mxu0 0
        %3232 = vmatmul.mubr.bf16.gmra.mrb[0].mxu0 %v2272
        %v3233 = vpop.f32.mrb[0].mxu0
        %v3234 = vadd.f32 %v3073, %v3233
        %v3235 = vpop.f32.mrb[0].mxu0
        %v3236 = vpop.f32.mrb[0].mxu0
        %v3237 = vadd.f32 %v3076, %v3236
        %v3238 = vpop.f32.mrb[0].mxu0
        %3239 = vmatprep.mubr.bf16.mxu0 0
        %3240 = vmatmul.mubr.bf16.gmra.mrb[0].mxu0 %v2275
        %v3241 = vpop.f32.mrb[0].mxu0
        %v3242 = vadd.f32 %v3081, %v3241
        %v3243 = vpop.f32.mrb[0].mxu0
        %v3244 = vpop.f32.mrb[0].mxu0
        %v3245 = vadd.f32 %v3084, %v3244
        %v3246 = vpop.f32.mrb[0].mxu0
        %3247 = vmatprep.mubr.bf16.mxu0 0
        %3248 = vmatmul.mubr.bf16.gmra.mrb[0].mxu0 %v2278
        %v3249 = vpop.f32.mrb[0].mxu0
        %v3250 = vadd.f32 %v3089, %v3249
        %v3251 = vpop.f32.mrb[0].mxu0
        %v3252 = vpop.f32.mrb[0].mxu0
        %v3253 = vadd.f32 %v3092, %v3252
        %v3254 = vpop.f32.mrb[0].mxu0
        %3255 = vmatprep.mubr.bf16.mxu0 0
        %3256 = vmatmul.mubr.bf16.gmra.mrb[0].mxu0 %v2281
        %v3257 = vpop.f32.mrb[0].mxu0
        %v3258 = vadd.f32 %v3097, %v3257
        %v3259 = vpop.f32.mrb[0].mxu0
        %v3260 = vpop.f32.mrb[0].mxu0
        %v3261 = vadd.f32 %v3100, %v3260
        %v3262 = vpop.f32.mrb[0].mxu0
        %3263 = vmatprep.mubr.bf16.mxu0 0
        %3264 = vmatmul.mubr.bf16.gmra.mrb[0].mxu0 %v2284
        %v3265 = vpop.f32.mrb[0].mxu0
        %v3266 = vadd.f32 %v3105, %v3265
        %v3267 = vpop.f32.mrb[0].mxu0
        %v3268 = vpop.f32.mrb[0].mxu0
        %v3269 = vadd.f32 %v3108, %v3268
        %v3270 = vpop.f32.mrb[0].mxu0
        %3271 = vmatprep.mubr.bf16.mxu0 0
        %3272 = vmatmul.mubr.bf16.gmra.mrb[0].mxu0 %v2287
        %v3273 = vpop.f32.mrb[0].mxu0
        %v3274 = vadd.f32 %v3113, %v3273
        %v3275 = vpop.f32.mrb[0].mxu0
        %v3276 = vpop.f32.mrb[0].mxu0
        %v3277 = vadd.f32 %v3116, %v3276
        %v3278 = vpop.f32.mrb[0].mxu0
        %3279 = vmatprep.mubr.bf16.mxu0 0
        %3280 = vmatmul.mubr.bf16.gmra.mrb[0].mxu0 %v2290
        %v3281 = vpop.f32.mrb[0].mxu0
        %v3282 = vadd.f32 %v3121, %v3281
        %v3283 = vpop.f32.mrb[0].mxu0
        %v3284 = vpop.f32.mrb[0].mxu0
        %v3285 = vadd.f32 %v3124, %v3284
        %v3286 = vpop.f32.mrb[0].mxu0
        %3287 = vmatprep.mubr.bf16.mxu0 0
        %3288 = vmatmul.mubr.bf16.gmra.mrb[0].mxu0 %v2293
        %v3289 = vpop.f32.mrb[0].mxu0
        %v3290 = vadd.f32 %v3129, %v3289
        %v3291 = vpop.f32.mrb[0].mxu0
        %v3292 = vpop.f32.mrb[0].mxu0
        %v3293 = vadd.f32 %v3132, %v3292
        %v3294 = vpop.f32.mrb[0].mxu0
        %3295 = vmatprep.mubr.bf16.mxu0 0
        %3296 = vmatmul.mubr.bf16.gmra.mrb[0].mxu0 %v2296
        %v3297 = vpop.f32.mrb[0].mxu0
        %v3298 = vadd.f32 %v3137, %v3297
        %v3299 = vpop.f32.mrb[0].mxu0
        %v3300 = vpop.f32.mrb[0].mxu0
        %v3301 = vadd.f32 %v3140, %v3300
        %v3302 = vpop.f32.mrb[0].mxu0
        %3303 = vmatprep.mubr.bf16.mxu0 0
        %3304 = vmatmul.mubr.bf16.gmra.mrb[0].mxu0 %v2299
        %v3305 = vpop.f32.mrb[0].mxu0
        %v3306 = vadd.f32 %v3145, %v3305
        %v3307 = vpop.f32.mrb[0].mxu0
        %v3308 = vpop.f32.mrb[0].mxu0
        %v3309 = vadd.f32 %v3148, %v3308
        %v3310 = vpop.f32.mrb[0].mxu0
        %3311 = vmatprep.mubr.bf16.mxu0 0
        %3312 = vmatmul.mubr.bf16.gmra.mrb[0].mxu0 %v2302
        %v3313 = vpop.f32.mrb[0].mxu0
        %v3314 = vadd.f32 %v3153, %v3313
        %v3315 = vpop.f32.mrb[0].mxu0
        %v3316 = vpop.f32.mrb[0].mxu0
        %v3317 = vadd.f32 %v3156, %v3316
        %v3318 = vpop.f32.mrb[0].mxu0
        %3319 = vmatprep.mubr.bf16.mxu0 0
        %3320 = vmatmul.mubr.bf16.gmra.mrb[0].mxu0 %v2305
        %v3321 = vpop.f32.mrb[0].mxu0
        %v3322 = vadd.f32 %v3161, %v3321
        %v3323 = vpop.f32.mrb[0].mxu0
        %v3324 = vpop.f32.mrb[0].mxu0
        %v3325 = vadd.f32 %v3164, %v3324
        %v3326 = vpop.f32.mrb[0].mxu0
        %3327 = vmatprep.mubr.bf16.mxu0 0
        %3328 = vmatmul.mubr.bf16.gmra.mrb[0].mxu0 %v2308
        %v3329 = vpop.f32.mrb[0].mxu0
        %v3330 = vadd.f32 %v3169, %v3329
        %v3331 = vpop.f32.mrb[0].mxu0
        %v3332 = vpop.f32.mrb[0].mxu0
        %v3333 = vadd.f32 %v3172, %v3332
        %v3334 = vpop.f32.mrb[0].mxu0
        %3335 = vmatprep.mubr.bf16.mxu0 0
        %3336 = vmatmul.mubr.bf16.gmra.mrb[0].mxu0 %v2311
        %v3337 = vpop.f32.mrb[0].mxu0
        %v3338 = vadd.f32 %v3177, %v3337
        %v3339 = vpop.f32.mrb[0].mxu0
        %v3340 = vpop.f32.mrb[0].mxu0
        %v3341 = vadd.f32 %v3180, %v3340
        %v3342 = vpop.f32.mrb[0].mxu0
        %3343 = vdwg.mxu0
        %v3344 = vld [vmem:[#allocation2 + $0x30] sm:$0xff]
        %v3345 = vld [vmem:[#allocation2 + $0x38] sm:$0xff]
        %v3346 = vld [vmem:[#allocation2 + $0x40] sm:$0xff]
        %v3347 = vld [vmem:[#allocation2 + $0x48] sm:$0xff]
        %v3348 = vld [vmem:[#allocation2 + $0x50] sm:$0xff]
        %v3349 = vld [vmem:[#allocation2 + $0x58] sm:$0xff]
        %v3350 = vld [vmem:[#allocation2 + $0x60] sm:$0xff]
        %v3351 = vld [vmem:[#allocation2 + $0x68] sm:$0xff]
        %v3352 = vld [vmem:[#allocation2 + $0x70] sm:$0xff]
        %v3353 = vld [vmem:[#allocation2 + $0x78] sm:$0xff]
        %v3354 = vld [vmem:[#allocation2 + $0x80] sm:$0xff]
        %v3355 = vld [vmem:[#allocation2 + $0x88] sm:$0xff]
        %v3356 = vld [vmem:[#allocation2 + $0x90] sm:$0xff]
        %v3357 = vld [vmem:[#allocation2 + $0x98] sm:$0xff]
        %v3358 = vld [vmem:[#allocation2 + $0xa0] sm:$0xff]
        %v3359 = vld [vmem:[#allocation2 + $0xa8] sm:$0xff]
        %v3360 = vld [vmem:[#allocation2 + $0xb0] sm:$0xff]
        %v3361 = vld [vmem:[#allocation2 + $0xb8] sm:$0xff]
        %v3362 = vld [vmem:[#allocation2 + $0xc0] sm:$0xff]
        %v3363 = vld [vmem:[#allocation2 + $0xc8] sm:$0xff]
        %v3364 = vld [vmem:[#allocation2 + $0xd0] sm:$0xff]
        %v3365 = vld [vmem:[#allocation2 + $0xd8] sm:$0xff]
        %v3366 = vld [vmem:[#allocation2 + $0xe0] sm:$0xff]
        %v3367 = vld [vmem:[#allocation2 + $0xe8] sm:$0xff]
        %v3368 = vld [vmem:[#allocation2 + $0xf0] sm:$0xff]
        %v3369 = vld [vmem:[#allocation2 + $0xf8] sm:$0xff]
        %v3370 = vld [vmem:[#allocation2 + $0x100] sm:$0xff]
        %v3371 = vld [vmem:[#allocation2 + $0x108] sm:$0xff]
        %v3372 = vld [vmem:[#allocation2 + $0x110] sm:$0xff]
        %v3373 = vld [vmem:[#allocation2 + $0x118] sm:$0xff]
        %v3374 = vld [vmem:[#allocation2 + $0x120] sm:$0xff]
        %v3375 = vld [vmem:[#allocation2 + $0x128] sm:$0xff]
        %v3376 = vld [vmem:[#allocation2 + $0x130] sm:$0xff]
        %v3377 = vld [vmem:[#allocation2 + $0x138] sm:$0xff]
        %v3378 = vld [vmem:[#allocation2 + $0x140] sm:$0xff]
        %v3379 = vld [vmem:[#allocation2 + $0x148] sm:$0xff]
        %v3380 = vld [vmem:[#allocation2 + $0x150] sm:$0xff]
        %v3381 = vld [vmem:[#allocation2 + $0x158] sm:$0xff]
        %v3382 = vld [vmem:[#allocation2 + $0x160] sm:$0xff]
        %v3383 = vld [vmem:[#allocation2 + $0x168] sm:$0xff]
        %v3384 = vld [vmem:[#allocation2 + $0x170] sm:$0xff]
        %v3385 = vld [vmem:[#allocation2 + $0x178] sm:$0xff]
        %v3386 = vld [vmem:[#allocation2 + $0x180] sm:$0xff]
        %v3387 = vld [vmem:[#allocation2 + $0x188] sm:$0xff]
        %v3388 = vld [vmem:[#allocation2 + $0x190] sm:$0xff]
        %v3389 = vld [vmem:[#allocation2 + $0x198] sm:$0xff]
        %v3390 = vld [vmem:[#allocation2 + $0x1a0] sm:$0xff]
        %v3391 = vld [vmem:[#allocation2 + $0x1a8] sm:$0xff]
        %s3392 = scalar_lea.vmem [#allocation8], 384
        %v3393 = vld [vmem:[%s3392] sm:$0xf]
        %v3394 = vld [vmem:[%s3392 + $0x4] sm:$0xf]
        %v3395 = vld [vmem:[%s3392 + $0x8] sm:$0xf]
        %v3396 = vld [vmem:[%s3392 + $0xc] sm:$0xf]
        %v3397 = vld [vmem:[%s3392 + $0x10] sm:$0xf]
        %v3398 = vld [vmem:[%s3392 + $0x14] sm:$0xf]
        %v3399 = vld [vmem:[%s3392 + $0x18] sm:$0xf]
        %v3400 = vld [vmem:[%s3392 + $0x1c] sm:$0xf]
        %v3401 = vld [vmem:[%s3392 + $0x20] sm:$0xf]
        %v3402 = vld [vmem:[%s3392 + $0x24] sm:$0xf]
        %v3403 = vld [vmem:[%s3392 + $0x28] sm:$0xf]
        %v3404 = vld [vmem:[%s3392 + $0x2c] sm:$0xf]
        %v3405 = vld [vmem:[%s3392 + $0x30] sm:$0xf]
        %v3406 = vld [vmem:[%s3392 + $0x34] sm:$0xf]
        %v3407 = vld [vmem:[%s3392 + $0x38] sm:$0xf]
        %v3408 = vld [vmem:[%s3392 + $0x3c] sm:$0xf]
        %v3409 = vld [vmem:[%s3392 + $0x40] sm:$0xf]
        %v3410 = vld [vmem:[%s3392 + $0x44] sm:$0xf]
        %v3411 = vld [vmem:[%s3392 + $0x48] sm:$0xf]
        %v3412 = vld [vmem:[%s3392 + $0x4c] sm:$0xf]
        %v3413 = vld [vmem:[%s3392 + $0x50] sm:$0xf]
        %v3414 = vld [vmem:[%s3392 + $0x54] sm:$0xf]
        %v3415 = vld [vmem:[%s3392 + $0x58] sm:$0xf]
        %v3416 = vld [vmem:[%s3392 + $0x5c] sm:$0xf]
        %v3417 = vld [vmem:[%s3392 + $0x60] sm:$0xf]
        %v3418 = vld [vmem:[%s3392 + $0x64] sm:$0xf]
        %v3419 = vld [vmem:[%s3392 + $0x68] sm:$0xf]
        %v3420 = vld [vmem:[%s3392 + $0x6c] sm:$0xf]
        %v3421 = vld [vmem:[%s3392 + $0x70] sm:$0xf]
        %v3422 = vld [vmem:[%s3392 + $0x74] sm:$0xf]
        %v3423 = vld [vmem:[%s3392 + $0x78] sm:$0xf]
        %v3424 = vld [vmem:[%s3392 + $0x7c] sm:$0xf]
        %v3425 = vld [vmem:[%s3392 + $0x80] sm:$0xf]
        %v3426 = vld [vmem:[%s3392 + $0x84] sm:$0xf]
        %v3427 = vld [vmem:[%s3392 + $0x88] sm:$0xf]
        %v3428 = vld [vmem:[%s3392 + $0x8c] sm:$0xf]
        %v3429 = vld [vmem:[%s3392 + $0x90] sm:$0xf]
        %v3430 = vld [vmem:[%s3392 + $0x94] sm:$0xf]
        %v3431 = vld [vmem:[%s3392 + $0x98] sm:$0xf]
        %v3432 = vld [vmem:[%s3392 + $0x9c] sm:$0xf]
        %v3433 = vld [vmem:[%s3392 + $0xa0] sm:$0xf]
        %v3434 = vld [vmem:[%s3392 + $0xa4] sm:$0xf]
        %v3435 = vld [vmem:[%s3392 + $0xa8] sm:$0xf]
        %v3436 = vld [vmem:[%s3392 + $0xac] sm:$0xf]
        %v3437 = vld [vmem:[%s3392 + $0xb0] sm:$0xf]
        %v3438 = vld [vmem:[%s3392 + $0xb4] sm:$0xf]
        %v3439 = vld [vmem:[%s3392 + $0xb8] sm:$0xf]
        %v3440 = vld [vmem:[%s3392 + $0xbc] sm:$0xf]
        %v3489 = vunpack.c.l.b16 %v3393
        %v3490 = vunpack.c.l.b16 %v3394
        %v3491 = vunpack.c.l.b16 %v3395
        %v3492 = vunpack.c.l.b16 %v3396
        %v3493 = vunpack.c.l.b16 %v3397
        %v3494 = vunpack.c.l.b16 %v3398
        %v3495 = vunpack.c.l.b16 %v3399
        %v3496 = vunpack.c.l.b16 %v3400
        %v3497 = vunpack.c.l.b16 %v3401
        %v3498 = vunpack.c.l.b16 %v3402
        %v3499 = vunpack.c.l.b16 %v3403
        %v3500 = vunpack.c.l.b16 %v3404
        %v3501 = vunpack.c.l.b16 %v3405
        %v3502 = vunpack.c.l.b16 %v3406
        %v3503 = vunpack.c.l.b16 %v3407
        %v3504 = vunpack.c.l.b16 %v3408
        %v3505 = vunpack.c.l.b16 %v3409
        %v3506 = vunpack.c.l.b16 %v3410
        %v3507 = vunpack.c.l.b16 %v3411
        %v3508 = vunpack.c.l.b16 %v3412
        %v3509 = vunpack.c.l.b16 %v3413
        %v3510 = vunpack.c.l.b16 %v3414
        %v3511 = vunpack.c.l.b16 %v3415
        %v3512 = vunpack.c.l.b16 %v3416
        %v3513 = vunpack.c.l.b16 %v3417
        %v3514 = vunpack.c.l.b16 %v3418
        %v3515 = vunpack.c.l.b16 %v3419
        %v3516 = vunpack.c.l.b16 %v3420
        %v3517 = vunpack.c.l.b16 %v3421
        %v3518 = vunpack.c.l.b16 %v3422
        %v3519 = vunpack.c.l.b16 %v3423
        %v3520 = vunpack.c.l.b16 %v3424
        %v3521 = vunpack.c.l.b16 %v3425
        %v3522 = vunpack.c.l.b16 %v3426
        %v3523 = vunpack.c.l.b16 %v3427
        %v3524 = vunpack.c.l.b16 %v3428
        %v3525 = vunpack.c.l.b16 %v3429
        %v3526 = vunpack.c.l.b16 %v3430
        %v3527 = vunpack.c.l.b16 %v3431
        %v3528 = vunpack.c.l.b16 %v3432
        %v3529 = vunpack.c.l.b16 %v3433
        %v3530 = vunpack.c.l.b16 %v3434
        %v3531 = vunpack.c.l.b16 %v3435
        %v3532 = vunpack.c.l.b16 %v3436
        %v3533 = vunpack.c.l.b16 %v3437
        %v3534 = vunpack.c.l.b16 %v3438
        %v3535 = vunpack.c.l.b16 %v3439
        %v3536 = vunpack.c.l.b16 %v3440
        %v3537 = vpack.c.b16 %v3490, %v3489
        %v3538 = vpack.c.b16 %v3492, %v3491
        %v3539 = vpack.c.b16 %v3494, %v3493
        %v3540 = vpack.c.b16 %v3496, %v3495
        %v3541 = vpack.c.b16 %v3498, %v3497
        %v3542 = vpack.c.b16 %v3500, %v3499
        %v3543 = vpack.c.b16 %v3502, %v3501
        %v3544 = vpack.c.b16 %v3504, %v3503
        %v3545 = vpack.c.b16 %v3506, %v3505
        %v3546 = vpack.c.b16 %v3508, %v3507
        %v3547 = vpack.c.b16 %v3510, %v3509
        %v3548 = vpack.c.b16 %v3512, %v3511
        %v3549 = vpack.c.b16 %v3514, %v3513
        %v3550 = vpack.c.b16 %v3516, %v3515
        %v3551 = vpack.c.b16 %v3518, %v3517
        %v3552 = vpack.c.b16 %v3520, %v3519
        %v3553 = vpack.c.b16 %v3522, %v3521
        %v3554 = vpack.c.b16 %v3524, %v3523
        %v3555 = vpack.c.b16 %v3526, %v3525
        %v3556 = vpack.c.b16 %v3528, %v3527
        %v3557 = vpack.c.b16 %v3530, %v3529
        %v3558 = vpack.c.b16 %v3532, %v3531
        %v3559 = vpack.c.b16 %v3534, %v3533
        %v3560 = vpack.c.b16 %v3536, %v3535
        %3585 = vmatprep.subr.bf16.mxu0 0
        %3586 = vmatpush1.bf16.msra.mxu0 %v3537
        %3587 = vmatprep.subr.bf16.mxu0 0
        %3588 = vmatpush1.bf16.msra.mxu0 %v3538
        %3589 = vmatprep.subr.bf16.mxu0 0
        %3590 = vmatpush1.bf16.msra.mxu0 %v3539
        %3591 = vmatprep.subr.bf16.mxu0 0
        %3592 = vmatpush1.bf16.msra.mxu0 %v3540
        %3593 = vmatprep.subr.bf16.mxu0 0
        %3594 = vmatpush1.bf16.msra.mxu0 %v3541
        %3595 = vmatprep.subr.bf16.mxu0 0
        %3596 = vmatpush1.bf16.msra.mxu0 %v3542
        %3597 = vmatprep.subr.bf16.mxu0 0
        %3598 = vmatpush1.bf16.msra.mxu0 %v3543
        %3599 = vmatprep.subr.bf16.mxu0 0
        %3600 = vmatpush1.bf16.msra.mxu0 %v3544
        %3601 = vmatprep.subr.bf16.mxu0 0
        %3602 = vmatpush1.bf16.msra.mxu0 %v3545
        %3603 = vmatprep.subr.bf16.mxu0 0
        %3604 = vmatpush1.bf16.msra.mxu0 %v3546
        %3605 = vmatprep.subr.bf16.mxu0 0
        %3606 = vmatpush1.bf16.msra.mxu0 %v3547
        %3607 = vmatprep.subr.bf16.mxu0 0
        %3608 = vmatpush1.bf16.msra.mxu0 %v3548
        %3609 = vmatprep.subr.bf16.mxu0 0
        %3610 = vmatpush1.bf16.msra.mxu0 %v3549
        %3611 = vmatprep.subr.bf16.mxu0 0
        %3612 = vmatpush1.bf16.msra.mxu0 %v3550
        %3613 = vmatprep.subr.bf16.mxu0 0
        %3614 = vmatpush1.bf16.msra.mxu0 %v3551
        %3615 = vmatprep.subr.bf16.mxu0 0
        %3616 = vmatpush1.bf16.msra.mxu0 %v3552
        %3617 = vmatprep.mubr.bf16.mxu0 %v3345
        %3618 = vmatmul.mubr.bf16.gmra.mrb[0].mxu0 %v3344
        %v3619 = vpop.f32.mrb[0].mxu0
        %v3620 = vadd.f32 0.0, %v3619
        %v3621 = vpop.f32.mrb[0].mxu0
        %v3622 = vpop.f32.mrb[0].mxu0
        %v3623 = vadd.f32 0.0, %v3622
        %v3624 = vpop.f32.mrb[0].mxu0
        %3625 = vmatprep.mubr.bf16.mxu0 %v3348
        %3626 = vmatmul.mubr.bf16.gmra.mrb[0].mxu0 %v3347
        %v3627 = vpop.f32.mrb[0].mxu0
        %v3628 = vadd.f32 0.0, %v3627
        %v3629 = vpop.f32.mrb[0].mxu0
        %v3630 = vpop.f32.mrb[0].mxu0
        %v3631 = vadd.f32 0.0, %v3630
        %v3632 = vpop.f32.mrb[0].mxu0
        %3633 = vmatprep.mubr.bf16.mxu0 %v3351
        %3634 = vmatmul.mubr.bf16.gmra.mrb[0].mxu0 %v3350
        %v3635 = vpop.f32.mrb[0].mxu0
        %v3636 = vadd.f32 0.0, %v3635
        %v3637 = vpop.f32.mrb[0].mxu0
        %v3638 = vpop.f32.mrb[0].mxu0
        %v3639 = vadd.f32 0.0, %v3638
        %v3640 = vpop.f32.mrb[0].mxu0
        %3641 = vmatprep.mubr.bf16.mxu0 %v3354
        %3642 = vmatmul.mubr.bf16.gmra.mrb[0].mxu0 %v3353
        %v3643 = vpop.f32.mrb[0].mxu0
        %v3644 = vadd.f32 0.0, %v3643
        %v3645 = vpop.f32.mrb[0].mxu0
        %v3646 = vpop.f32.mrb[0].mxu0
        %v3647 = vadd.f32 0.0, %v3646
        %v3648 = vpop.f32.mrb[0].mxu0
        %3649 = vmatprep.mubr.bf16.mxu0 %v3357
        %3650 = vmatmul.mubr.bf16.gmra.mrb[0].mxu0 %v3356
        %v3651 = vpop.f32.mrb[0].mxu0
        %v3652 = vadd.f32 0.0, %v3651
        %v3653 = vpop.f32.mrb[0].mxu0
        %v3654 = vpop.f32.mrb[0].mxu0
        %v3655 = vadd.f32 0.0, %v3654
        %v3656 = vpop.f32.mrb[0].mxu0
        %3657 = vmatprep.mubr.bf16.mxu0 %v3360
        %3658 = vmatmul.mubr.bf16.gmra.mrb[0].mxu0 %v3359
        %v3659 = vpop.f32.mrb[0].mxu0
        %v3660 = vadd.f32 0.0, %v3659
        %v3661 = vpop.f32.mrb[0].mxu0
        %v3662 = vpop.f32.mrb[0].mxu0
        %v3663 = vadd.f32 0.0, %v3662
        %v3664 = vpop.f32.mrb[0].mxu0
        %3665 = vmatprep.mubr.bf16.mxu0 %v3363
        %3666 = vmatmul.mubr.bf16.gmra.mrb[0].mxu0 %v3362
        %v3667 = vpop.f32.mrb[0].mxu0
        %v3668 = vadd.f32 0.0, %v3667
        %v3669 = vpop.f32.mrb[0].mxu0
        %v3670 = vpop.f32.mrb[0].mxu0
        %v3671 = vadd.f32 0.0, %v3670
        %v3672 = vpop.f32.mrb[0].mxu0
        %3673 = vmatprep.mubr.bf16.mxu0 %v3366
        %3674 = vmatmul.mubr.bf16.gmra.mrb[0].mxu0 %v3365
        %v3675 = vpop.f32.mrb[0].mxu0
        %v3676 = vadd.f32 0.0, %v3675
        %v3677 = vpop.f32.mrb[0].mxu0
        %v3678 = vpop.f32.mrb[0].mxu0
        %v3679 = vadd.f32 0.0, %v3678
        %v3680 = vpop.f32.mrb[0].mxu0
        %3681 = vmatprep.mubr.bf16.mxu0 %v3369
        %3682 = vmatmul.mubr.bf16.gmra.mrb[0].mxu0 %v3368
        %v3683 = vpop.f32.mrb[0].mxu0
        %v3684 = vadd.f32 0.0, %v3683
        %v3685 = vpop.f32.mrb[0].mxu0
        %v3686 = vpop.f32.mrb[0].mxu0
        %v3687 = vadd.f32 0.0, %v3686
        %v3688 = vpop.f32.mrb[0].mxu0
        %3689 = vmatprep.mubr.bf16.mxu0 %v3372
        %3690 = vmatmul.mubr.bf16.gmra.mrb[0].mxu0 %v3371
        %v3691 = vpop.f32.mrb[0].mxu0
        %v3692 = vadd.f32 0.0, %v3691
        %v3693 = vpop.f32.mrb[0].mxu0
        %v3694 = vpop.f32.mrb[0].mxu0
        %v3695 = vadd.f32 0.0, %v3694
        %v3696 = vpop.f32.mrb[0].mxu0
        %3697 = vmatprep.mubr.bf16.mxu0 %v3375
        %3698 = vmatmul.mubr.bf16.gmra.mrb[0].mxu0 %v3374
        %v3699 = vpop.f32.mrb[0].mxu0
        %v3700 = vadd.f32 0.0, %v3699
        %v3701 = vpop.f32.mrb[0].mxu0
        %v3702 = vpop.f32.mrb[0].mxu0
        %v3703 = vadd.f32 0.0, %v3702
        %v3704 = vpop.f32.mrb[0].mxu0
        %3705 = vmatprep.mubr.bf16.mxu0 %v3378
        %3706 = vmatmul.mubr.bf16.gmra.mrb[0].mxu0 %v3377
        %v3707 = vpop.f32.mrb[0].mxu0
        %v3708 = vadd.f32 0.0, %v3707
        %v3709 = vpop.f32.mrb[0].mxu0
        %v3710 = vpop.f32.mrb[0].mxu0
        %v3711 = vadd.f32 0.0, %v3710
        %v3712 = vpop.f32.mrb[0].mxu0
        %3713 = vmatprep.mubr.bf16.mxu0 %v3381
        %3714 = vmatmul.mubr.bf16.gmra.mrb[0].mxu0 %v3380
        %v3715 = vpop.f32.mrb[0].mxu0
        %v3716 = vadd.f32 0.0, %v3715
        %v3717 = vpop.f32.mrb[0].mxu0
        %v3718 = vpop.f32.mrb[0].mxu0
        %v3719 = vadd.f32 0.0, %v3718
        %v3720 = vpop.f32.mrb[0].mxu0
        %3721 = vmatprep.mubr.bf16.mxu0 %v3384
        %3722 = vmatmul.mubr.bf16.gmra.mrb[0].mxu0 %v3383
        %v3723 = vpop.f32.mrb[0].mxu0
        %v3724 = vadd.f32 0.0, %v3723
        %v3725 = vpop.f32.mrb[0].mxu0
        %v3726 = vpop.f32.mrb[0].mxu0
        %v3727 = vadd.f32 0.0, %v3726
        %v3728 = vpop.f32.mrb[0].mxu0
        %3729 = vmatprep.mubr.bf16.mxu0 %v3387
        %3730 = vmatmul.mubr.bf16.gmra.mrb[0].mxu0 %v3386
        %v3731 = vpop.f32.mrb[0].mxu0
        %v3732 = vadd.f32 0.0, %v3731
        %v3733 = vpop.f32.mrb[0].mxu0
        %v3734 = vpop.f32.mrb[0].mxu0
        %v3735 = vadd.f32 0.0, %v3734
        %v3736 = vpop.f32.mrb[0].mxu0
        %3737 = vmatprep.mubr.bf16.mxu0 %v3390
        %3738 = vmatmul.mubr.bf16.gmra.mrb[0].mxu0 %v3389
        %v3739 = vpop.f32.mrb[0].mxu0
        %v3740 = vadd.f32 0.0, %v3739
        %v3741 = vpop.f32.mrb[0].mxu0
        %v3742 = vpop.f32.mrb[0].mxu0
        %v3743 = vadd.f32 0.0, %v3742
        %v3744 = vpop.f32.mrb[0].mxu0
        %3745 = vdwg.mxu0
        %3746 = vmatprep.subr.bf16.mxu0 0
        %3747 = vmatpush1.bf16.msra.mxu0 %v3553
        %3748 = vmatprep.subr.bf16.mxu0 0
        %3749 = vmatpush1.bf16.msra.mxu0 %v3554
        %3750 = vmatprep.subr.bf16.mxu0 0
        %3751 = vmatpush1.bf16.msra.mxu0 %v3555
        %3752 = vmatprep.subr.bf16.mxu0 0
        %3753 = vmatpush1.bf16.msra.mxu0 %v3556
        %3754 = vmatprep.subr.bf16.mxu0 0
        %3755 = vmatpush1.bf16.msra.mxu0 %v3557
        %3756 = vmatprep.subr.bf16.mxu0 0
        %3757 = vmatpush1.bf16.msra.mxu0 %v3558
        %3758 = vmatprep.subr.bf16.mxu0 0
        %3759 = vmatpush1.bf16.msra.mxu0 %v3559
        %3760 = vmatprep.subr.bf16.mxu0 0
        %3761 = vmatpush1.bf16.msra.mxu0 %v3560
        %3762 = vmatprep.subr.bf16.mxu0 0
        %3763 = vmatpush1.bf16.msra.mxu0 0
        %3764 = vmatprep.subr.bf16.mxu0 0
        %3765 = vmatpush1.bf16.msra.mxu0 0
        %3766 = vmatprep.subr.bf16.mxu0 0
        %3767 = vmatpush1.bf16.msra.mxu0 0
        %3768 = vmatprep.subr.bf16.mxu0 0
        %3769 = vmatpush1.bf16.msra.mxu0 0
        %3770 = vmatprep.subr.bf16.mxu0 0
        %3771 = vmatpush1.bf16.msra.mxu0 0
        %3772 = vmatprep.subr.bf16.mxu0 0
        %3773 = vmatpush1.bf16.msra.mxu0 0
        %3774 = vmatprep.subr.bf16.mxu0 0
        %3775 = vmatpush1.bf16.msra.mxu0 0
        %3776 = vmatprep.subr.bf16.mxu0 0
        %3777 = vmatpush1.bf16.msra.mxu0 0
        %3778 = vmatprep.mubr.bf16.mxu0 0
        %3779 = vmatmul.mubr.bf16.gmra.mrb[0].mxu0 %v3346
        %v3780 = vpop.f32.mrb[0].mxu0
        %v3781 = vadd.f32 %v3620, %v3780
        %v3782 = vpop.f32.mrb[0].mxu0
        %v3783 = vpop.f32.mrb[0].mxu0
        %v3784 = vadd.f32 %v3623, %v3783
        %v3785 = vpop.f32.mrb[0].mxu0
        %3786 = vmatprep.mubr.bf16.mxu0 0
        %3787 = vmatmul.mubr.bf16.gmra.mrb[0].mxu0 %v3349
        %v3788 = vpop.f32.mrb[0].mxu0
        %v3789 = vadd.f32 %v3628, %v3788
        %v3790 = vpop.f32.mrb[0].mxu0
        %v3791 = vpop.f32.mrb[0].mxu0
        %v3792 = vadd.f32 %v3631, %v3791
        %v3793 = vpop.f32.mrb[0].mxu0
        %3794 = vmatprep.mubr.bf16.mxu0 0
        %3795 = vmatmul.mubr.bf16.gmra.mrb[0].mxu0 %v3352
        %v3796 = vpop.f32.mrb[0].mxu0
        %v3797 = vadd.f32 %v3636, %v3796
        %v3798 = vpop.f32.mrb[0].mxu0
        %v3799 = vpop.f32.mrb[0].mxu0
        %v3800 = vadd.f32 %v3639, %v3799
        %v3801 = vpop.f32.mrb[0].mxu0
        %3802 = vmatprep.mubr.bf16.mxu0 0
        %3803 = vmatmul.mubr.bf16.gmra.mrb[0].mxu0 %v3355
        %v3804 = vpop.f32.mrb[0].mxu0
        %v3805 = vadd.f32 %v3644, %v3804
        %v3806 = vpop.f32.mrb[0].mxu0
        %v3807 = vpop.f32.mrb[0].mxu0
        %v3808 = vadd.f32 %v3647, %v3807
        %v3809 = vpop.f32.mrb[0].mxu0
        %3810 = vmatprep.mubr.bf16.mxu0 0
        %3811 = vmatmul.mubr.bf16.gmra.mrb[0].mxu0 %v3358
        %v3812 = vpop.f32.mrb[0].mxu0
        %v3813 = vadd.f32 %v3652, %v3812
        %v3814 = vpop.f32.mrb[0].mxu0
        %v3815 = vpop.f32.mrb[0].mxu0
        %v3816 = vadd.f32 %v3655, %v3815
        %v3817 = vpop.f32.mrb[0].mxu0
        %3818 = vmatprep.mubr.bf16.mxu0 0
        %3819 = vmatmul.mubr.bf16.gmra.mrb[0].mxu0 %v3361
        %v3820 = vpop.f32.mrb[0].mxu0
        %v3821 = vadd.f32 %v3660, %v3820
        %v3822 = vpop.f32.mrb[0].mxu0
        %v3823 = vpop.f32.mrb[0].mxu0
        %v3824 = vadd.f32 %v3663, %v3823
        %v3825 = vpop.f32.mrb[0].mxu0
        %3826 = vmatprep.mubr.bf16.mxu0 0
        %3827 = vmatmul.mubr.bf16.gmra.mrb[0].mxu0 %v3364
        %v3828 = vpop.f32.mrb[0].mxu0
        %v3829 = vadd.f32 %v3668, %v3828
        %v3830 = vpop.f32.mrb[0].mxu0
        %v3831 = vpop.f32.mrb[0].mxu0
        %v3832 = vadd.f32 %v3671, %v3831
        %v3833 = vpop.f32.mrb[0].mxu0
        %3834 = vmatprep.mubr.bf16.mxu0 0
        %3835 = vmatmul.mubr.bf16.gmra.mrb[0].mxu0 %v3367
        %v3836 = vpop.f32.mrb[0].mxu0
        %v3837 = vadd.f32 %v3676, %v3836
        %v3838 = vpop.f32.mrb[0].mxu0
        %v3839 = vpop.f32.mrb[0].mxu0
        %v3840 = vadd.f32 %v3679, %v3839
        %v3841 = vpop.f32.mrb[0].mxu0
        %3842 = vmatprep.mubr.bf16.mxu0 0
        %3843 = vmatmul.mubr.bf16.gmra.mrb[0].mxu0 %v3370
        %v3844 = vpop.f32.mrb[0].mxu0
        %v3845 = vadd.f32 %v3684, %v3844
        %v3846 = vpop.f32.mrb[0].mxu0
        %v3847 = vpop.f32.mrb[0].mxu0
        %v3848 = vadd.f32 %v3687, %v3847
        %v3849 = vpop.f32.mrb[0].mxu0
        %3850 = vmatprep.mubr.bf16.mxu0 0
        %3851 = vmatmul.mubr.bf16.gmra.mrb[0].mxu0 %v3373
        %v3852 = vpop.f32.mrb[0].mxu0
        %v3853 = vadd.f32 %v3692, %v3852
        %v3854 = vpop.f32.mrb[0].mxu0
        %v3855 = vpop.f32.mrb[0].mxu0
        %v3856 = vadd.f32 %v3695, %v3855
        %v3857 = vpop.f32.mrb[0].mxu0
        %3858 = vmatprep.mubr.bf16.mxu0 0
        %3859 = vmatmul.mubr.bf16.gmra.mrb[0].mxu0 %v3376
        %v3860 = vpop.f32.mrb[0].mxu0
        %v3861 = vadd.f32 %v3700, %v3860
        %v3862 = vpop.f32.mrb[0].mxu0
        %v3863 = vpop.f32.mrb[0].mxu0
        %v3864 = vadd.f32 %v3703, %v3863
        %v3865 = vpop.f32.mrb[0].mxu0
        %3866 = vmatprep.mubr.bf16.mxu0 0
        %3867 = vmatmul.mubr.bf16.gmra.mrb[0].mxu0 %v3379
        %v3868 = vpop.f32.mrb[0].mxu0
        %v3869 = vadd.f32 %v3708, %v3868
        %v3870 = vpop.f32.mrb[0].mxu0
        %v3871 = vpop.f32.mrb[0].mxu0
        %v3872 = vadd.f32 %v3711, %v3871
        %v3873 = vpop.f32.mrb[0].mxu0
        %3874 = vmatprep.mubr.bf16.mxu0 0
        %3875 = vmatmul.mubr.bf16.gmra.mrb[0].mxu0 %v3382
        %v3876 = vpop.f32.mrb[0].mxu0
        %v3877 = vadd.f32 %v3716, %v3876
        %v3878 = vpop.f32.mrb[0].mxu0
        %v3879 = vpop.f32.mrb[0].mxu0
        %v3880 = vadd.f32 %v3719, %v3879
        %v3881 = vpop.f32.mrb[0].mxu0
        %3882 = vmatprep.mubr.bf16.mxu0 0
        %3883 = vmatmul.mubr.bf16.gmra.mrb[0].mxu0 %v3385
        %v3884 = vpop.f32.mrb[0].mxu0
        %v3885 = vadd.f32 %v3724, %v3884
        %v3886 = vpop.f32.mrb[0].mxu0
        %v3887 = vpop.f32.mrb[0].mxu0
        %v3888 = vadd.f32 %v3727, %v3887
        %v3889 = vpop.f32.mrb[0].mxu0
        %3890 = vmatprep.mubr.bf16.mxu0 0
        %3891 = vmatmul.mubr.bf16.gmra.mrb[0].mxu0 %v3388
        %v3892 = vpop.f32.mrb[0].mxu0
        %v3893 = vadd.f32 %v3732, %v3892
        %v3894 = vpop.f32.mrb[0].mxu0
        %v3895 = vpop.f32.mrb[0].mxu0
        %v3896 = vadd.f32 %v3735, %v3895
        %v3897 = vpop.f32.mrb[0].mxu0
        %3898 = vmatprep.mubr.bf16.mxu0 0
        %3899 = vmatmul.mubr.bf16.gmra.mrb[0].mxu0 %v3391
        %v3900 = vpop.f32.mrb[0].mxu0
        %v3901 = vadd.f32 %v3740, %v3900
        %v3902 = vpop.f32.mrb[0].mxu0
        %v3903 = vpop.f32.mrb[0].mxu0
        %v3904 = vadd.f32 %v3743, %v3903
        %v3905 = vpop.f32.mrb[0].mxu0
        %3906 = vdwg.mxu0
        %v3907 = vadd.f32 %v3218, %v3781
        %v3908 = vadd.f32 %v3221, %v3784
        %v3909 = vadd.f32 %v3226, %v3789
        %v3910 = vadd.f32 %v3229, %v3792
        %v3911 = vadd.f32 %v3234, %v3797
        %v3912 = vadd.f32 %v3237, %v3800
        %v3913 = vadd.f32 %v3242, %v3805
        %v3914 = vadd.f32 %v3245, %v3808
        %v3915 = vadd.f32 %v3250, %v3813
        %v3916 = vadd.f32 %v3253, %v3816
        %v3917 = vadd.f32 %v3258, %v3821
        %v3918 = vadd.f32 %v3261, %v3824
        %v3919 = vadd.f32 %v3266, %v3829
        %v3920 = vadd.f32 %v3269, %v3832
        %v3921 = vadd.f32 %v3274, %v3837
        %v3922 = vadd.f32 %v3277, %v3840
        %v3923 = vadd.f32 %v3282, %v3845
        %v3924 = vadd.f32 %v3285, %v3848
        %v3925 = vadd.f32 %v3290, %v3853
        %v3926 = vadd.f32 %v3293, %v3856
        %v3927 = vadd.f32 %v3298, %v3861
        %v3928 = vadd.f32 %v3301, %v3864
        %v3929 = vadd.f32 %v3306, %v3869
        %v3930 = vadd.f32 %v3309, %v3872
        %v3931 = vadd.f32 %v3314, %v3877
        %v3932 = vadd.f32 %v3317, %v3880
        %v3933 = vadd.f32 %v3322, %v3885
        %v3934 = vadd.f32 %v3325, %v3888
        %v3935 = vadd.f32 %v3330, %v3893
        %v3936 = vadd.f32 %v3333, %v3896
        %v3937 = vadd.f32 %v3338, %v3901
        %v3938 = vadd.f32 %v3341, %v3904
        %v3939 = vld [vmem:[%s5] sm:$0x1]
        %v3941 = vlaneseq
        %v3942 = vshrl.u32 %v3941, 7
        %v3943 = vsub.s32 0, %v3942
        %v3944 = vrot.slane %v3939, %v3943
        %v3946 = vadd.f32 %v3907, %v3944
        %v3947 = vadd.f32 %v3908, %v3944
        %v3948 = vadd.f32 %v3909, %v3944
        %v3949 = vadd.f32 %v3910, %v3944
        %v3950 = vadd.f32 %v3911, %v3944
        %v3951 = vadd.f32 %v3912, %v3944
        %v3952 = vadd.f32 %v3913, %v3944
        %v3953 = vadd.f32 %v3914, %v3944
        %v3954 = vadd.f32 %v3915, %v3944
        %v3955 = vadd.f32 %v3916, %v3944
        %v3956 = vadd.f32 %v3917, %v3944
        %v3957 = vadd.f32 %v3918, %v3944
        %v3958 = vadd.f32 %v3919, %v3944
        %v3959 = vadd.f32 %v3920, %v3944
        %v3960 = vadd.f32 %v3921, %v3944
        %v3961 = vadd.f32 %v3922, %v3944
        %v3962 = vadd.f32 %v3923, %v3944
        %v3963 = vadd.f32 %v3924, %v3944
        %v3964 = vadd.f32 %v3925, %v3944
        %v3965 = vadd.f32 %v3926, %v3944
        %v3966 = vadd.f32 %v3927, %v3944
        %v3967 = vadd.f32 %v3928, %v3944
        %v3968 = vadd.f32 %v3929, %v3944
        %v3969 = vadd.f32 %v3930, %v3944
        %v3970 = vadd.f32 %v3931, %v3944
        %v3971 = vadd.f32 %v3932, %v3944
        %v3972 = vadd.f32 %v3933, %v3944
        %v3973 = vadd.f32 %v3934, %v3944
        %v3974 = vadd.f32 %v3935, %v3944
        %v3975 = vadd.f32 %v3936, %v3944
        %v3976 = vadd.f32 %v3937, %v3944
        %v3977 = vadd.f32 %v3938, %v3944
        %v3978 = vmax.f32 %v3946, 0.0
        %v3979 = vmax.f32 %v3947, 0.0
        %v3980 = vmax.f32 %v3948, 0.0
        %v3981 = vmax.f32 %v3949, 0.0
        %v3982 = vmax.f32 %v3950, 0.0
        %v3983 = vmax.f32 %v3951, 0.0
        %v3984 = vmax.f32 %v3952, 0.0
        %v3985 = vmax.f32 %v3953, 0.0
        %v3986 = vmax.f32 %v3954, 0.0
        %v3987 = vmax.f32 %v3955, 0.0
        %v3988 = vmax.f32 %v3956, 0.0
        %v3989 = vmax.f32 %v3957, 0.0
        %v3990 = vmax.f32 %v3958, 0.0
        %v3991 = vmax.f32 %v3959, 0.0
        %v3992 = vmax.f32 %v3960, 0.0
        %v3993 = vmax.f32 %v3961, 0.0
        %v3994 = vmax.f32 %v3962, 0.0
        %v3995 = vmax.f32 %v3963, 0.0
        %v3996 = vmax.f32 %v3964, 0.0
        %v3997 = vmax.f32 %v3965, 0.0
        %v3998 = vmax.f32 %v3966, 0.0
        %v3999 = vmax.f32 %v3967, 0.0
        %v4000 = vmax.f32 %v3968, 0.0
        %v4001 = vmax.f32 %v3969, 0.0
        %v4002 = vmax.f32 %v3970, 0.0
        %v4003 = vmax.f32 %v3971, 0.0
        %v4004 = vmax.f32 %v3972, 0.0
        %v4005 = vmax.f32 %v3973, 0.0
        %v4006 = vmax.f32 %v3974, 0.0
        %v4007 = vmax.f32 %v3975, 0.0
        %v4008 = vmax.f32 %v3976, 0.0
        %v4009 = vmax.f32 %v3977, 0.0
        %v4010 = vpack.c.bf16 %v3979, %v3978
        %v4011 = vpack.c.bf16 %v3981, %v3980
        %v4012 = vpack.c.bf16 %v3983, %v3982
        %v4013 = vpack.c.bf16 %v3985, %v3984
        %v4014 = vpack.c.bf16 %v3987, %v3986
        %v4015 = vpack.c.bf16 %v3989, %v3988
        %v4016 = vpack.c.bf16 %v3991, %v3990
        %v4017 = vpack.c.bf16 %v3993, %v3992
        %v4018 = vpack.c.bf16 %v3995, %v3994
        %v4019 = vpack.c.bf16 %v3997, %v3996
        %v4020 = vpack.c.bf16 %v3999, %v3998
        %v4021 = vpack.c.bf16 %v4001, %v4000
        %v4022 = vpack.c.bf16 %v4003, %v4002
        %v4023 = vpack.c.bf16 %v4005, %v4004
        %v4024 = vpack.c.bf16 %v4007, %v4006
        %v4025 = vpack.c.bf16 %v4009, %v4008
        %v4026 = vld [vmem:[#allocation9] sm:$0xf]
        %v4027 = vld [vmem:[#allocation9 + $0x4] sm:$0xf]
        %v4028 = vld [vmem:[#allocation9 + $0x8] sm:$0xf]
        %v4029 = vld [vmem:[#allocation9 + $0xc] sm:$0xf]
        %v4030 = vld [vmem:[#allocation9 + $0x10] sm:$0xf]
        %v4031 = vld [vmem:[#allocation9 + $0x14] sm:$0xf]
        %v4032 = vld [vmem:[#allocation9 + $0x18] sm:$0xf]
        %v4033 = vld [vmem:[#allocation9 + $0x1c] sm:$0xf]
        %v4034 = vld [vmem:[#allocation9 + $0x20] sm:$0xf]
        %v4035 = vld [vmem:[#allocation9 + $0x24] sm:$0xf]
        %v4036 = vld [vmem:[#allocation9 + $0x28] sm:$0xf]
        %v4037 = vld [vmem:[#allocation9 + $0x2c] sm:$0xf]
        %v4038 = vld [vmem:[#allocation9 + $0x30] sm:$0xf]
        %v4039 = vld [vmem:[#allocation9 + $0x34] sm:$0xf]
        %v4040 = vld [vmem:[#allocation9 + $0x38] sm:$0xf]
        %v4041 = vld [vmem:[#allocation9 + $0x3c] sm:$0xf]
        %v4042 = vld [vmem:[%s6] sm:$0x1]
        %v4044 = vlaneseq
        %v4045 = vshrl.u32 %v4044, 7
        %v4046 = vsub.s32 0, %v4045
        %v4047 = vrot.slane %v4042, %v4046
        %v4065 = vunpack.c.l.b16 %v4026
        %v4066 = vunpack.c.l.b16 %v4027
        %v4067 = vunpack.c.l.b16 %v4028
        %v4068 = vunpack.c.l.b16 %v4029
        %v4069 = vunpack.c.l.b16 %v4030
        %v4070 = vunpack.c.l.b16 %v4031
        %v4071 = vunpack.c.l.b16 %v4032
        %v4072 = vunpack.c.l.b16 %v4033
        %v4073 = vunpack.c.l.b16 %v4034
        %v4074 = vunpack.c.l.b16 %v4035
        %v4075 = vunpack.c.l.b16 %v4036
        %v4076 = vunpack.c.l.b16 %v4037
        %v4077 = vunpack.c.l.b16 %v4038
        %v4078 = vunpack.c.l.b16 %v4039
        %v4079 = vunpack.c.l.b16 %v4040
        %v4080 = vunpack.c.l.b16 %v4041
        %v4081 = vpack.c.b16 %v4066, %v4065
        %v4082 = vpack.c.b16 %v4068, %v4067
        %v4083 = vpack.c.b16 %v4070, %v4069
        %v4084 = vpack.c.b16 %v4072, %v4071
        %v4085 = vpack.c.b16 %v4074, %v4073
        %v4086 = vpack.c.b16 %v4076, %v4075
        %v4087 = vpack.c.b16 %v4078, %v4077
        %v4088 = vpack.c.b16 %v4080, %v4079
        %4097 = vmatprep.subr.bf16.mxu0 0
        %4098 = vmatpush1.bf16.msra.mxu0 %v4081
        %4099 = vmatprep.subr.bf16.mxu0 0
        %4100 = vmatpush1.bf16.msra.mxu0 %v4082
        %4101 = vmatprep.subr.bf16.mxu0 0
        %4102 = vmatpush1.bf16.msra.mxu0 %v4083
        %4103 = vmatprep.subr.bf16.mxu0 0
        %4104 = vmatpush1.bf16.msra.mxu0 %v4084
        %4105 = vmatprep.subr.bf16.mxu0 0
        %4106 = vmatpush1.bf16.msra.mxu0 %v4085
        %4107 = vmatprep.subr.bf16.mxu0 0
        %4108 = vmatpush1.bf16.msra.mxu0 %v4086
        %4109 = vmatprep.subr.bf16.mxu0 0
        %4110 = vmatpush1.bf16.msra.mxu0 %v4087
        %4111 = vmatprep.subr.bf16.mxu0 0
        %4112 = vmatpush1.bf16.msra.mxu0 %v4088
        %4113 = vmatprep.subr.bf16.mxu0 0
        %4114 = vmatpush1.bf16.msra.mxu0 0
        %4115 = vmatprep.subr.bf16.mxu0 0
        %4116 = vmatpush1.bf16.msra.mxu0 0
        %4117 = vmatprep.subr.bf16.mxu0 0
        %4118 = vmatpush1.bf16.msra.mxu0 0
        %4119 = vmatprep.subr.bf16.mxu0 0
        %4120 = vmatpush1.bf16.msra.mxu0 0
        %4121 = vmatprep.subr.bf16.mxu0 0
        %4122 = vmatpush1.bf16.msra.mxu0 0
        %4123 = vmatprep.subr.bf16.mxu0 0
        %4124 = vmatpush1.bf16.msra.mxu0 0
        %4125 = vmatprep.subr.bf16.mxu0 0
        %4126 = vmatpush1.bf16.msra.mxu0 0
        %4127 = vmatprep.subr.bf16.mxu0 0
        %4128 = vmatpush1.bf16.msra.mxu0 0
        %4129 = vmatprep.mubr.bf16.mxu0 0
        %4130 = vmatmul.mubr.bf16.gmra.mrb[0].mxu0 %v4010
        %v4131 = vpop.f32.mrb[0].mxu0
        %v4132 = vadd.f32 %v4047, %v4131
        %v4133 = vpop.f32.mrb[0].mxu0
        %v4134 = vpop.f32.mrb[0].mxu0
        %v4135 = vadd.f32 %v4047, %v4134
        %v4136 = vpop.f32.mrb[0].mxu0
        %4137 = vmatprep.mubr.bf16.mxu0 0
        %4138 = vmatmul.mubr.bf16.gmra.mrb[0].mxu0 %v4011
        %v4139 = vpop.f32.mrb[0].mxu0
        %v4140 = vadd.f32 %v4047, %v4139
        %v4141 = vpop.f32.mrb[0].mxu0
        %v4142 = vpop.f32.mrb[0].mxu0
        %v4143 = vadd.f32 %v4047, %v4142
        %v4144 = vpop.f32.mrb[0].mxu0
        %4145 = vmatprep.mubr.bf16.mxu0 0
        %4146 = vmatmul.mubr.bf16.gmra.mrb[0].mxu0 %v4012
        %v4147 = vpop.f32.mrb[0].mxu0
        %v4148 = vadd.f32 %v4047, %v4147
        %v4149 = vpop.f32.mrb[0].mxu0
        %v4150 = vpop.f32.mrb[0].mxu0
        %v4151 = vadd.f32 %v4047, %v4150
        %v4152 = vpop.f32.mrb[0].mxu0
        %4153 = vmatprep.mubr.bf16.mxu0 0
        %4154 = vmatmul.mubr.bf16.gmra.mrb[0].mxu0 %v4013
        %v4155 = vpop.f32.mrb[0].mxu0
        %v4156 = vadd.f32 %v4047, %v4155
        %v4157 = vpop.f32.mrb[0].mxu0
        %v4158 = vpop.f32.mrb[0].mxu0
        %v4159 = vadd.f32 %v4047, %v4158
        %v4160 = vpop.f32.mrb[0].mxu0
        %4161 = vmatprep.mubr.bf16.mxu0 0
        %4162 = vmatmul.mubr.bf16.gmra.mrb[0].mxu0 %v4014
        %v4163 = vpop.f32.mrb[0].mxu0
        %v4164 = vadd.f32 %v4047, %v4163
        %v4165 = vpop.f32.mrb[0].mxu0
        %v4166 = vpop.f32.mrb[0].mxu0
        %v4167 = vadd.f32 %v4047, %v4166
        %v4168 = vpop.f32.mrb[0].mxu0
        %4169 = vmatprep.mubr.bf16.mxu0 0
        %4170 = vmatmul.mubr.bf16.gmra.mrb[0].mxu0 %v4015
        %v4171 = vpop.f32.mrb[0].mxu0
        %v4172 = vadd.f32 %v4047, %v4171
        %v4173 = vpop.f32.mrb[0].mxu0
        %v4174 = vpop.f32.mrb[0].mxu0
        %v4175 = vadd.f32 %v4047, %v4174
        %v4176 = vpop.f32.mrb[0].mxu0
        %4177 = vmatprep.mubr.bf16.mxu0 0
        %4178 = vmatmul.mubr.bf16.gmra.mrb[0].mxu0 %v4016
        %v4179 = vpop.f32.mrb[0].mxu0
        %v4180 = vadd.f32 %v4047, %v4179
        %v4181 = vpop.f32.mrb[0].mxu0
        %v4182 = vpop.f32.mrb[0].mxu0
        %v4183 = vadd.f32 %v4047, %v4182
        %v4184 = vpop.f32.mrb[0].mxu0
        %4185 = vmatprep.mubr.bf16.mxu0 0
        %4186 = vmatmul.mubr.bf16.gmra.mrb[0].mxu0 %v4017
        %v4187 = vpop.f32.mrb[0].mxu0
        %v4188 = vadd.f32 %v4047, %v4187
        %v4189 = vpop.f32.mrb[0].mxu0
        %v4190 = vpop.f32.mrb[0].mxu0
        %v4191 = vadd.f32 %v4047, %v4190
        %v4192 = vpop.f32.mrb[0].mxu0
        %4193 = vmatprep.mubr.bf16.mxu0 0
        %4194 = vmatmul.mubr.bf16.gmra.mrb[0].mxu0 %v4018
        %v4195 = vpop.f32.mrb[0].mxu0
        %v4196 = vadd.f32 %v4047, %v4195
        %v4197 = vpop.f32.mrb[0].mxu0
        %v4198 = vpop.f32.mrb[0].mxu0
        %v4199 = vadd.f32 %v4047, %v4198
        %v4200 = vpop.f32.mrb[0].mxu0
        %4201 = vmatprep.mubr.bf16.mxu0 0
        %4202 = vmatmul.mubr.bf16.gmra.mrb[0].mxu0 %v4019
        %v4203 = vpop.f32.mrb[0].mxu0
        %v4204 = vadd.f32 %v4047, %v4203
        %v4205 = vpop.f32.mrb[0].mxu0
        %v4206 = vpop.f32.mrb[0].mxu0
        %v4207 = vadd.f32 %v4047, %v4206
        %v4208 = vpop.f32.mrb[0].mxu0
        %4209 = vmatprep.mubr.bf16.mxu0 0
        %4210 = vmatmul.mubr.bf16.gmra.mrb[0].mxu0 %v4020
        %v4211 = vpop.f32.mrb[0].mxu0
        %v4212 = vadd.f32 %v4047, %v4211
        %v4213 = vpop.f32.mrb[0].mxu0
        %v4214 = vpop.f32.mrb[0].mxu0
        %v4215 = vadd.f32 %v4047, %v4214
        %v4216 = vpop.f32.mrb[0].mxu0
        %4217 = vmatprep.mubr.bf16.mxu0 0
        %4218 = vmatmul.mubr.bf16.gmra.mrb[0].mxu0 %v4021
        %v4219 = vpop.f32.mrb[0].mxu0
        %v4220 = vadd.f32 %v4047, %v4219
        %v4221 = vpop.f32.mrb[0].mxu0
        %v4222 = vpop.f32.mrb[0].mxu0
        %v4223 = vadd.f32 %v4047, %v4222
        %v4224 = vpop.f32.mrb[0].mxu0
        %4225 = vmatprep.mubr.bf16.mxu0 0
        %4226 = vmatmul.mubr.bf16.gmra.mrb[0].mxu0 %v4022
        %v4227 = vpop.f32.mrb[0].mxu0
        %v4228 = vadd.f32 %v4047, %v4227
        %v4229 = vpop.f32.mrb[0].mxu0
        %v4230 = vpop.f32.mrb[0].mxu0
        %v4231 = vadd.f32 %v4047, %v4230
        %v4232 = vpop.f32.mrb[0].mxu0
        %4233 = vmatprep.mubr.bf16.mxu0 0
        %4234 = vmatmul.mubr.bf16.gmra.mrb[0].mxu0 %v4023
        %v4235 = vpop.f32.mrb[0].mxu0
        %v4236 = vadd.f32 %v4047, %v4235
        %v4237 = vpop.f32.mrb[0].mxu0
        %v4238 = vpop.f32.mrb[0].mxu0
        %v4239 = vadd.f32 %v4047, %v4238
        %v4240 = vpop.f32.mrb[0].mxu0
        %4241 = vmatprep.mubr.bf16.mxu0 0
        %4242 = vmatmul.mubr.bf16.gmra.mrb[0].mxu0 %v4024
        %v4243 = vpop.f32.mrb[0].mxu0
        %v4244 = vadd.f32 %v4047, %v4243
        %v4245 = vpop.f32.mrb[0].mxu0
        %v4246 = vpop.f32.mrb[0].mxu0
        %v4247 = vadd.f32 %v4047, %v4246
        %v4248 = vpop.f32.mrb[0].mxu0
        %4249 = vmatprep.mubr.bf16.mxu0 0
        %4250 = vmatmul.mubr.bf16.gmra.mrb[0].mxu0 %v4025
        %v4251 = vpop.f32.mrb[0].mxu0
        %v4252 = vadd.f32 %v4047, %v4251
        %v4253 = vpop.f32.mrb[0].mxu0
        %v4254 = vpop.f32.mrb[0].mxu0
        %v4255 = vadd.f32 %v4047, %v4254
        %v4256 = vpop.f32.mrb[0].mxu0
        %4257 = vdwg.mxu0
        %v4258 = vunpack.c.l.bf16 %v344
        %v4259 = vunpack.c.l.bf16 %v345
        %v4260 = vunpack.c.l.bf16 %v346
        %v4261 = vunpack.c.l.bf16 %v347
        %v4262 = vunpack.c.l.bf16 %v348
        %v4263 = vunpack.c.l.bf16 %v349
        %v4264 = vunpack.c.l.bf16 %v350
        %v4265 = vunpack.c.l.bf16 %v351
        %v4266 = vunpack.c.l.bf16 %v352
        %v4267 = vunpack.c.l.bf16 %v353
        %v4268 = vunpack.c.l.bf16 %v354
        %v4269 = vunpack.c.l.bf16 %v355
        %v4270 = vunpack.c.l.bf16 %v356
        %v4271 = vunpack.c.l.bf16 %v357
        %v4272 = vunpack.c.l.bf16 %v358
        %v4273 = vunpack.c.l.bf16 %v359
        %v4274 = vunpack.c.l.bf16 %v360
        %v4275 = vunpack.c.l.bf16 %v361
        %v4276 = vunpack.c.l.bf16 %v362
        %v4277 = vunpack.c.l.bf16 %v363
        %v4278 = vunpack.c.l.bf16 %v364
        %v4279 = vunpack.c.l.bf16 %v365
        %v4280 = vunpack.c.l.bf16 %v366
        %v4281 = vunpack.c.l.bf16 %v367
        %v4282 = vunpack.c.l.bf16 %v368
        %v4283 = vunpack.c.l.bf16 %v369
        %v4284 = vunpack.c.l.bf16 %v370
        %v4285 = vunpack.c.l.bf16 %v371
        %v4286 = vunpack.c.l.bf16 %v372
        %v4287 = vunpack.c.l.bf16 %v373
        %v4288 = vunpack.c.l.bf16 %v374
        %v4289 = vunpack.c.l.bf16 %v375
        %v4290 = vadd.f32 %v4132, %v4258
        %v4291 = vadd.f32 %v4135, %v4259
        %v4292 = vadd.f32 %v4140, %v4260
        %v4293 = vadd.f32 %v4143, %v4261
        %v4294 = vadd.f32 %v4148, %v4262
        %v4295 = vadd.f32 %v4151, %v4263
        %v4296 = vadd.f32 %v4156, %v4264
        %v4297 = vadd.f32 %v4159, %v4265
        %v4298 = vadd.f32 %v4164, %v4266
        %v4299 = vadd.f32 %v4167, %v4267
        %v4300 = vadd.f32 %v4172, %v4268
        %v4301 = vadd.f32 %v4175, %v4269
        %v4302 = vadd.f32 %v4180, %v4270
        %v4303 = vadd.f32 %v4183, %v4271
        %v4304 = vadd.f32 %v4188, %v4272
        %v4305 = vadd.f32 %v4191, %v4273
        %v4306 = vadd.f32 %v4196, %v4274
        %v4307 = vadd.f32 %v4199, %v4275
        %v4308 = vadd.f32 %v4204, %v4276
        %v4309 = vadd.f32 %v4207, %v4277
        %v4310 = vadd.f32 %v4212, %v4278
        %v4311 = vadd.f32 %v4215, %v4279
        %v4312 = vadd.f32 %v4220, %v4280
        %v4313 = vadd.f32 %v4223, %v4281
        %v4314 = vadd.f32 %v4228, %v4282
        %v4315 = vadd.f32 %v4231, %v4283
        %v4316 = vadd.f32 %v4236, %v4284
        %v4317 = vadd.f32 %v4239, %v4285
        %v4318 = vadd.f32 %v4244, %v4286
        %v4319 = vadd.f32 %v4247, %v4287
        %v4320 = vadd.f32 %v4252, %v4288
        %v4321 = vadd.f32 %v4255, %v4289
        %v4322 = vmax.f32 %v4290, 0.0
        %v4323 = vmax.f32 %v4291, 0.0
        %v4324 = vmax.f32 %v4292, 0.0
        %v4325 = vmax.f32 %v4293, 0.0
        %v4326 = vmax.f32 %v4294, 0.0
        %v4327 = vmax.f32 %v4295, 0.0
        %v4328 = vmax.f32 %v4296, 0.0
        %v4329 = vmax.f32 %v4297, 0.0
        %v4330 = vmax.f32 %v4298, 0.0
        %v4331 = vmax.f32 %v4299, 0.0
        %v4332 = vmax.f32 %v4300, 0.0
        %v4333 = vmax.f32 %v4301, 0.0
        %v4334 = vmax.f32 %v4302, 0.0
        %v4335 = vmax.f32 %v4303, 0.0
        %v4336 = vmax.f32 %v4304, 0.0
        %v4337 = vmax.f32 %v4305, 0.0
        %v4338 = vmax.f32 %v4306, 0.0
        %v4339 = vmax.f32 %v4307, 0.0
        %v4340 = vmax.f32 %v4308, 0.0
        %v4341 = vmax.f32 %v4309, 0.0
        %v4342 = vmax.f32 %v4310, 0.0
        %v4343 = vmax.f32 %v4311, 0.0
        %v4344 = vmax.f32 %v4312, 0.0
        %v4345 = vmax.f32 %v4313, 0.0
        %v4346 = vmax.f32 %v4314, 0.0
        %v4347 = vmax.f32 %v4315, 0.0
        %v4348 = vmax.f32 %v4316, 0.0
        %v4349 = vmax.f32 %v4317, 0.0
        %v4350 = vmax.f32 %v4318, 0.0
        %v4351 = vmax.f32 %v4319, 0.0
        %v4352 = vmax.f32 %v4320, 0.0
        %v4353 = vmax.f32 %v4321, 0.0
        %v4354 = vpack.c.bf16 %v4323, %v4322
        %v4355 = vpack.c.bf16 %v4325, %v4324
        %v4356 = vpack.c.bf16 %v4327, %v4326
        %v4357 = vpack.c.bf16 %v4329, %v4328
        %v4358 = vpack.c.bf16 %v4331, %v4330
        %v4359 = vpack.c.bf16 %v4333, %v4332
        %v4360 = vpack.c.bf16 %v4335, %v4334
        %v4361 = vpack.c.bf16 %v4337, %v4336
        %v4362 = vpack.c.bf16 %v4339, %v4338
        %v4363 = vpack.c.bf16 %v4341, %v4340
        %v4364 = vpack.c.bf16 %v4343, %v4342
        %v4365 = vpack.c.bf16 %v4345, %v4344
        %v4366 = vpack.c.bf16 %v4347, %v4346
        %v4367 = vpack.c.bf16 %v4349, %v4348
        %v4368 = vpack.c.bf16 %v4351, %v4350
        %v4369 = vpack.c.bf16 %v4353, %v4352
        %v4386 = vunpack.c.l.b16 %v4354
        %v4387 = vunpack.c.h.b16 %v4354
        %v4388 = vunpack.c.l.b16 %v4355
        %v4389 = vunpack.c.h.b16 %v4355
        %v4390 = vunpack.c.l.b16 %v4356
        %v4391 = vunpack.c.h.b16 %v4356
        %v4392 = vunpack.c.l.b16 %v4357
        %v4393 = vunpack.c.h.b16 %v4357
        %v4394 = vunpack.c.l.b16 %v4358
        %v4395 = vunpack.c.h.b16 %v4358
        %v4396 = vunpack.c.l.b16 %v4359
        %v4397 = vunpack.c.h.b16 %v4359
        %v4398 = vunpack.c.l.b16 %v4360
        %v4399 = vunpack.c.h.b16 %v4360
        %v4400 = vunpack.c.l.b16 %v4361
        %v4401 = vunpack.c.h.b16 %v4361
        %v4402 = vunpack.c.l.b16 %v4362
        %v4403 = vunpack.c.h.b16 %v4362
        %v4404 = vunpack.c.l.b16 %v4363
        %v4405 = vunpack.c.h.b16 %v4363
        %v4406 = vunpack.c.l.b16 %v4364
        %v4407 = vunpack.c.h.b16 %v4364
        %v4408 = vunpack.c.l.b16 %v4365
        %v4409 = vunpack.c.h.b16 %v4365
        %v4410 = vunpack.c.l.b16 %v4366
        %v4411 = vunpack.c.h.b16 %v4366
        %v4412 = vunpack.c.l.b16 %v4367
        %v4413 = vunpack.c.h.b16 %v4367
        %v4414 = vunpack.c.l.b16 %v4368
        %v4415 = vunpack.c.h.b16 %v4368
        %v4416 = vunpack.c.l.b16 %v4369
        %v4417 = vunpack.c.h.b16 %v4369
        %v4418 = vpack.c.b16 %v4386, %v4386
        %v4419 = vpack.c.b16 %v4387, %v4387
        %v4420 = vpack.c.b16 %v4388, %v4388
        %v4421 = vpack.c.b16 %v4389, %v4389
        %v4422 = vpack.c.b16 %v4390, %v4390
        %v4423 = vpack.c.b16 %v4391, %v4391
        %v4424 = vpack.c.b16 %v4392, %v4392
        %v4425 = vpack.c.b16 %v4393, %v4393
        %v4426 = vpack.c.b16 %v4394, %v4394
        %v4427 = vpack.c.b16 %v4395, %v4395
        %v4428 = vpack.c.b16 %v4396, %v4396
        %v4429 = vpack.c.b16 %v4397, %v4397
        %v4430 = vpack.c.b16 %v4398, %v4398
        %v4431 = vpack.c.b16 %v4399, %v4399
        %v4432 = vpack.c.b16 %v4400, %v4400
        %v4433 = vpack.c.b16 %v4401, %v4401
        %v4434 = vpack.c.b16 %v4402, %v4402
        %v4435 = vpack.c.b16 %v4403, %v4403
        %v4436 = vpack.c.b16 %v4404, %v4404
        %v4437 = vpack.c.b16 %v4405, %v4405
        %v4438 = vpack.c.b16 %v4406, %v4406
        %v4439 = vpack.c.b16 %v4407, %v4407
        %v4440 = vpack.c.b16 %v4408, %v4408
        %v4441 = vpack.c.b16 %v4409, %v4409
        %v4442 = vpack.c.b16 %v4410, %v4410
        %v4443 = vpack.c.b16 %v4411, %v4411
        %v4444 = vpack.c.b16 %v4412, %v4412
        %v4445 = vpack.c.b16 %v4413, %v4413
        %v4446 = vpack.c.b16 %v4414, %v4414
        %v4447 = vpack.c.b16 %v4415, %v4415
        %v4448 = vpack.c.b16 %v4416, %v4416
        %v4449 = vpack.c.b16 %v4417, %v4417
        %4482 = vst [vmem:[%s340] sm:$0xf] %v4418
        %4483 = vst [vmem:[%s340 + $0x4] sm:$0xf] %v4419
        %4484 = vst [vmem:[%s340 + $0x8] sm:$0xf] %v4420
        %4485 = vst [vmem:[%s340 + $0xc] sm:$0xf] %v4421
        %4486 = vst [vmem:[%s340 + $0x10] sm:$0xf] %v4422
        %4487 = vst [vmem:[%s340 + $0x14] sm:$0xf] %v4423
        %4488 = vst [vmem:[%s340 + $0x18] sm:$0xf] %v4424
        %4489 = vst [vmem:[%s340 + $0x1c] sm:$0xf] %v4425
        %4490 = vst [vmem:[%s340 + $0x20] sm:$0xf] %v4426
        %4491 = vst [vmem:[%s340 + $0x24] sm:$0xf] %v4427
        %4492 = vst [vmem:[%s340 + $0x28] sm:$0xf] %v4428
        %4493 = vst [vmem:[%s340 + $0x2c] sm:$0xf] %v4429
        %4494 = vst [vmem:[%s340 + $0x30] sm:$0xf] %v4430
        %4495 = vst [vmem:[%s340 + $0x34] sm:$0xf] %v4431
        %4496 = vst [vmem:[%s340 + $0x38] sm:$0xf] %v4432
        %4497 = vst [vmem:[%s340 + $0x3c] sm:$0xf] %v4433
        %4498 = vst [vmem:[%s340 + $0x40] sm:$0xf] %v4434
        %4499 = vst [vmem:[%s340 + $0x44] sm:$0xf] %v4435
        %4500 = vst [vmem:[%s340 + $0x48] sm:$0xf] %v4436
        %4501 = vst [vmem:[%s340 + $0x4c] sm:$0xf] %v4437
        %4502 = vst [vmem:[%s340 + $0x50] sm:$0xf] %v4438
        %4503 = vst [vmem:[%s340 + $0x54] sm:$0xf] %v4439
        %4504 = vst [vmem:[%s340 + $0x58] sm:$0xf] %v4440
        %4505 = vst [vmem:[%s340 + $0x5c] sm:$0xf] %v4441
        %4506 = vst [vmem:[%s340 + $0x60] sm:$0xf] %v4442
        %4507 = vst [vmem:[%s340 + $0x64] sm:$0xf] %v4443
        %4508 = vst [vmem:[%s340 + $0x68] sm:$0xf] %v4444
        %4509 = vst [vmem:[%s340 + $0x6c] sm:$0xf] %v4445
        %4510 = vst [vmem:[%s340 + $0x70] sm:$0xf] %v4446
        %4511 = vst [vmem:[%s340 + $0x74] sm:$0xf] %v4447
        %4512 = vst [vmem:[%s340 + $0x78] sm:$0xf] %v4448
        %4513 = vst [vmem:[%s340 + $0x7c] sm:$0xf] %v4449
        %s4514 = sand.u32 %s186, 1
        %s4515 = scalar_lea.sflag [#allocation5], %s4514
        %s4516 = sand.u32 %s186, 1
        %s4517 = smul.addr %s4516, 128
        %s4518 = scalar_lea.vmem [#allocation11], %s4517
        // Predicated region
        $region65: #{tpu_custom_call.1} parent=47 // pred_check
          %p4519 = pneg %p196
        $region66: #{tpu_custom_call.1} parent=47 // pred_check_branch
          %4521 = sbr.rel (%p4519) target = $region68
        $region67: #{tpu_custom_call.1} parent=47 // pred_region
          %s4523 = ssub.s32 2048, 2048
          %4524 = vsyncadd %s4515, %s4523
          %s4525 = smul.addr %s26, 32
          %s4526 = smul.addr %s4525, 64
          %s4527 = scalar_lea.hbm %s7, %s4526
          %s4528 = sshll.u32 %s4518, 4
          %s4529 = int_to_ptr.vmem [resolvable:$true] %s4528
          %4534 = dma.vmem_to_hbm [thread:$0]  %s4529, 2048, %s4527, %s4515, 64, 64, 4
        $region68: #{tpu_custom_call.1} parent=47 // pred_fallthru
          _
      $region48: #{tpu_custom_call.1} parent=5 // pred_fallthru
        _
      %p4535 = scmp.le.s32.totalorder 2, %s21
      // Predicated region
      $region69: #{tpu_custom_call.1} parent=5 // pred_check
        %p4536 = pneg %p4535
      $region70: #{tpu_custom_call.1} parent=5 // pred_check_branch
        %4538 = sbr.rel (%p4536) target = $region72
      $region71: #{tpu_custom_call.1} parent=5 // pred_region
        %s4539 = ssub.s32 %s21, 2
        // Predicated region
        $region73: #{tpu_custom_call.1} parent=71 // pred_check
          %p4540 = pneg %p202
        $region74: #{tpu_custom_call.1} parent=71 // pred_check_branch
          %4542 = sbr.rel (%p4540) target = $region76
        $region75: #{tpu_custom_call.1} parent=71 // pred_region
          %s4543 = sand.u32 %s187, 1
          %s4544 = scalar_lea.sflag [#allocation5], %s4543
          %s4545 = sand.u32 %s187, 1
          %s4546 = smul.addr %s4545, 128
          %s4547 = scalar_lea.vmem [#allocation11], %s4546
          %4548 = dma.done %s4544, 2048
        $region76: #{tpu_custom_call.1} parent=71 // pred_fallthru
          _
      $region72: #{tpu_custom_call.1} parent=5 // pred_fallthru
        _
    $region6: #{tpu_custom_call.1} parent=1 // loop_footer
      %s25 = sadd.s32 1, %s21
    $region7: #{tpu_custom_call.1} parent=1 // loop_footer_branch
      %20 = sbr.rel target = $region3
    $region8: #{tpu_custom_call.1} parent=1 // loop_exit
      _
    %4549 = vsyncpa [#allocation4], 1
    %s4550 = scalar_lea.sflag [#allocation4], 1
    %4551 = vsyncpa %s4550, 1
    %4552 = vsyncpa [#allocation7], 1
    %4553 = vsyncpa [#allocation10], 1
    %4554 = vsyncpa [#allocation5], 1
    %s4555 = scalar_lea.sflag [#allocation5], 1
    %4556 = vsyncpa %s4555, 1

</llo_original>
